<compile_context>
chip_gen: v7x
topology: tpu7x:2x2x1
jax: 0.10.0
libtpu: 0.0.40
codegen_flags: <defaults>
</compile_context>

<pallas_src>
import jax
import jax.numpy as jnp
import numpy as np
from jax.experimental import pallas as pl
from jax.experimental.pallas import tpu as pltpu


def _conv_residual_kernel(x_ref, w_ref, b_ref, o_ref):
    # x_ref: (1, TH+2, Wp2, Cp)  f32 halo'd input row band (NHWC, width/channel padded)
    # w_ref: (9, Cp, Cp)         resident per-tap weight matrices (Cin -> Cout), bf16
    # b_ref: (1, Cp)             bias row, f32
    # o_ref: (1, TH, W, Cp)      output band, f32
    th, w_out = o_ref.shape[1], o_ref.shape[2]
    wp2, cp = x_ref.shape[2], x_ref.shape[3]
    m = th * wp2

    xb32 = x_ref[0]                                    # (TH+2, Wp2, Cp) f32
    xb = xb32.astype(w_ref.dtype)                      # one cast, reused by all 9 taps

    # Leading-axis slices + sublane-aligned reshape -> zero-copy full-width slabs.
    slabs = [xb[kh:kh + th].reshape(m, cp) for kh in range(3)]

    y = None
    for kw in range(3):
        # Three chained MXU dots share one f32 accumulator (one RMW per kw).
        acc = jnp.dot(slabs[0], w_ref[kw], preferred_element_type=jnp.float32)
        acc = acc + jnp.dot(slabs[1], w_ref[3 + kw], preferred_element_type=jnp.float32)
        acc = acc + jnp.dot(slabs[2], w_ref[6 + kw], preferred_element_type=jnp.float32)
        if kw == 0:
            acc = acc + b_ref[...]                     # bias once, f32
        if kw == 1:
            # Residual = centre tap of the same band, exact f32 (no bf16 rounding of
            # the skip path), fused before the shared kw shift.
            acc = acc + xb32[1:1 + th].reshape(m, cp)
        # One shifted slice per kw (3 total) instead of 9-10 per-tap extractions.
        part = acc.reshape(th, wp2, cp)[:, kw:kw + w_out, :]
        y = part if y is None else y + part

    o_ref[...] = y[None].astype(o_ref.dtype)


def resnet_block(x_nchw, weight, bias, *, max_rows=None, compute_dtype=jnp.bfloat16):
    """module(x) + x with module = Conv2d(C, C, 3, padding=1, bias=True).

    x_nchw: (N, C, H, W) f32; weight: (C, C, 3, 3); bias: (C,). Returns (N, C, H, W).
    """
    N, C, H, W = x_nchw.shape
    Cp = ((C + 127) // 128) * 128                      # lane-dense channel width
    Wp2 = ((W + 2 + 7) // 8) * 8                       # halo'd width, sublane aligned
    itemsize = jnp.dtype(compute_dtype).itemsize

    # ---- generation-aware VMEM budget -> rows per band (TH) ----
    try:
        vmem_cap = int(pltpu.get_tpu_info().vmem_capacity_bytes)
    except Exception:
        vmem_cap = 64 << 20                            # v7x per-core VMEM (most restrictive)
    budget = int(vmem_cap * 0.55)

    w_bytes = 9 * Cp * Cp * itemsize                   # resident bf16 taps
    b_bytes = Cp * 4

    def vmem_need(th):
        band_in = (th + 2) * Wp2 * Cp * 4              # f32 halo band
        band_out = th * W * Cp * 4                     # f32 output band
        tmp = ((th + 2) * Wp2 * Cp * itemsize          # casted band
               + th * Wp2 * Cp * 4                     # per-kw f32 accumulator
               + 2 * th * W * Cp * 4)                  # shifted part + running sum
        return 2 * (band_in + band_out) + 2 * w_bytes + b_bytes + tmp

    divisors = [d for d in range(H, 0, -1) if H % d == 0]
    if max_rows is not None:
        divisors = [d for d in divisors if d * W <= max_rows] or [1]
    if N == 1 and H > 1:                               # keep grid >= 2 for megacore
        divisors = [d for d in divisors if d < H] or divisors
    TH = next((d for d in divisors if vmem_need(d) <= budget), divisors[-1])
    num_hb = H // TH
    G = N * num_hb                                     # grid size (one row band per step)

    # ---- glue: NCHW->NHWC, spatial zero-pad (W+2 rounded to 8), channel pad ----
    x_nhwc = jnp.transpose(x_nchw, (0, 2, 3, 1))                              # (N,H,W,C)
    xp = jnp.pad(x_nhwc, ((0, 0), (1, 1), (1, Wp2 - (W + 1)), (0, Cp - C)))   # (N,H+2,Wp2,Cp)
    if num_hb == 1:
        xbands = xp                                                            # no extra HBM pass
    else:
        # TODO(synk): replace with in-kernel halo DMA for very tall images.
        xbands = jnp.stack(
            [xp[:, hb * TH: hb * TH + TH + 2] for hb in range(num_hb)], axis=1
        ).reshape(G, TH + 2, Wp2, Cp)

    # PyTorch conv weight (Cout, Cin, kh, kw) -> per-tap (Cin, Cout), padded, bf16.
    w_taps = jnp.transpose(weight, (2, 3, 1, 0)).reshape(9, C, C)
    w_taps = jnp.pad(w_taps, ((0, 0), (0, Cp - C), (0, Cp - C))).astype(compute_dtype)
    b_row = jnp.pad(bias, (0, Cp - C)).reshape(1, Cp).astype(jnp.float32)

    # cost / VMEM budgeting
    flops = int(2 * G * TH * Wp2 * 9 * Cp * Cp)
    bytes_accessed = int(xbands.size * 4 + w_taps.size * itemsize
                         + b_row.size * 4 + G * TH * W * Cp * 4)
    need = vmem_need(TH)
    vmem_limit = int(min(max(int(need * 1.25), 16 << 20), int(vmem_cap * 0.9)))

    out_p = pl.pallas_call(
        _conv_residual_kernel,
        out_shape=jax.ShapeDtypeStruct((G, TH, W, Cp), x_nchw.dtype),
        grid_spec=pltpu.PrefetchScalarGridSpec(
            num_scalar_prefetch=0,
            grid=(G,),
            in_specs=[
                pl.BlockSpec((1, TH + 2, Wp2, Cp), lambda g: (g, 0, 0, 0)),
                pl.BlockSpec((9, Cp, Cp), lambda g: (0, 0, 0)),   # resident weights
                pl.BlockSpec((1, Cp), lambda g: (0, 0)),          # resident bias
            ],
            out_specs=pl.BlockSpec((1, TH, W, Cp), lambda g: (g, 0, 0, 0)),
        ),
        compiler_params=pltpu.CompilerParams(
            dimension_semantics=("parallel",),
            vmem_limit_bytes=vmem_limit,
        ),
        cost_estimate=pl.CostEstimate(
            flops=flops, transcendentals=0, bytes_accessed=bytes_accessed),
    )(xbands, w_taps, b_row)

    # (G, TH, W, Cp) -> (N, H, W, Cp) -> drop channel padding -> NCHW
    out_nhwc = out_p.reshape(N, H, W, Cp)[..., :C]
    return jnp.transpose(out_nhwc, (0, 3, 1, 2)).astype(x_nchw.dtype)


def _reference(x_nchw, weight, bias):
    y = jax.lax.conv_general_dilated(
        x_nchw, weight, window_strides=(1, 1), padding="SAME",
        dimension_numbers=("NCHW", "OIHW", "NCHW"))
    return y + bias[None, :, None, None] + x_nchw


if __name__ == "__main__":
    key = jax.random.PRNGKey(0)
    kx, kw, kb = jax.random.split(key, 3)

    N, C, H, W = 2, 4, 16, 16
    x = jax.random.normal(kx, (N, C, H, W), dtype=jnp.float32)
    weight = jax.random.normal(kw, (C, C, 3, 3), dtype=jnp.float32) * 0.1
    bias = jax.random.normal(kb, (C,), dtype=jnp.float32) * 0.1

    ref = jax.block_until_ready(_reference(x, weight, bias))

    # Default path: VMEM-derived band covers the whole image -> grid=(2,)
    out = jax.block_until_ready(resnet_block(x, weight, bias))
    np.testing.assert_allclose(np.asarray(out), np.asarray(ref), rtol=2e-2, atol=2e-2)

    # Banded path: force TH=8 -> 2 row bands per image, grid=(4,)
    out_b = jax.block_until_ready(resnet_block(x, weight, bias, max_rows=128))
    np.testing.assert_allclose(np.asarray(out_b), np.asarray(ref), rtol=2e-2, atol=2e-2)

    print("KERNEL_OK")
</pallas_src>

<mosaic_0001>
module attributes {stable_mosaic.version = 11 : i64} {
  func.func @_conv_residual_kernel(%arg0: i32, %arg1: memref<1x18x24x128xf32, #tpu.memory_space<vmem>>, %arg2: memref<9x128x128xbf16, #tpu.memory_space<vmem>>, %arg3: memref<1x128xf32, #tpu.memory_space<vmem>>, %arg4: memref<1x16x16x128xf32, #tpu.memory_space<vmem>>) attributes {dimension_semantics = [#tpu.dimension_semantics<parallel>], iteration_bounds = array<i64: 2>, scalar_prefetch = 0 : i64, scratch_operands = 0 : i64, tpu.core_type = #tpu.core_type<tc>, window_params = [{transform_indices = @transform_0, window_bounds = array<i64: 1, 18, 24, 128>}, {pipeline_mode = #tpu.pipeline_mode<synchronous>, transform_indices = @transform_1, window_bounds = array<i64: 9, 128, 128>}, {pipeline_mode = #tpu.pipeline_mode<synchronous>, transform_indices = @transform_2, window_bounds = array<i64: 1, 128>}, {transform_indices = @transform_3, window_bounds = array<i64: 1, 16, 16, 128>}]} {
    %c0 = arith.constant 0 : index
    %c0_0 = arith.constant 0 : index
    %c0_1 = arith.constant 0 : index
    %c0_2 = arith.constant 0 : index
    %0 = vector.load %arg1[%c0, %c0_0, %c0_1, %c0_2] : memref<1x18x24x128xf32, #tpu.memory_space<vmem>>, vector<1x18x24x128xf32>
    %1 = vector.shape_cast %0 : vector<1x18x24x128xf32> to vector<18x24x128xf32>
    %2 = arith.truncf %1 : vector<18x24x128xf32> to vector<18x24x128xbf16>
    %3 = vector.extract_strided_slice %2 {offsets = [0, 0, 0], sizes = [16, 24, 128], strides = [1, 1, 1]} : vector<18x24x128xbf16> to vector<16x24x128xbf16>
    %4 = vector.shape_cast %3 : vector<16x24x128xbf16> to vector<384x128xbf16>
    %5 = vector.extract_strided_slice %2 {offsets = [1, 0, 0], sizes = [16, 24, 128], strides = [1, 1, 1]} : vector<18x24x128xbf16> to vector<16x24x128xbf16>
    %6 = vector.shape_cast %5 : vector<16x24x128xbf16> to vector<384x128xbf16>
    %7 = vector.extract_strided_slice %2 {offsets = [2, 0, 0], sizes = [16, 24, 128], strides = [1, 1, 1]} : vector<18x24x128xbf16> to vector<16x24x128xbf16>
    %8 = vector.shape_cast %7 : vector<16x24x128xbf16> to vector<384x128xbf16>
    %c0_3 = arith.constant 0 : index
    %c0_4 = arith.constant 0 : index
    %c0_5 = arith.constant 0 : index
    %9 = vector.load %arg2[%c0_3, %c0_4, %c0_5] : memref<9x128x128xbf16, #tpu.memory_space<vmem>>, vector<1x128x128xbf16>
    %10 = vector.shape_cast %9 : vector<1x128x128xbf16> to vector<128x128xbf16>
    %cst = arith.constant dense<0.000000e+00> : vector<384x128xf32>
    %11 = tpu.matmul %4, %10, %cst {dimension_numbers = #tpu.dot_dimension_numbers<[1], [0], [0], [1], [0, 0, 1, 1], [], []>} : vector<384x128xbf16>, vector<128x128xbf16>, vector<384x128xf32> -> vector<384x128xf32>
    %c3 = arith.constant 3 : index
    %c0_6 = arith.constant 0 : index
    %c0_7 = arith.constant 0 : index
    %12 = vector.load %arg2[%c3, %c0_6, %c0_7] : memref<9x128x128xbf16, #tpu.memory_space<vmem>>, vector<1x128x128xbf16>
    %13 = vector.shape_cast %12 : vector<1x128x128xbf16> to vector<128x128xbf16>
    %cst_8 = arith.constant dense<0.000000e+00> : vector<384x128xf32>
    %14 = tpu.matmul %6, %13, %cst_8 {dimension_numbers = #tpu.dot_dimension_numbers<[1], [0], [0], [1], [0, 0, 1, 1], [], []>} : vector<384x128xbf16>, vector<128x128xbf16>, vector<384x128xf32> -> vector<384x128xf32>
    %15 = arith.addf %11, %14 : vector<384x128xf32>
    %c6 = arith.constant 6 : index
    %c0_9 = arith.constant 0 : index
    %c0_10 = arith.constant 0 : index
    %16 = vector.load %arg2[%c6, %c0_9, %c0_10] : memref<9x128x128xbf16, #tpu.memory_space<vmem>>, vector<1x128x128xbf16>
    %17 = vector.shape_cast %16 : vector<1x128x128xbf16> to vector<128x128xbf16>
    %cst_11 = arith.constant dense<0.000000e+00> : vector<384x128xf32>
    %18 = tpu.matmul %8, %17, %cst_11 {dimension_numbers = #tpu.dot_dimension_numbers<[1], [0], [0], [1], [0, 0, 1, 1], [], []>} : vector<384x128xbf16>, vector<128x128xbf16>, vector<384x128xf32> -> vector<384x128xf32>
    %19 = arith.addf %15, %18 : vector<384x128xf32>
    %c0_12 = arith.constant 0 : index
    %c0_13 = arith.constant 0 : index
    %20 = vector.load %arg3[%c0_12, %c0_13] : memref<1x128xf32, #tpu.memory_space<vmem>>, vector<1x128xf32>
    %21 = vector.broadcast %20 : vector<1x128xf32> to vector<384x128xf32>
    %22 = arith.addf %19, %21 : vector<384x128xf32>
    %23 = vector.shape_cast %22 : vector<384x128xf32> to vector<16x24x128xf32>
    %24 = vector.extract_strided_slice %23 {offsets = [0, 0, 0], sizes = [16, 16, 128], strides = [1, 1, 1]} : vector<16x24x128xf32> to vector<16x16x128xf32>
    %c1 = arith.constant 1 : index
    %c0_14 = arith.constant 0 : index
    %c0_15 = arith.constant 0 : index
    %25 = vector.load %arg2[%c1, %c0_14, %c0_15] : memref<9x128x128xbf16, #tpu.memory_space<vmem>>, vector<1x128x128xbf16>
    %26 = vector.shape_cast %25 : vector<1x128x128xbf16> to vector<128x128xbf16>
    %cst_16 = arith.constant dense<0.000000e+00> : vector<384x128xf32>
    %27 = tpu.matmul %4, %26, %cst_16 {dimension_numbers = #tpu.dot_dimension_numbers<[1], [0], [0], [1], [0, 0, 1, 1], [], []>} : vector<384x128xbf16>, vector<128x128xbf16>, vector<384x128xf32> -> vector<384x128xf32>
    %c4 = arith.constant 4 : index
    %c0_17 = arith.constant 0 : index
    %c0_18 = arith.constant 0 : index
    %28 = vector.load %arg2[%c4, %c0_17, %c0_18] : memref<9x128x128xbf16, #tpu.memory_space<vmem>>, vector<1x128x128xbf16>
    %29 = vector.shape_cast %28 : vector<1x128x128xbf16> to vector<128x128xbf16>
    %cst_19 = arith.constant dense<0.000000e+00> : vector<384x128xf32>
    %30 = tpu.matmul %6, %29, %cst_19 {dimension_numbers = #tpu.dot_dimension_numbers<[1], [0], [0], [1], [0, 0, 1, 1], [], []>} : vector<384x128xbf16>, vector<128x128xbf16>, vector<384x128xf32> -> vector<384x128xf32>
    %31 = arith.addf %27, %30 : vector<384x128xf32>
    %c7 = arith.constant 7 : index
    %c0_20 = arith.constant 0 : index
    %c0_21 = arith.constant 0 : index
    %32 = vector.load %arg2[%c7, %c0_20, %c0_21] : memref<9x128x128xbf16, #tpu.memory_space<vmem>>, vector<1x128x128xbf16>
    %33 = vector.shape_cast %32 : vector<1x128x128xbf16> to vector<128x128xbf16>
    %cst_22 = arith.constant dense<0.000000e+00> : vector<384x128xf32>
    %34 = tpu.matmul %8, %33, %cst_22 {dimension_numbers = #tpu.dot_dimension_numbers<[1], [0], [0], [1], [0, 0, 1, 1], [], []>} : vector<384x128xbf16>, vector<128x128xbf16>, vector<384x128xf32> -> vector<384x128xf32>
    %35 = arith.addf %31, %34 : vector<384x128xf32>
    %36 = vector.extract_strided_slice %1 {offsets = [1, 0, 0], sizes = [16, 24, 128], strides = [1, 1, 1]} : vector<18x24x128xf32> to vector<16x24x128xf32>
    %37 = vector.shape_cast %36 : vector<16x24x128xf32> to vector<384x128xf32>
    %38 = arith.addf %35, %37 : vector<384x128xf32>
    %39 = vector.shape_cast %38 : vector<384x128xf32> to vector<16x24x128xf32>
    %40 = vector.extract_strided_slice %39 {offsets = [0, 1, 0], sizes = [16, 16, 128], strides = [1, 1, 1]} : vector<16x24x128xf32> to vector<16x16x128xf32>
    %41 = arith.addf %24, %40 : vector<16x16x128xf32>
    %c2 = arith.constant 2 : index
    %c0_23 = arith.constant 0 : index
    %c0_24 = arith.constant 0 : index
    %42 = vector.load %arg2[%c2, %c0_23, %c0_24] : memref<9x128x128xbf16, #tpu.memory_space<vmem>>, vector<1x128x128xbf16>
    %43 = vector.shape_cast %42 : vector<1x128x128xbf16> to vector<128x128xbf16>
    %cst_25 = arith.constant dense<0.000000e+00> : vector<384x128xf32>
    %44 = tpu.matmul %4, %43, %cst_25 {dimension_numbers = #tpu.dot_dimension_numbers<[1], [0], [0], [1], [0, 0, 1, 1], [], []>} : vector<384x128xbf16>, vector<128x128xbf16>, vector<384x128xf32> -> vector<384x128xf32>
    %c5 = arith.constant 5 : index
    %c0_26 = arith.constant 0 : index
    %c0_27 = arith.constant 0 : index
    %45 = vector.load %arg2[%c5, %c0_26, %c0_27] : memref<9x128x128xbf16, #tpu.memory_space<vmem>>, vector<1x128x128xbf16>
    %46 = vector.shape_cast %45 : vector<1x128x128xbf16> to vector<128x128xbf16>
    %cst_28 = arith.constant dense<0.000000e+00> : vector<384x128xf32>
    %47 = tpu.matmul %6, %46, %cst_28 {dimension_numbers = #tpu.dot_dimension_numbers<[1], [0], [0], [1], [0, 0, 1, 1], [], []>} : vector<384x128xbf16>, vector<128x128xbf16>, vector<384x128xf32> -> vector<384x128xf32>
    %48 = arith.addf %44, %47 : vector<384x128xf32>
    %c8 = arith.constant 8 : index
    %c0_29 = arith.constant 0 : index
    %c0_30 = arith.constant 0 : index
    %49 = vector.load %arg2[%c8, %c0_29, %c0_30] : memref<9x128x128xbf16, #tpu.memory_space<vmem>>, vector<1x128x128xbf16>
    %50 = vector.shape_cast %49 : vector<1x128x128xbf16> to vector<128x128xbf16>
    %cst_31 = arith.constant dense<0.000000e+00> : vector<384x128xf32>
    %51 = tpu.matmul %8, %50, %cst_31 {dimension_numbers = #tpu.dot_dimension_numbers<[1], [0], [0], [1], [0, 0, 1, 1], [], []>} : vector<384x128xbf16>, vector<128x128xbf16>, vector<384x128xf32> -> vector<384x128xf32>
    %52 = arith.addf %48, %51 : vector<384x128xf32>
    %53 = vector.shape_cast %52 : vector<384x128xf32> to vector<16x24x128xf32>
    %54 = vector.extract_strided_slice %53 {offsets = [0, 2, 0], sizes = [16, 16, 128], strides = [1, 1, 1]} : vector<16x24x128xf32> to vector<16x16x128xf32>
    %55 = arith.addf %41, %54 : vector<16x16x128xf32>
    %56 = vector.shape_cast %55 : vector<16x16x128xf32> to vector<1x16x16x128xf32>
    %c0_32 = arith.constant 0 : index
    %c0_33 = arith.constant 0 : index
    %c0_34 = arith.constant 0 : index
    %c0_35 = arith.constant 0 : index
    %57 = vector.load %arg4[%c0_32, %c0_33, %c0_34, %c0_35] : memref<1x16x16x128xf32, #tpu.memory_space<vmem>>, vector<1x16x16x128xf32>
    tpu.vector_store %arg4[%c0_32, %c0_33, %c0_34, %c0_35], %56 {strides = array<i32>} : memref<1x16x16x128xf32, #tpu.memory_space<vmem>>, vector<1x16x16x128xf32>,
    return
  }
  func.func @transform_0(%arg0: i32) -> (i32, i32, i32, i32) {
    %c0_i32 = arith.constant 0 : i32
    %c0_i32_0 = arith.constant 0 : i32
    %c0_i32_1 = arith.constant 0 : i32
    %c0_i32_2 = arith.constant 0 : i32
    return %arg0, %c0_i32, %c0_i32_0, %c0_i32_1 : i32, i32, i32, i32
  }
  func.func @transform_1(%arg0: i32) -> (i32, i32, i32) {
    %c0_i32 = arith.constant 0 : i32
    %c0_i32_0 = arith.constant 0 : i32
    %c0_i32_1 = arith.constant 0 : i32
    %c0_i32_2 = arith.constant 0 : i32
    return %c0_i32, %c0_i32_0, %c0_i32_1 : i32, i32, i32
  }
  func.func @transform_2(%arg0: i32) -> (i32, i32) {
    %c0_i32 = arith.constant 0 : i32
    %c0_i32_0 = arith.constant 0 : i32
    %c0_i32_1 = arith.constant 0 : i32
    return %c0_i32, %c0_i32_0 : i32, i32
  }
  func.func @transform_3(%arg0: i32) -> (i32, i32, i32, i32) {
    %c0_i32 = arith.constant 0 : i32
    %c0_i32_0 = arith.constant 0 : i32
    %c0_i32_1 = arith.constant 0 : i32
    %c0_i32_2 = arith.constant 0 : i32
    return %arg0, %c0_i32, %c0_i32_0, %c0_i32_1 : i32, i32, i32, i32
  }
}

</mosaic_0001>

<llo_original>
// kernel: tpu_custom_call.1
$region0: #{tpu_custom_call.1}
  #allocation0 [shape = 'u32[]', space=smem, size = 0x4, offset = 0x4, fixed_abs, tag = 'smem constant byte address 0x4 - core index']
  #allocation1 [shape = 'u32[144,128]{1,0:T(1,128)}', space=vmem, size = 0x12000, scoped, tag = 'internal scratch']
  %s0 = inlined_call_operand.hbm [shape: f32[2,18,24,128], index: 0, kind: input, shape index: {}]
  %s1 = inlined_call_operand.hbm [shape: bf16[9,128,128], index: 1, kind: input, shape index: {}]
  %s2 = inlined_call_operand.vmem [shape: f32[1,128], index: 2, kind: input, shape index: {}]
  %s3 = inlined_call_operand.hbm [shape: f32[2,16,16,128], index: 3, kind: output, shape index: {}]
  %s4 = sld [smem:[#allocation0]]
  $region53: #{tpu_custom_call.1} parent=0
    _
  %s6 = ssub.s32 1, %s4
  %s7 = scalar_select 0, %s6, %s4
  $region1: #{tpu_custom_call.1} parent=0
    #allocation2 [shape = 'u8[442368]{0}', space=vmem, size = 0x6c000, scoped, tag = 'input window, operand 0']
    #allocation3 [shape = 's32[2]{0}', space=sflag, size = 0x8, scoped, tag = 'scoped memory for tpu_custom_call.1']
    #allocation4 [shape = 's32[2]{0}', space=sflag, size = 0x8, scoped, tag = 'scoped memory for tpu_custom_call.1']
    #allocation5 [shape = 'u8[294912]{0}', space=vmem, size = 0x48000, scoped, tag = 'input window, operand 1, single buffered']
    #allocation6 [shape = 's32[1]{0}', space=sflag, size = 0x4, scoped, tag = 'scoped memory for tpu_custom_call.1']
    #allocation7 [shape = 'u8[262144]{0}', space=vmem, size = 0x40000, scoped, tag = 'output window, operand 0']
    %8 = vsyncpa [#allocation3], 0
    %s9 = scalar_lea.sflag [#allocation3], 1
    %10 = vsyncpa %s9, 0
    %11 = vsyncpa [#allocation6], 0
    %12 = vsyncpa [#allocation4], 0
    %s13 = scalar_lea.sflag [#allocation4], 1
    %14 = vsyncpa %s13, 0
    loop: start=0, step=1, limit=4
    $region2: #{tpu_custom_call.1} parent=1 // loop_pre_header
      _
    $region3: #{tpu_custom_call.1} parent=1 // loop_header
      %s16 = sphi 0, %s20
      %p17 = scmp.ge.s32.totalorder %s16, 4
      %s26 = sphi 0, %s28
      %s29 = sphi 0, %s26
      %s30 = sphi 0, %s29
      %s46 = sphi 0, %s30
      %s50 = sphi 0, %s50
      %s52 = sphi 0, %s50
      %s53 = sphi 0, %s52
      %s67 = sphi 0, %s53
      %s71 = sphi 0, %s71
      %s73 = sphi 0, %s71
      %s74 = sphi 0, %s73
      %s88 = sphi 0, %s74
      %s94 = sphi 0, %s96
      %s97 = sphi 0, %s94
      %s98 = sphi 0, %s97
      %s114 = sphi 0, %s98
    $region4: #{tpu_custom_call.1} parent=1 // loop_header_branch
      %19 = sbr.rel (%p17) target = $region8
    $region5: #{tpu_custom_call.1} parent=1 // loop_body
      %s21 = ssub.s32 %s16, 1
      %s22 = ssub.s32 %s16, 2
      %s23 = sadd.s32 %s16, 1
      %s24 = ssub.s32 %s16, %s23
      %p25 = scmp.eq.s32.totalorder %s24, 0
      %s27 = sadd.s32 %s26, 1
      %s28 = scalar_select %p25, %s26, %s27
      %p31 = pneg %p25
      %p32 = scmp.eq.s32.totalorder %s16, 1
      %p33 = por %p31, %p32
      %p34 = scmp.ne.s32.totalorder %s26, %s29
      %p35 = scmp.eq.s32.totalorder %s16, 0
      %p36 = por %p34, %p35
      %p37 = scmp.ne.s32.totalorder %s26, %s29
      %p38 = scmp.eq.s32.totalorder %s21, 1
      %p39 = por %p37, %p38
      %p40 = scmp.ne.s32.totalorder %s29, %s30
      %p41 = scmp.eq.s32.totalorder %s21, 0
      %p42 = por %p40, %p41
      %p43 = scmp.ne.s32.totalorder %s29, %s30
      %p44 = scmp.eq.s32.totalorder %s22, 1
      %p45 = por %p43, %p44
      %p47 = scmp.ne.s32.totalorder %s30, %s46
      %p48 = scmp.eq.s32.totalorder %s22, 0
      %p49 = por %p47, %p48
      %s51 = sadd.s32 %s50, 1
      %p54 = scmp.eq.s32.totalorder %s16, 1
      %p55 = scmp.ne.s32.totalorder %s50, %s52
      %p56 = scmp.eq.s32.totalorder %s16, 0
      %p57 = por %p55, %p56
      %p58 = scmp.ne.s32.totalorder %s50, %s52
      %p59 = scmp.eq.s32.totalorder %s21, 1
      %p60 = por %p58, %p59
      %p61 = scmp.ne.s32.totalorder %s52, %s53
      %p62 = scmp.eq.s32.totalorder %s21, 0
      %p63 = por %p61, %p62
      %p64 = scmp.ne.s32.totalorder %s52, %s53
      %p65 = scmp.eq.s32.totalorder %s22, 1
      %p66 = por %p64, %p65
      %p68 = scmp.ne.s32.totalorder %s53, %s67
      %p69 = scmp.eq.s32.totalorder %s22, 0
      %p70 = por %p68, %p69
      %s72 = sadd.s32 %s71, 1
      %p75 = scmp.eq.s32.totalorder %s16, 1
      %p76 = scmp.ne.s32.totalorder %s71, %s73
      %p77 = scmp.eq.s32.totalorder %s16, 0
      %p78 = por %p76, %p77
      %p79 = scmp.ne.s32.totalorder %s71, %s73
      %p80 = scmp.eq.s32.totalorder %s21, 1
      %p81 = por %p79, %p80
      %p82 = scmp.ne.s32.totalorder %s73, %s74
      %p83 = scmp.eq.s32.totalorder %s21, 0
      %p84 = por %p82, %p83
      %p85 = scmp.ne.s32.totalorder %s73, %s74
      %p86 = scmp.eq.s32.totalorder %s22, 1
      %p87 = por %p85, %p86
      %p89 = scmp.ne.s32.totalorder %s74, %s88
      %p90 = scmp.eq.s32.totalorder %s22, 0
      %p91 = por %p89, %p90
      %s92 = ssub.s32 %s16, %s23
      %p93 = scmp.eq.s32.totalorder %s92, 0
      %s95 = sadd.s32 %s94, 1
      %s96 = scalar_select %p93, %s94, %s95
      %p99 = pneg %p93
      %p100 = scmp.eq.s32.totalorder %s16, 1
      %p101 = por %p99, %p100
      %p102 = scmp.ne.s32.totalorder %s94, %s97
      %p103 = scmp.eq.s32.totalorder %s16, 0
      %p104 = por %p102, %p103
      %p105 = scmp.ne.s32.totalorder %s94, %s97
      %p106 = scmp.eq.s32.totalorder %s21, 1
      %p107 = por %p105, %p106
      %p108 = scmp.ne.s32.totalorder %s97, %s98
      %p109 = scmp.eq.s32.totalorder %s21, 0
      %p110 = por %p108, %p109
      %p111 = scmp.ne.s32.totalorder %s97, %s98
      %p112 = scmp.eq.s32.totalorder %s22, 1
      %p113 = por %p111, %p112
      %p115 = scmp.ne.s32.totalorder %s98, %s114
      %p116 = scmp.eq.s32.totalorder %s22, 0
      %p117 = por %p115, %p116
      %p118 = scmp.le.s32.totalorder 1, %s16
      %p119 = scmp.lt.s32.totalorder %s16, 3
      %p120 = pnand %p118, %p119
      %p121 = pneg %p120
      // Predicated region
      $region9: #{tpu_custom_call.1} parent=5 // pred_check
        _
      $region10: #{tpu_custom_call.1} parent=5 // pred_check_branch
        %123 = sbr.rel (%p120) target = $region12
      $region11: #{tpu_custom_call.1} parent=5 // pred_region
        %s124 = ssub.s32 %s16, 1
        // Predicated region
        $region13: #{tpu_custom_call.1} parent=11 // pred_check
          %p125 = pneg %p63
        $region14: #{tpu_custom_call.1} parent=11 // pred_check_branch
          %127 = sbr.rel (%p125) target = $region16
        $region15: #{tpu_custom_call.1} parent=11 // pred_region
          %s129 = ssub.s32 9216, 9216
          %130 = vsyncadd [#allocation6], %s129
          %s131 = sshll.u32 [#allocation5], 4
          %s132 = int_to_ptr.vmem [resolvable:$true] %s131
          %137 = dma.hbm_to_vmem [thread:$0]  %s1, 9216, %s132, [#allocation6], 64, 64, 4
        $region16: #{tpu_custom_call.1} parent=11 // pred_fallthru
          _
        // Predicated region
        $region17: #{tpu_custom_call.1} parent=11 // pred_check
          %p138 = pneg %p84
        $region18: #{tpu_custom_call.1} parent=11 // pred_check_branch
          %140 = sbr.rel (%p138) target = $region20
        $region19: #{tpu_custom_call.1} parent=11 // pred_region
          _
        $region20: #{tpu_custom_call.1} parent=11 // pred_fallthru
          _
      $region12: #{tpu_custom_call.1} parent=5 // pred_fallthru
        _
      %p141 = scmp.lt.s32.totalorder %s16, 2
      // Predicated region
      $region21: #{tpu_custom_call.1} parent=5 // pred_check
        %p142 = pneg %p141
      $region22: #{tpu_custom_call.1} parent=5 // pred_check_branch
        %144 = sbr.rel (%p142) target = $region24
      $region23: #{tpu_custom_call.1} parent=5 // pred_region
        // Predicated region
        $region25: #{tpu_custom_call.1} parent=23 // pred_check
          %p145 = pneg %p36
        $region26: #{tpu_custom_call.1} parent=23 // pred_check_branch
          %147 = sbr.rel (%p145) target = $region28
        $region27: #{tpu_custom_call.1} parent=23 // pred_region
          %s148 = sand.u32 %s26, 1
          %s149 = scalar_lea.sflag [#allocation3], %s148
          %s150 = sand.u32 %s26, 1
          %s151 = smul.addr %s150, 432
          %s152 = scalar_lea.vmem [#allocation2], %s151
          %s154 = ssub.s32 6912, 6912
          %155 = vsyncadd %s149, %s154
          %s156 = smul.addr %s16, 54
          %s157 = smul.addr %s156, 128
          %s158 = scalar_lea.hbm %s0, %s157
          %s159 = sshll.u32 %s152, 4
          %s160 = int_to_ptr.vmem [resolvable:$true] %s159
          %165 = dma.hbm_to_vmem [thread:$0]  %s158, 6912, %s160, %s149, 128, 128, 8
        $region28: #{tpu_custom_call.1} parent=23 // pred_fallthru
          _
      $region24: #{tpu_custom_call.1} parent=5 // pred_fallthru
        _
      %p166 = scmp.le.s32.totalorder 1, %s16
      %p167 = scmp.lt.s32.totalorder %s16, 3
      %p168 = pnand %p166, %p167
      %p169 = pneg %p168
      // Predicated region
      $region29: #{tpu_custom_call.1} parent=5 // pred_check
        _
      $region30: #{tpu_custom_call.1} parent=5 // pred_check_branch
        %171 = sbr.rel (%p168) target = $region32
      $region31: #{tpu_custom_call.1} parent=5 // pred_region
        %s172 = ssub.s32 %s16, 1
        %s173 = sand.u32 %s29, 1
        %s174 = scalar_lea.sflag [#allocation3], %s173
        %s175 = sand.u32 %s29, 1
        %s176 = smul.addr %s175, 432
        %s177 = scalar_lea.vmem [#allocation2], %s176
        // Predicated region
        $region33: #{tpu_custom_call.1} parent=31 // pred_check
          %p178 = pneg %p42
        $region34: #{tpu_custom_call.1} parent=31 // pred_check_branch
          %180 = sbr.rel (%p178) target = $region36
        $region35: #{tpu_custom_call.1} parent=31 // pred_region
          %181 = dma.done %s174, 6912
        $region36: #{tpu_custom_call.1} parent=31 // pred_fallthru
          _
        // Predicated region
        $region37: #{tpu_custom_call.1} parent=31 // pred_check
          %p182 = pneg %p63
        $region38: #{tpu_custom_call.1} parent=31 // pred_check_branch
          %184 = sbr.rel (%p182) target = $region40
        $region39: #{tpu_custom_call.1} parent=31 // pred_region
          %185 = dma.done [#allocation6], 9216
        $region40: #{tpu_custom_call.1} parent=31 // pred_fallthru
          _
        %s186 = sand.u32 %s29, 1
        %s187 = scalar_lea.sflag [#allocation3], %s186
        %s188 = sand.u32 %s29, 1
        %s189 = smul.addr %s188, 432
        %s190 = scalar_lea.vmem [#allocation2], %s189
        %p191 = pneg %p42
        %p192 = pneg %p39
        %p193 = pneg %p63
        %p194 = pneg %p60
        %p195 = pneg %p84
        %p196 = pneg %p81
        %p197 = pneg %p110
        %p198 = pneg %p107
        %s199 = sand.u32 %s97, 1
        %s200 = scalar_lea.sflag [#allocation4], %s199
        %s201 = sand.u32 %s97, 1
        %s202 = smul.addr %s201, 256
        %s203 = scalar_lea.vmem [#allocation7], %s202
        %v205 = vld [vmem:[%s177] sm:$0xff]
        %v206 = vld [vmem:[%s177 + $0x8] sm:$0xff]
        %v207 = vld [vmem:[%s177 + $0x10] sm:$0xff]
        %v208 = vld [vmem:[%s177 + $0x18] sm:$0xff]
        %v209 = vld [vmem:[%s177 + $0x20] sm:$0xff]
        %v210 = vld [vmem:[%s177 + $0x28] sm:$0xff]
        %v211 = vld [vmem:[%s177 + $0x30] sm:$0xff]
        %v212 = vld [vmem:[%s177 + $0x38] sm:$0xff]
        %v213 = vld [vmem:[%s177 + $0x40] sm:$0xff]
        %v214 = vld [vmem:[%s177 + $0x48] sm:$0xff]
        %v215 = vld [vmem:[%s177 + $0x50] sm:$0xff]
        %v216 = vld [vmem:[%s177 + $0x58] sm:$0xff]
        %v217 = vld [vmem:[%s177 + $0x60] sm:$0xff]
        %v218 = vld [vmem:[%s177 + $0x68] sm:$0xff]
        %v219 = vld [vmem:[%s177 + $0x70] sm:$0xff]
        %v220 = vld [vmem:[%s177 + $0x78] sm:$0xff]
        %v221 = vld [vmem:[%s177 + $0x80] sm:$0xff]
        %v222 = vld [vmem:[%s177 + $0x88] sm:$0xff]
        %v223 = vld [vmem:[%s177 + $0x90] sm:$0xff]
        %v224 = vld [vmem:[%s177 + $0x98] sm:$0xff]
        %v225 = vld [vmem:[%s177 + $0xa0] sm:$0xff]
        %v226 = vld [vmem:[%s177 + $0xa8] sm:$0xff]
        %v227 = vld [vmem:[%s177 + $0xb0] sm:$0xff]
        %v228 = vld [vmem:[%s177 + $0xb8] sm:$0xff]
        %v229 = vld [vmem:[%s177 + $0xc0] sm:$0xff]
        %v230 = vld [vmem:[%s177 + $0xc8] sm:$0xff]
        %v231 = vld [vmem:[%s177 + $0xd0] sm:$0xff]
        %v232 = vld [vmem:[%s177 + $0xd8] sm:$0xff]
        %v233 = vld [vmem:[%s177 + $0xe0] sm:$0xff]
        %v234 = vld [vmem:[%s177 + $0xe8] sm:$0xff]
        %v235 = vld [vmem:[%s177 + $0xf0] sm:$0xff]
        %v236 = vld [vmem:[%s177 + $0xf8] sm:$0xff]
        %v237 = vld [vmem:[%s177 + $0x100] sm:$0xff]
        %v238 = vld [vmem:[%s177 + $0x108] sm:$0xff]
        %v239 = vld [vmem:[%s177 + $0x110] sm:$0xff]
        %v240 = vld [vmem:[%s177 + $0x118] sm:$0xff]
        %v241 = vld [vmem:[%s177 + $0x120] sm:$0xff]
        %v242 = vld [vmem:[%s177 + $0x128] sm:$0xff]
        %v243 = vld [vmem:[%s177 + $0x130] sm:$0xff]
        %v244 = vld [vmem:[%s177 + $0x138] sm:$0xff]
        %v245 = vld [vmem:[%s177 + $0x140] sm:$0xff]
        %v246 = vld [vmem:[%s177 + $0x148] sm:$0xff]
        %v247 = vld [vmem:[%s177 + $0x150] sm:$0xff]
        %v248 = vld [vmem:[%s177 + $0x158] sm:$0xff]
        %v249 = vld [vmem:[%s177 + $0x160] sm:$0xff]
        %v250 = vld [vmem:[%s177 + $0x168] sm:$0xff]
        %v251 = vld [vmem:[%s177 + $0x170] sm:$0xff]
        %v252 = vld [vmem:[%s177 + $0x178] sm:$0xff]
        %v253 = vld [vmem:[%s177 + $0x180] sm:$0xff]
        %v254 = vld [vmem:[%s177 + $0x188] sm:$0xff]
        %v255 = vld [vmem:[%s177 + $0x190] sm:$0xff]
        %v256 = vld [vmem:[%s177 + $0x198] sm:$0xff]
        %v257 = vld [vmem:[%s177 + $0x1a0] sm:$0xff]
        %v258 = vld [vmem:[%s177 + $0x1a8] sm:$0xff]
        %v259 = vpack.c.bf16 %v206, %v205
        %v260 = vpack.c.bf16 %v207, %v207
        %v261 = vpack.c.bf16 %v209, %v208
        %v262 = vpack.c.bf16 %v210, %v210
        %v263 = vpack.c.bf16 %v212, %v211
        %v264 = vpack.c.bf16 %v213, %v213
        %v265 = vpack.c.bf16 %v215, %v214
        %v266 = vpack.c.bf16 %v216, %v216
        %v267 = vpack.c.bf16 %v218, %v217
        %v268 = vpack.c.bf16 %v219, %v219
        %v269 = vpack.c.bf16 %v221, %v220
        %v270 = vpack.c.bf16 %v222, %v222
        %v271 = vpack.c.bf16 %v224, %v223
        %v272 = vpack.c.bf16 %v225, %v225
        %v273 = vpack.c.bf16 %v227, %v226
        %v274 = vpack.c.bf16 %v228, %v228
        %v275 = vpack.c.bf16 %v230, %v229
        %v276 = vpack.c.bf16 %v231, %v231
        %v277 = vpack.c.bf16 %v233, %v232
        %v278 = vpack.c.bf16 %v234, %v234
        %v279 = vpack.c.bf16 %v236, %v235
        %v280 = vpack.c.bf16 %v237, %v237
        %v281 = vpack.c.bf16 %v239, %v238
        %v282 = vpack.c.bf16 %v240, %v240
        %v283 = vpack.c.bf16 %v242, %v241
        %v284 = vpack.c.bf16 %v243, %v243
        %v285 = vpack.c.bf16 %v245, %v244
        %v286 = vpack.c.bf16 %v246, %v246
        %v287 = vpack.c.bf16 %v248, %v247
        %v288 = vpack.c.bf16 %v249, %v249
        %v289 = vpack.c.bf16 %v251, %v250
        %v290 = vpack.c.bf16 %v252, %v252
        %v291 = vpack.c.bf16 %v254, %v253
        %v292 = vpack.c.bf16 %v255, %v255
        %v293 = vpack.c.bf16 %v257, %v256
        %v294 = vpack.c.bf16 %v258, %v258
        %v327 = vunpack.c.l.b16 %v259
        %v328 = vunpack.c.h.b16 %v259
        %v329 = vunpack.c.l.b16 %v260
        %v330 = vunpack.c.l.b16 %v261
        %v331 = vunpack.c.h.b16 %v261
        %v332 = vunpack.c.l.b16 %v262
        %v333 = vunpack.c.l.b16 %v263
        %v334 = vunpack.c.h.b16 %v263
        %v335 = vunpack.c.l.b16 %v264
        %v336 = vunpack.c.l.b16 %v265
        %v337 = vunpack.c.h.b16 %v265
        %v338 = vunpack.c.l.b16 %v266
        %v339 = vunpack.c.l.b16 %v267
        %v340 = vunpack.c.h.b16 %v267
        %v341 = vunpack.c.l.b16 %v268
        %v342 = vunpack.c.l.b16 %v269
        %v343 = vunpack.c.h.b16 %v269
        %v344 = vunpack.c.l.b16 %v270
        %v345 = vunpack.c.l.b16 %v271
        %v346 = vunpack.c.h.b16 %v271
        %v347 = vunpack.c.l.b16 %v272
        %v348 = vunpack.c.l.b16 %v273
        %v349 = vunpack.c.h.b16 %v273
        %v350 = vunpack.c.l.b16 %v274
        %v351 = vunpack.c.l.b16 %v275
        %v352 = vunpack.c.h.b16 %v275
        %v353 = vunpack.c.l.b16 %v276
        %v354 = vunpack.c.l.b16 %v277
        %v355 = vunpack.c.h.b16 %v277
        %v356 = vunpack.c.l.b16 %v278
        %v357 = vunpack.c.l.b16 %v279
        %v358 = vunpack.c.h.b16 %v279
        %v359 = vunpack.c.l.b16 %v280
        %v360 = vunpack.c.l.b16 %v281
        %v361 = vunpack.c.h.b16 %v281
        %v362 = vunpack.c.l.b16 %v282
        %v363 = vunpack.c.l.b16 %v283
        %v364 = vunpack.c.h.b16 %v283
        %v365 = vunpack.c.l.b16 %v284
        %v366 = vunpack.c.l.b16 %v285
        %v367 = vunpack.c.h.b16 %v285
        %v368 = vunpack.c.l.b16 %v286
        %v369 = vunpack.c.l.b16 %v287
        %v370 = vunpack.c.h.b16 %v287
        %v371 = vunpack.c.l.b16 %v288
        %v372 = vunpack.c.l.b16 %v289
        %v373 = vunpack.c.h.b16 %v289
        %v374 = vunpack.c.l.b16 %v290
        %v377 = vunpack.c.l.b16 %v291
        %v378 = vunpack.c.h.b16 %v291
        %v379 = vunpack.c.l.b16 %v292
        %v382 = vunpack.c.l.b16 %v293
        %v383 = vunpack.c.h.b16 %v293
        %v384 = vunpack.c.l.b16 %v294
        %v385 = vld [vmem:[#allocation5] sm:$0xf]
        %v386 = vld [vmem:[#allocation5 + $0x4] sm:$0xf]
        %v387 = vld [vmem:[#allocation5 + $0x8] sm:$0xf]
        %v388 = vld [vmem:[#allocation5 + $0xc] sm:$0xf]
        %v389 = vld [vmem:[#allocation5 + $0x10] sm:$0xf]
        %v390 = vld [vmem:[#allocation5 + $0x14] sm:$0xf]
        %v391 = vld [vmem:[#allocation5 + $0x18] sm:$0xf]
        %v392 = vld [vmem:[#allocation5 + $0x1c] sm:$0xf]
        %v393 = vld [vmem:[#allocation5 + $0x20] sm:$0xf]
        %v394 = vld [vmem:[#allocation5 + $0x24] sm:$0xf]
        %v395 = vld [vmem:[#allocation5 + $0x28] sm:$0xf]
        %v396 = vld [vmem:[#allocation5 + $0x2c] sm:$0xf]
        %v397 = vld [vmem:[#allocation5 + $0x30] sm:$0xf]
        %v398 = vld [vmem:[#allocation5 + $0x34] sm:$0xf]
        %v399 = vld [vmem:[#allocation5 + $0x38] sm:$0xf]
        %v400 = vld [vmem:[#allocation5 + $0x3c] sm:$0xf]
        %s401 = scalar_lea.vmem [#allocation5], 192
        %v402 = vld [vmem:[%s401] sm:$0xf]
        %v403 = vld [vmem:[%s401 + $0x4] sm:$0xf]
        %v404 = vld [vmem:[%s401 + $0x8] sm:$0xf]
        %v405 = vld [vmem:[%s401 + $0xc] sm:$0xf]
        %v406 = vld [vmem:[%s401 + $0x10] sm:$0xf]
        %v407 = vld [vmem:[%s401 + $0x14] sm:$0xf]
        %v408 = vld [vmem:[%s401 + $0x18] sm:$0xf]
        %v409 = vld [vmem:[%s401 + $0x1c] sm:$0xf]
        %v410 = vld [vmem:[%s401 + $0x20] sm:$0xf]
        %v411 = vld [vmem:[%s401 + $0x24] sm:$0xf]
        %v412 = vld [vmem:[%s401 + $0x28] sm:$0xf]
        %v413 = vld [vmem:[%s401 + $0x2c] sm:$0xf]
        %v414 = vld [vmem:[%s401 + $0x30] sm:$0xf]
        %v415 = vld [vmem:[%s401 + $0x34] sm:$0xf]
        %v416 = vld [vmem:[%s401 + $0x38] sm:$0xf]
        %v417 = vld [vmem:[%s401 + $0x3c] sm:$0xf]
        %v418 = vpack.c.b16 %v331, %v330
        %v419 = vpack.c.b16 %v333, %v332
        %v420 = vpack.c.b16 %v335, %v334
        %v421 = vpack.c.b16 %v337, %v336
        %v422 = vpack.c.b16 %v339, %v338
        %v423 = vpack.c.b16 %v341, %v340
        %v424 = vpack.c.b16 %v343, %v342
        %v425 = vpack.c.b16 %v345, %v344
        %v426 = vpack.c.b16 %v347, %v346
        %v427 = vpack.c.b16 %v349, %v348
        %v428 = vpack.c.b16 %v351, %v350
        %v429 = vpack.c.b16 %v353, %v352
        %v430 = vpack.c.b16 %v355, %v354
        %v431 = vpack.c.b16 %v357, %v356
        %v432 = vpack.c.b16 %v359, %v358
        %v433 = vpack.c.b16 %v361, %v360
        %v434 = vpack.c.b16 %v363, %v362
        %v435 = vpack.c.b16 %v365, %v364
        %v436 = vpack.c.b16 %v367, %v366
        %v437 = vpack.c.b16 %v369, %v368
        %v438 = vpack.c.b16 %v371, %v370
        %v439 = vpack.c.b16 %v373, %v372
        %v440 = vpack.c.b16 %v377, %v374
        %v441 = vpack.c.b16 %v379, %v378
        %v482 = vunpack.c.l.b16 %v402
        %v483 = vunpack.c.l.b16 %v403
        %v484 = vunpack.c.l.b16 %v404
        %v485 = vunpack.c.l.b16 %v405
        %v486 = vunpack.c.l.b16 %v406
        %v487 = vunpack.c.l.b16 %v407
        %v488 = vunpack.c.l.b16 %v408
        %v489 = vunpack.c.l.b16 %v409
        %v490 = vunpack.c.l.b16 %v410
        %v491 = vunpack.c.l.b16 %v411
        %v492 = vunpack.c.l.b16 %v412
        %v493 = vunpack.c.l.b16 %v413
        %v494 = vunpack.c.l.b16 %v414
        %v495 = vunpack.c.l.b16 %v415
        %v496 = vunpack.c.l.b16 %v416
        %v497 = vunpack.c.l.b16 %v417
        %v498 = vpack.c.b16 %v483, %v482
        %v499 = vpack.c.b16 %v485, %v484
        %v500 = vpack.c.b16 %v487, %v486
        %v501 = vpack.c.b16 %v489, %v488
        %v502 = vpack.c.b16 %v491, %v490
        %v503 = vpack.c.b16 %v493, %v492
        %v504 = vpack.c.b16 %v495, %v494
        %v505 = vpack.c.b16 %v497, %v496
        %514 = vmatprep.subr.bf16.mxu0 0
        %515 = vmatpush1.bf16.msra.mxu0 %v498
        %516 = vmatprep.subr.bf16.mxu0 0
        %517 = vmatpush1.bf16.msra.mxu0 %v499
        %518 = vmatprep.subr.bf16.mxu0 0
        %519 = vmatpush1.bf16.msra.mxu0 %v500
        %520 = vmatprep.subr.bf16.mxu0 0
        %521 = vmatpush1.bf16.msra.mxu0 %v501
        %522 = vmatprep.subr.bf16.mxu0 0
        %523 = vmatpush1.bf16.msra.mxu0 %v502
        %524 = vmatprep.subr.bf16.mxu0 0
        %525 = vmatpush1.bf16.msra.mxu0 %v503
        %526 = vmatprep.subr.bf16.mxu0 0
        %527 = vmatpush1.bf16.msra.mxu0 %v504
        %528 = vmatprep.subr.bf16.mxu0 0
        %529 = vmatpush1.bf16.msra.mxu0 %v505
        %530 = vmatprep.subr.bf16.mxu0 0
        %531 = vmatpush1.bf16.msra.mxu0 0
        %532 = vmatprep.subr.bf16.mxu0 0
        %533 = vmatpush1.bf16.msra.mxu0 0
        %534 = vmatprep.subr.bf16.mxu0 0
        %535 = vmatpush1.bf16.msra.mxu0 0
        %536 = vmatprep.subr.bf16.mxu0 0
        %537 = vmatpush1.bf16.msra.mxu0 0
        %538 = vmatprep.subr.bf16.mxu0 0
        %539 = vmatpush1.bf16.msra.mxu0 0
        %540 = vmatprep.subr.bf16.mxu0 0
        %541 = vmatpush1.bf16.msra.mxu0 0
        %542 = vmatprep.subr.bf16.mxu0 0
        %543 = vmatpush1.bf16.msra.mxu0 0
        %544 = vmatprep.subr.bf16.mxu0 0
        %545 = vmatpush1.bf16.msra.mxu0 0
        %546 = vmatprep.mubr.bf16.mxu0 0
        %547 = vmatmul.mubr.bf16.gmra.mrb[0].mxu0 %v418
        %v548 = vpop.f32.mrb[0].mxu0
        %v549 = vadd.f32 0.0, %v548
        %v550 = vpop.f32.mrb[0].mxu0
        %v551 = vpop.f32.mrb[0].mxu0
        %v552 = vadd.f32 0.0, %v551
        %v553 = vpop.f32.mrb[0].mxu0
        %554 = vmatprep.mubr.bf16.mxu0 0
        %555 = vmatmul.mubr.bf16.gmra.mrb[0].mxu0 %v419
        %v556 = vpop.f32.mrb[0].mxu0
        %v557 = vpop.f32.mrb[0].mxu0
        %v558 = vpop.f32.mrb[0].mxu0
        %v559 = vadd.f32 0.0, %v558
        %v560 = vpop.f32.mrb[0].mxu0
        %561 = vmatprep.mubr.bf16.mxu0 0
        %562 = vmatmul.mubr.bf16.gmra.mrb[0].mxu0 %v420
        %v563 = vpop.f32.mrb[0].mxu0
        %v564 = vadd.f32 0.0, %v563
        %v565 = vpop.f32.mrb[0].mxu0
        %v566 = vpop.f32.mrb[0].mxu0
        %v567 = vpop.f32.mrb[0].mxu0
        %568 = vmatprep.mubr.bf16.mxu0 0
        %569 = vmatmul.mubr.bf16.gmra.mrb[0].mxu0 %v421
        %v570 = vpop.f32.mrb[0].mxu0
        %v571 = vadd.f32 0.0, %v570
        %v572 = vpop.f32.mrb[0].mxu0
        %v573 = vpop.f32.mrb[0].mxu0
        %v574 = vadd.f32 0.0, %v573
        %v575 = vpop.f32.mrb[0].mxu0
        %576 = vmatprep.mubr.bf16.mxu0 0
        %577 = vmatmul.mubr.bf16.gmra.mrb[0].mxu0 %v422
        %v578 = vpop.f32.mrb[0].mxu0
        %v579 = vpop.f32.mrb[0].mxu0
        %v580 = vpop.f32.mrb[0].mxu0
        %v581 = vadd.f32 0.0, %v580
        %v582 = vpop.f32.mrb[0].mxu0
        %583 = vmatprep.mubr.bf16.mxu0 0
        %584 = vmatmul.mubr.bf16.gmra.mrb[0].mxu0 %v423
        %v585 = vpop.f32.mrb[0].mxu0
        %v586 = vadd.f32 0.0, %v585
        %v587 = vpop.f32.mrb[0].mxu0
        %v588 = vpop.f32.mrb[0].mxu0
        %v589 = vpop.f32.mrb[0].mxu0
        %590 = vmatprep.mubr.bf16.mxu0 0
        %591 = vmatmul.mubr.bf16.gmra.mrb[0].mxu0 %v424
        %v592 = vpop.f32.mrb[0].mxu0
        %v593 = vadd.f32 0.0, %v592
        %v594 = vpop.f32.mrb[0].mxu0
        %v595 = vpop.f32.mrb[0].mxu0
        %v596 = vadd.f32 0.0, %v595
        %v597 = vpop.f32.mrb[0].mxu0
        %598 = vmatprep.mubr.bf16.mxu0 0
        %599 = vmatmul.mubr.bf16.gmra.mrb[0].mxu0 %v425
        %v600 = vpop.f32.mrb[0].mxu0
        %v601 = vpop.f32.mrb[0].mxu0
        %v602 = vpop.f32.mrb[0].mxu0
        %v603 = vadd.f32 0.0, %v602
        %v604 = vpop.f32.mrb[0].mxu0
        %605 = vmatprep.mubr.bf16.mxu0 0
        %606 = vmatmul.mubr.bf16.gmra.mrb[0].mxu0 %v426
        %v607 = vpop.f32.mrb[0].mxu0
        %v608 = vadd.f32 0.0, %v607
        %v609 = vpop.f32.mrb[0].mxu0
        %v610 = vpop.f32.mrb[0].mxu0
        %v611 = vpop.f32.mrb[0].mxu0
        %612 = vmatprep.mubr.bf16.mxu0 0
        %613 = vmatmul.mubr.bf16.gmra.mrb[0].mxu0 %v427
        %v614 = vpop.f32.mrb[0].mxu0
        %v615 = vadd.f32 0.0, %v614
        %v616 = vpop.f32.mrb[0].mxu0
        %v617 = vpop.f32.mrb[0].mxu0
        %v618 = vadd.f32 0.0, %v617
        %v619 = vpop.f32.mrb[0].mxu0
        %620 = vmatprep.mubr.bf16.mxu0 0
        %621 = vmatmul.mubr.bf16.gmra.mrb[0].mxu0 %v428
        %v622 = vpop.f32.mrb[0].mxu0
        %v623 = vpop.f32.mrb[0].mxu0
        %v624 = vpop.f32.mrb[0].mxu0
        %v625 = vadd.f32 0.0, %v624
        %v626 = vpop.f32.mrb[0].mxu0
        %627 = vmatprep.mubr.bf16.mxu0 0
        %628 = vmatmul.mubr.bf16.gmra.mrb[0].mxu0 %v429
        %v629 = vpop.f32.mrb[0].mxu0
        %v630 = vadd.f32 0.0, %v629
        %v631 = vpop.f32.mrb[0].mxu0
        %v632 = vpop.f32.mrb[0].mxu0
        %v633 = vpop.f32.mrb[0].mxu0
        %634 = vmatprep.mubr.bf16.mxu0 0
        %635 = vmatmul.mubr.bf16.gmra.mrb[0].mxu0 %v430
        %v636 = vpop.f32.mrb[0].mxu0
        %v637 = vadd.f32 0.0, %v636
        %v638 = vpop.f32.mrb[0].mxu0
        %v639 = vpop.f32.mrb[0].mxu0
        %v640 = vadd.f32 0.0, %v639
        %v641 = vpop.f32.mrb[0].mxu0
        %642 = vmatprep.mubr.bf16.mxu0 0
        %643 = vmatmul.mubr.bf16.gmra.mrb[0].mxu0 %v431
        %v644 = vpop.f32.mrb[0].mxu0
        %v645 = vpop.f32.mrb[0].mxu0
        %v646 = vpop.f32.mrb[0].mxu0
        %v647 = vadd.f32 0.0, %v646
        %v648 = vpop.f32.mrb[0].mxu0
        %649 = vmatprep.mubr.bf16.mxu0 0
        %650 = vmatmul.mubr.bf16.gmra.mrb[0].mxu0 %v432
        %v651 = vpop.f32.mrb[0].mxu0
        %v652 = vadd.f32 0.0, %v651
        %v653 = vpop.f32.mrb[0].mxu0
        %v654 = vpop.f32.mrb[0].mxu0
        %v655 = vpop.f32.mrb[0].mxu0
        %656 = vmatprep.mubr.bf16.mxu0 0
        %657 = vmatmul.mubr.bf16.gmra.mrb[0].mxu0 %v433
        %v658 = vpop.f32.mrb[0].mxu0
        %v659 = vadd.f32 0.0, %v658
        %v660 = vpop.f32.mrb[0].mxu0
        %v661 = vpop.f32.mrb[0].mxu0
        %v662 = vadd.f32 0.0, %v661
        %v663 = vpop.f32.mrb[0].mxu0
        %664 = vmatprep.mubr.bf16.mxu0 0
        %665 = vmatmul.mubr.bf16.gmra.mrb[0].mxu0 %v434
        %v666 = vpop.f32.mrb[0].mxu0
        %v667 = vpop.f32.mrb[0].mxu0
        %v668 = vpop.f32.mrb[0].mxu0
        %v669 = vadd.f32 0.0, %v668
        %v670 = vpop.f32.mrb[0].mxu0
        %671 = vmatprep.mubr.bf16.mxu0 0
        %672 = vmatmul.mubr.bf16.gmra.mrb[0].mxu0 %v435
        %v673 = vpop.f32.mrb[0].mxu0
        %v674 = vadd.f32 0.0, %v673
        %v675 = vpop.f32.mrb[0].mxu0
        %v676 = vpop.f32.mrb[0].mxu0
        %v677 = vpop.f32.mrb[0].mxu0
        %678 = vmatprep.mubr.bf16.mxu0 0
        %679 = vmatmul.mubr.bf16.gmra.mrb[0].mxu0 %v436
        %v680 = vpop.f32.mrb[0].mxu0
        %v681 = vadd.f32 0.0, %v680
        %v682 = vpop.f32.mrb[0].mxu0
        %v683 = vpop.f32.mrb[0].mxu0
        %v684 = vadd.f32 0.0, %v683
        %v685 = vpop.f32.mrb[0].mxu0
        %686 = vmatprep.mubr.bf16.mxu0 0
        %687 = vmatmul.mubr.bf16.gmra.mrb[0].mxu0 %v437
        %v688 = vpop.f32.mrb[0].mxu0
        %v689 = vpop.f32.mrb[0].mxu0
        %v690 = vpop.f32.mrb[0].mxu0
        %v691 = vadd.f32 0.0, %v690
        %v692 = vpop.f32.mrb[0].mxu0
        %693 = vmatprep.mubr.bf16.mxu0 0
        %694 = vmatmul.mubr.bf16.gmra.mrb[0].mxu0 %v438
        %v695 = vpop.f32.mrb[0].mxu0
        %v696 = vadd.f32 0.0, %v695
        %v697 = vpop.f32.mrb[0].mxu0
        %v698 = vpop.f32.mrb[0].mxu0
        %v699 = vpop.f32.mrb[0].mxu0
        %700 = vmatprep.mubr.bf16.mxu0 0
        %701 = vmatmul.mubr.bf16.gmra.mrb[0].mxu0 %v439
        %v702 = vpop.f32.mrb[0].mxu0
        %v703 = vadd.f32 0.0, %v702
        %v704 = vpop.f32.mrb[0].mxu0
        %v705 = vpop.f32.mrb[0].mxu0
        %v706 = vadd.f32 0.0, %v705
        %v707 = vpop.f32.mrb[0].mxu0
        %708 = vmatprep.mubr.bf16.mxu0 0
        %709 = vmatmul.mubr.bf16.gmra.mrb[0].mxu0 %v440
        %v710 = vpop.f32.mrb[0].mxu0
        %v711 = vpop.f32.mrb[0].mxu0
        %v712 = vpop.f32.mrb[0].mxu0
        %v713 = vadd.f32 0.0, %v712
        %v714 = vpop.f32.mrb[0].mxu0
        %715 = vmatprep.mubr.bf16.mxu0 0
        %716 = vmatmul.mubr.bf16.gmra.mrb[0].mxu0 %v441
        %v717 = vpop.f32.mrb[0].mxu0
        %v718 = vadd.f32 0.0, %v717
        %v719 = vpop.f32.mrb[0].mxu0
        %v720 = vpop.f32.mrb[0].mxu0
        %v721 = vpop.f32.mrb[0].mxu0
        %722 = vdwg.mxu0
        %v723 = vpack.c.b16 %v328, %v327
        %v724 = vpack.c.b16 %v330, %v329
        %v725 = vpack.c.b16 %v332, %v331
        %v726 = vpack.c.b16 %v334, %v333
        %v727 = vpack.c.b16 %v336, %v335
        %v728 = vpack.c.b16 %v338, %v337
        %v729 = vpack.c.b16 %v340, %v339
        %v730 = vpack.c.b16 %v342, %v341
        %v731 = vpack.c.b16 %v344, %v343
        %v732 = vpack.c.b16 %v346, %v345
        %v733 = vpack.c.b16 %v348, %v347
        %v734 = vpack.c.b16 %v350, %v349
        %v735 = vpack.c.b16 %v352, %v351
        %v736 = vpack.c.b16 %v354, %v353
        %v737 = vpack.c.b16 %v356, %v355
        %v738 = vpack.c.b16 %v358, %v357
        %v739 = vpack.c.b16 %v360, %v359
        %v740 = vpack.c.b16 %v362, %v361
        %v741 = vpack.c.b16 %v364, %v363
        %v742 = vpack.c.b16 %v366, %v365
        %v743 = vpack.c.b16 %v368, %v367
        %v744 = vpack.c.b16 %v370, %v369
        %v745 = vpack.c.b16 %v372, %v371
        %v746 = vpack.c.b16 %v374, %v373
        %v787 = vunpack.c.l.b16 %v385
        %v788 = vunpack.c.l.b16 %v386
        %v789 = vunpack.c.l.b16 %v387
        %v790 = vunpack.c.l.b16 %v388
        %v791 = vunpack.c.l.b16 %v389
        %v792 = vunpack.c.l.b16 %v390
        %v793 = vunpack.c.l.b16 %v391
        %v794 = vunpack.c.l.b16 %v392
        %v795 = vunpack.c.l.b16 %v393
        %v796 = vunpack.c.l.b16 %v394
        %v797 = vunpack.c.l.b16 %v395
        %v798 = vunpack.c.l.b16 %v396
        %v799 = vunpack.c.l.b16 %v397
        %v800 = vunpack.c.l.b16 %v398
        %v801 = vunpack.c.l.b16 %v399
        %v802 = vunpack.c.l.b16 %v400
        %v803 = vpack.c.b16 %v788, %v787
        %v804 = vpack.c.b16 %v790, %v789
        %v805 = vpack.c.b16 %v792, %v791
        %v806 = vpack.c.b16 %v794, %v793
        %v807 = vpack.c.b16 %v796, %v795
        %v808 = vpack.c.b16 %v798, %v797
        %v809 = vpack.c.b16 %v800, %v799
        %v810 = vpack.c.b16 %v802, %v801
        %819 = vmatprep.subr.bf16.mxu0 0
        %820 = vmatpush1.bf16.msra.mxu0 %v803
        %821 = vmatprep.subr.bf16.mxu0 0
        %822 = vmatpush1.bf16.msra.mxu0 %v804
        %823 = vmatprep.subr.bf16.mxu0 0
        %824 = vmatpush1.bf16.msra.mxu0 %v805
        %825 = vmatprep.subr.bf16.mxu0 0
        %826 = vmatpush1.bf16.msra.mxu0 %v806
        %827 = vmatprep.subr.bf16.mxu0 0
        %828 = vmatpush1.bf16.msra.mxu0 %v807
        %829 = vmatprep.subr.bf16.mxu0 0
        %830 = vmatpush1.bf16.msra.mxu0 %v808
        %831 = vmatprep.subr.bf16.mxu0 0
        %832 = vmatpush1.bf16.msra.mxu0 %v809
        %833 = vmatprep.subr.bf16.mxu0 0
        %834 = vmatpush1.bf16.msra.mxu0 %v810
        %835 = vmatprep.subr.bf16.mxu0 0
        %836 = vmatpush1.bf16.msra.mxu0 0
        %837 = vmatprep.subr.bf16.mxu0 0
        %838 = vmatpush1.bf16.msra.mxu0 0
        %839 = vmatprep.subr.bf16.mxu0 0
        %840 = vmatpush1.bf16.msra.mxu0 0
        %841 = vmatprep.subr.bf16.mxu0 0
        %842 = vmatpush1.bf16.msra.mxu0 0
        %843 = vmatprep.subr.bf16.mxu0 0
        %844 = vmatpush1.bf16.msra.mxu0 0
        %845 = vmatprep.subr.bf16.mxu0 0
        %846 = vmatpush1.bf16.msra.mxu0 0
        %847 = vmatprep.subr.bf16.mxu0 0
        %848 = vmatpush1.bf16.msra.mxu0 0
        %849 = vmatprep.subr.bf16.mxu0 0
        %850 = vmatpush1.bf16.msra.mxu0 0
        %851 = vmatprep.mubr.bf16.mxu0 0
        %852 = vmatmul.mubr.bf16.gmra.mrb[0].mxu0 %v723
        %v853 = vpop.f32.mrb[0].mxu0
        %v854 = vadd.f32 %v549, %v853
        %v855 = vpop.f32.mrb[0].mxu0
        %v856 = vpop.f32.mrb[0].mxu0
        %v857 = vadd.f32 %v552, %v856
        %v858 = vpop.f32.mrb[0].mxu0
        %859 = vmatprep.mubr.bf16.mxu0 0
        %860 = vmatmul.mubr.bf16.gmra.mrb[0].mxu0 %v724
        %v861 = vpop.f32.mrb[0].mxu0
        %v862 = vpop.f32.mrb[0].mxu0
        %v863 = vpop.f32.mrb[0].mxu0
        %v864 = vadd.f32 %v559, %v863
        %v865 = vpop.f32.mrb[0].mxu0
        %866 = vmatprep.mubr.bf16.mxu0 0
        %867 = vmatmul.mubr.bf16.gmra.mrb[0].mxu0 %v725
        %v868 = vpop.f32.mrb[0].mxu0
        %v869 = vadd.f32 %v564, %v868
        %v870 = vpop.f32.mrb[0].mxu0
        %v871 = vpop.f32.mrb[0].mxu0
        %v872 = vpop.f32.mrb[0].mxu0
        %873 = vmatprep.mubr.bf16.mxu0 0
        %874 = vmatmul.mubr.bf16.gmra.mrb[0].mxu0 %v726
        %v875 = vpop.f32.mrb[0].mxu0
        %v876 = vadd.f32 %v571, %v875
        %v877 = vpop.f32.mrb[0].mxu0
        %v878 = vpop.f32.mrb[0].mxu0
        %v879 = vadd.f32 %v574, %v878
        %v880 = vpop.f32.mrb[0].mxu0
        %881 = vmatprep.mubr.bf16.mxu0 0
        %882 = vmatmul.mubr.bf16.gmra.mrb[0].mxu0 %v727
        %v883 = vpop.f32.mrb[0].mxu0
        %v884 = vpop.f32.mrb[0].mxu0
        %v885 = vpop.f32.mrb[0].mxu0
        %v886 = vadd.f32 %v581, %v885
        %v887 = vpop.f32.mrb[0].mxu0
        %888 = vmatprep.mubr.bf16.mxu0 0
        %889 = vmatmul.mubr.bf16.gmra.mrb[0].mxu0 %v728
        %v890 = vpop.f32.mrb[0].mxu0
        %v891 = vadd.f32 %v586, %v890
        %v892 = vpop.f32.mrb[0].mxu0
        %v893 = vpop.f32.mrb[0].mxu0
        %v894 = vpop.f32.mrb[0].mxu0
        %895 = vmatprep.mubr.bf16.mxu0 0
        %896 = vmatmul.mubr.bf16.gmra.mrb[0].mxu0 %v729
        %v897 = vpop.f32.mrb[0].mxu0
        %v898 = vadd.f32 %v593, %v897
        %v899 = vpop.f32.mrb[0].mxu0
        %v900 = vpop.f32.mrb[0].mxu0
        %v901 = vadd.f32 %v596, %v900
        %v902 = vpop.f32.mrb[0].mxu0
        %903 = vmatprep.mubr.bf16.mxu0 0
        %904 = vmatmul.mubr.bf16.gmra.mrb[0].mxu0 %v730
        %v905 = vpop.f32.mrb[0].mxu0
        %v906 = vpop.f32.mrb[0].mxu0
        %v907 = vpop.f32.mrb[0].mxu0
        %v908 = vadd.f32 %v603, %v907
        %v909 = vpop.f32.mrb[0].mxu0
        %910 = vmatprep.mubr.bf16.mxu0 0
        %911 = vmatmul.mubr.bf16.gmra.mrb[0].mxu0 %v731
        %v912 = vpop.f32.mrb[0].mxu0
        %v913 = vadd.f32 %v608, %v912
        %v914 = vpop.f32.mrb[0].mxu0
        %v915 = vpop.f32.mrb[0].mxu0
        %v916 = vpop.f32.mrb[0].mxu0
        %917 = vmatprep.mubr.bf16.mxu0 0
        %918 = vmatmul.mubr.bf16.gmra.mrb[0].mxu0 %v732
        %v919 = vpop.f32.mrb[0].mxu0
        %v920 = vadd.f32 %v615, %v919
        %v921 = vpop.f32.mrb[0].mxu0
        %v922 = vpop.f32.mrb[0].mxu0
        %v923 = vadd.f32 %v618, %v922
        %v924 = vpop.f32.mrb[0].mxu0
        %925 = vmatprep.mubr.bf16.mxu0 0
        %926 = vmatmul.mubr.bf16.gmra.mrb[0].mxu0 %v733
        %v927 = vpop.f32.mrb[0].mxu0
        %v928 = vpop.f32.mrb[0].mxu0
        %v929 = vpop.f32.mrb[0].mxu0
        %v930 = vadd.f32 %v625, %v929
        %v931 = vpop.f32.mrb[0].mxu0
        %932 = vmatprep.mubr.bf16.mxu0 0
        %933 = vmatmul.mubr.bf16.gmra.mrb[0].mxu0 %v734
        %v934 = vpop.f32.mrb[0].mxu0
        %v935 = vadd.f32 %v630, %v934
        %v936 = vpop.f32.mrb[0].mxu0
        %v937 = vpop.f32.mrb[0].mxu0
        %v938 = vpop.f32.mrb[0].mxu0
        %939 = vmatprep.mubr.bf16.mxu0 0
        %940 = vmatmul.mubr.bf16.gmra.mrb[0].mxu0 %v735
        %v941 = vpop.f32.mrb[0].mxu0
        %v942 = vadd.f32 %v637, %v941
        %v943 = vpop.f32.mrb[0].mxu0
        %v944 = vpop.f32.mrb[0].mxu0
        %v945 = vadd.f32 %v640, %v944
        %v946 = vpop.f32.mrb[0].mxu0
        %947 = vmatprep.mubr.bf16.mxu0 0
        %948 = vmatmul.mubr.bf16.gmra.mrb[0].mxu0 %v736
        %v949 = vpop.f32.mrb[0].mxu0
        %v950 = vpop.f32.mrb[0].mxu0
        %v951 = vpop.f32.mrb[0].mxu0
        %v952 = vadd.f32 %v647, %v951
        %v953 = vpop.f32.mrb[0].mxu0
        %954 = vmatprep.mubr.bf16.mxu0 0
        %955 = vmatmul.mubr.bf16.gmra.mrb[0].mxu0 %v737
        %v956 = vpop.f32.mrb[0].mxu0
        %v957 = vadd.f32 %v652, %v956
        %v958 = vpop.f32.mrb[0].mxu0
        %v959 = vpop.f32.mrb[0].mxu0
        %v960 = vpop.f32.mrb[0].mxu0
        %961 = vmatprep.mubr.bf16.mxu0 0
        %962 = vmatmul.mubr.bf16.gmra.mrb[0].mxu0 %v738
        %v963 = vpop.f32.mrb[0].mxu0
        %v964 = vadd.f32 %v659, %v963
        %v965 = vpop.f32.mrb[0].mxu0
        %v966 = vpop.f32.mrb[0].mxu0
        %v967 = vadd.f32 %v662, %v966
        %v968 = vpop.f32.mrb[0].mxu0
        %969 = vmatprep.mubr.bf16.mxu0 0
        %970 = vmatmul.mubr.bf16.gmra.mrb[0].mxu0 %v739
        %v971 = vpop.f32.mrb[0].mxu0
        %v972 = vpop.f32.mrb[0].mxu0
        %v973 = vpop.f32.mrb[0].mxu0
        %v974 = vadd.f32 %v669, %v973
        %v975 = vpop.f32.mrb[0].mxu0
        %976 = vmatprep.mubr.bf16.mxu0 0
        %977 = vmatmul.mubr.bf16.gmra.mrb[0].mxu0 %v740
        %v978 = vpop.f32.mrb[0].mxu0
        %v979 = vadd.f32 %v674, %v978
        %v980 = vpop.f32.mrb[0].mxu0
        %v981 = vpop.f32.mrb[0].mxu0
        %v982 = vpop.f32.mrb[0].mxu0
        %983 = vmatprep.mubr.bf16.mxu0 0
        %984 = vmatmul.mubr.bf16.gmra.mrb[0].mxu0 %v741
        %v985 = vpop.f32.mrb[0].mxu0
        %v986 = vadd.f32 %v681, %v985
        %v987 = vpop.f32.mrb[0].mxu0
        %v988 = vpop.f32.mrb[0].mxu0
        %v989 = vadd.f32 %v684, %v988
        %v990 = vpop.f32.mrb[0].mxu0
        %991 = vmatprep.mubr.bf16.mxu0 0
        %992 = vmatmul.mubr.bf16.gmra.mrb[0].mxu0 %v742
        %v993 = vpop.f32.mrb[0].mxu0
        %v994 = vpop.f32.mrb[0].mxu0
        %v995 = vpop.f32.mrb[0].mxu0
        %v996 = vadd.f32 %v691, %v995
        %v997 = vpop.f32.mrb[0].mxu0
        %998 = vmatprep.mubr.bf16.mxu0 0
        %999 = vmatmul.mubr.bf16.gmra.mrb[0].mxu0 %v743
        %v1000 = vpop.f32.mrb[0].mxu0
        %v1001 = vadd.f32 %v696, %v1000
        %v1002 = vpop.f32.mrb[0].mxu0
        %v1003 = vpop.f32.mrb[0].mxu0
        %v1004 = vpop.f32.mrb[0].mxu0
        %1005 = vmatprep.mubr.bf16.mxu0 0
        %1006 = vmatmul.mubr.bf16.gmra.mrb[0].mxu0 %v744
        %v1007 = vpop.f32.mrb[0].mxu0
        %v1008 = vadd.f32 %v703, %v1007
        %v1009 = vpop.f32.mrb[0].mxu0
        %v1010 = vpop.f32.mrb[0].mxu0
        %v1011 = vadd.f32 %v706, %v1010
        %v1012 = vpop.f32.mrb[0].mxu0
        %1013 = vmatprep.mubr.bf16.mxu0 0
        %1014 = vmatmul.mubr.bf16.gmra.mrb[0].mxu0 %v745
        %v1015 = vpop.f32.mrb[0].mxu0
        %v1016 = vpop.f32.mrb[0].mxu0
        %v1017 = vpop.f32.mrb[0].mxu0
        %v1018 = vadd.f32 %v713, %v1017
        %v1019 = vpop.f32.mrb[0].mxu0
        %1020 = vmatprep.mubr.bf16.mxu0 0
        %1021 = vmatmul.mubr.bf16.gmra.mrb[0].mxu0 %v746
        %v1022 = vpop.f32.mrb[0].mxu0
        %v1023 = vadd.f32 %v718, %v1022
        %v1024 = vpop.f32.mrb[0].mxu0
        %v1025 = vpop.f32.mrb[0].mxu0
        %v1026 = vpop.f32.mrb[0].mxu0
        %1027 = vdwg.mxu0
        %s1028 = scalar_lea.vmem [#allocation5], 384
        %v1029 = vld [vmem:[%s1028] sm:$0xf]
        %v1030 = vld [vmem:[%s1028 + $0x4] sm:$0xf]
        %v1031 = vld [vmem:[%s1028 + $0x8] sm:$0xf]
        %v1032 = vld [vmem:[%s1028 + $0xc] sm:$0xf]
        %v1033 = vld [vmem:[%s1028 + $0x10] sm:$0xf]
        %v1034 = vld [vmem:[%s1028 + $0x14] sm:$0xf]
        %v1035 = vld [vmem:[%s1028 + $0x18] sm:$0xf]
        %v1036 = vld [vmem:[%s1028 + $0x1c] sm:$0xf]
        %v1037 = vld [vmem:[%s1028 + $0x20] sm:$0xf]
        %v1038 = vld [vmem:[%s1028 + $0x24] sm:$0xf]
        %v1039 = vld [vmem:[%s1028 + $0x28] sm:$0xf]
        %v1040 = vld [vmem:[%s1028 + $0x2c] sm:$0xf]
        %v1041 = vld [vmem:[%s1028 + $0x30] sm:$0xf]
        %v1042 = vld [vmem:[%s1028 + $0x34] sm:$0xf]
        %v1043 = vld [vmem:[%s1028 + $0x38] sm:$0xf]
        %v1044 = vld [vmem:[%s1028 + $0x3c] sm:$0xf]
        %v1045 = vpack.c.b16 %v378, %v377
        %v1046 = vpack.c.b16 %v382, %v379
        %v1047 = vpack.c.b16 %v384, %v383
        %v1067 = vunpack.c.l.b16 %v1029
        %v1068 = vunpack.c.l.b16 %v1030
        %v1069 = vunpack.c.l.b16 %v1031
        %v1070 = vunpack.c.l.b16 %v1032
        %v1071 = vunpack.c.l.b16 %v1033
        %v1072 = vunpack.c.l.b16 %v1034
        %v1073 = vunpack.c.l.b16 %v1035
        %v1074 = vunpack.c.l.b16 %v1036
        %v1075 = vunpack.c.l.b16 %v1037
        %v1076 = vunpack.c.l.b16 %v1038
        %v1077 = vunpack.c.l.b16 %v1039
        %v1078 = vunpack.c.l.b16 %v1040
        %v1079 = vunpack.c.l.b16 %v1041
        %v1080 = vunpack.c.l.b16 %v1042
        %v1081 = vunpack.c.l.b16 %v1043
        %v1082 = vunpack.c.l.b16 %v1044
        %v1083 = vpack.c.b16 %v1068, %v1067
        %v1084 = vpack.c.b16 %v1070, %v1069
        %v1085 = vpack.c.b16 %v1072, %v1071
        %v1086 = vpack.c.b16 %v1074, %v1073
        %v1087 = vpack.c.b16 %v1076, %v1075
        %v1088 = vpack.c.b16 %v1078, %v1077
        %v1089 = vpack.c.b16 %v1080, %v1079
        %v1090 = vpack.c.b16 %v1082, %v1081
        %1099 = vmatprep.subr.bf16.mxu0 0
        %1100 = vmatpush1.bf16.msra.mxu0 %v1083
        %1101 = vmatprep.subr.bf16.mxu0 0
        %1102 = vmatpush1.bf16.msra.mxu0 %v1084
        %1103 = vmatprep.subr.bf16.mxu0 0
        %1104 = vmatpush1.bf16.msra.mxu0 %v1085
        %1105 = vmatprep.subr.bf16.mxu0 0
        %1106 = vmatpush1.bf16.msra.mxu0 %v1086
        %1107 = vmatprep.subr.bf16.mxu0 0
        %1108 = vmatpush1.bf16.msra.mxu0 %v1087
        %1109 = vmatprep.subr.bf16.mxu0 0
        %1110 = vmatpush1.bf16.msra.mxu0 %v1088
        %1111 = vmatprep.subr.bf16.mxu0 0
        %1112 = vmatpush1.bf16.msra.mxu0 %v1089
        %1113 = vmatprep.subr.bf16.mxu0 0
        %1114 = vmatpush1.bf16.msra.mxu0 %v1090
        %1115 = vmatprep.subr.bf16.mxu0 0
        %1116 = vmatpush1.bf16.msra.mxu0 0
        %1117 = vmatprep.subr.bf16.mxu0 0
        %1118 = vmatpush1.bf16.msra.mxu0 0
        %1119 = vmatprep.subr.bf16.mxu0 0
        %1120 = vmatpush1.bf16.msra.mxu0 0
        %1121 = vmatprep.subr.bf16.mxu0 0
        %1122 = vmatpush1.bf16.msra.mxu0 0
        %1123 = vmatprep.subr.bf16.mxu0 0
        %1124 = vmatpush1.bf16.msra.mxu0 0
        %1125 = vmatprep.subr.bf16.mxu0 0
        %1126 = vmatpush1.bf16.msra.mxu0 0
        %1127 = vmatprep.subr.bf16.mxu0 0
        %1128 = vmatpush1.bf16.msra.mxu0 0
        %1129 = vmatprep.subr.bf16.mxu0 0
        %1130 = vmatpush1.bf16.msra.mxu0 0
        %1131 = vmatprep.mubr.bf16.mxu0 0
        %1132 = vmatmul.mubr.bf16.gmra.mrb[0].mxu0 %v726
        %v1133 = vpop.f32.mrb[0].mxu0
        %v1134 = vadd.f32 0.0, %v1133
        %v1135 = vpop.f32.mrb[0].mxu0
        %v1136 = vpop.f32.mrb[0].mxu0
        %v1137 = vadd.f32 0.0, %v1136
        %v1138 = vpop.f32.mrb[0].mxu0
        %1139 = vmatprep.mubr.bf16.mxu0 0
        %1140 = vmatmul.mubr.bf16.gmra.mrb[0].mxu0 %v727
        %v1141 = vpop.f32.mrb[0].mxu0
        %v1142 = vpop.f32.mrb[0].mxu0
        %v1143 = vpop.f32.mrb[0].mxu0
        %v1144 = vadd.f32 0.0, %v1143
        %v1145 = vpop.f32.mrb[0].mxu0
        %1146 = vmatprep.mubr.bf16.mxu0 0
        %1147 = vmatmul.mubr.bf16.gmra.mrb[0].mxu0 %v728
        %v1148 = vpop.f32.mrb[0].mxu0
        %v1149 = vadd.f32 0.0, %v1148
        %v1150 = vpop.f32.mrb[0].mxu0
        %v1151 = vpop.f32.mrb[0].mxu0
        %v1152 = vpop.f32.mrb[0].mxu0
        %1153 = vmatprep.mubr.bf16.mxu0 0
        %1154 = vmatmul.mubr.bf16.gmra.mrb[0].mxu0 %v729
        %v1155 = vpop.f32.mrb[0].mxu0
        %v1156 = vadd.f32 0.0, %v1155
        %v1157 = vpop.f32.mrb[0].mxu0
        %v1158 = vpop.f32.mrb[0].mxu0
        %v1159 = vadd.f32 0.0, %v1158
        %v1160 = vpop.f32.mrb[0].mxu0
        %1161 = vmatprep.mubr.bf16.mxu0 0
        %1162 = vmatmul.mubr.bf16.gmra.mrb[0].mxu0 %v730
        %v1163 = vpop.f32.mrb[0].mxu0
        %v1164 = vpop.f32.mrb[0].mxu0
        %v1165 = vpop.f32.mrb[0].mxu0
        %v1166 = vadd.f32 0.0, %v1165
        %v1167 = vpop.f32.mrb[0].mxu0
        %1168 = vmatprep.mubr.bf16.mxu0 0
        %1169 = vmatmul.mubr.bf16.gmra.mrb[0].mxu0 %v731
        %v1170 = vpop.f32.mrb[0].mxu0
        %v1171 = vadd.f32 0.0, %v1170
        %v1172 = vpop.f32.mrb[0].mxu0
        %v1173 = vpop.f32.mrb[0].mxu0
        %v1174 = vpop.f32.mrb[0].mxu0
        %1175 = vmatprep.mubr.bf16.mxu0 0
        %1176 = vmatmul.mubr.bf16.gmra.mrb[0].mxu0 %v732
        %v1177 = vpop.f32.mrb[0].mxu0
        %v1178 = vadd.f32 0.0, %v1177
        %v1179 = vpop.f32.mrb[0].mxu0
        %v1180 = vpop.f32.mrb[0].mxu0
        %v1181 = vadd.f32 0.0, %v1180
        %v1182 = vpop.f32.mrb[0].mxu0
        %1183 = vmatprep.mubr.bf16.mxu0 0
        %1184 = vmatmul.mubr.bf16.gmra.mrb[0].mxu0 %v733
        %v1185 = vpop.f32.mrb[0].mxu0
        %v1186 = vpop.f32.mrb[0].mxu0
        %v1187 = vpop.f32.mrb[0].mxu0
        %v1188 = vadd.f32 0.0, %v1187
        %v1189 = vpop.f32.mrb[0].mxu0
        %1190 = vmatprep.mubr.bf16.mxu0 0
        %1191 = vmatmul.mubr.bf16.gmra.mrb[0].mxu0 %v734
        %v1192 = vpop.f32.mrb[0].mxu0
        %v1193 = vadd.f32 0.0, %v1192
        %v1194 = vpop.f32.mrb[0].mxu0
        %v1195 = vpop.f32.mrb[0].mxu0
        %v1196 = vpop.f32.mrb[0].mxu0
        %1197 = vmatprep.mubr.bf16.mxu0 0
        %1198 = vmatmul.mubr.bf16.gmra.mrb[0].mxu0 %v735
        %v1199 = vpop.f32.mrb[0].mxu0
        %v1200 = vadd.f32 0.0, %v1199
        %v1201 = vpop.f32.mrb[0].mxu0
        %v1202 = vpop.f32.mrb[0].mxu0
        %v1203 = vadd.f32 0.0, %v1202
        %v1204 = vpop.f32.mrb[0].mxu0
        %1205 = vmatprep.mubr.bf16.mxu0 0
        %1206 = vmatmul.mubr.bf16.gmra.mrb[0].mxu0 %v736
        %v1207 = vpop.f32.mrb[0].mxu0
        %v1208 = vpop.f32.mrb[0].mxu0
        %v1209 = vpop.f32.mrb[0].mxu0
        %v1210 = vadd.f32 0.0, %v1209
        %v1211 = vpop.f32.mrb[0].mxu0
        %1212 = vmatprep.mubr.bf16.mxu0 0
        %1213 = vmatmul.mubr.bf16.gmra.mrb[0].mxu0 %v737
        %v1214 = vpop.f32.mrb[0].mxu0
        %v1215 = vadd.f32 0.0, %v1214
        %v1216 = vpop.f32.mrb[0].mxu0
        %v1217 = vpop.f32.mrb[0].mxu0
        %v1218 = vpop.f32.mrb[0].mxu0
        %1219 = vmatprep.mubr.bf16.mxu0 0
        %1220 = vmatmul.mubr.bf16.gmra.mrb[0].mxu0 %v738
        %v1221 = vpop.f32.mrb[0].mxu0
        %v1222 = vadd.f32 0.0, %v1221
        %v1223 = vpop.f32.mrb[0].mxu0
        %v1224 = vpop.f32.mrb[0].mxu0
        %v1225 = vadd.f32 0.0, %v1224
        %v1226 = vpop.f32.mrb[0].mxu0
        %1227 = vmatprep.mubr.bf16.mxu0 0
        %1228 = vmatmul.mubr.bf16.gmra.mrb[0].mxu0 %v739
        %v1229 = vpop.f32.mrb[0].mxu0
        %v1230 = vpop.f32.mrb[0].mxu0
        %v1231 = vpop.f32.mrb[0].mxu0
        %v1232 = vadd.f32 0.0, %v1231
        %v1233 = vpop.f32.mrb[0].mxu0
        %1234 = vmatprep.mubr.bf16.mxu0 0
        %1235 = vmatmul.mubr.bf16.gmra.mrb[0].mxu0 %v740
        %v1236 = vpop.f32.mrb[0].mxu0
        %v1237 = vadd.f32 0.0, %v1236
        %v1238 = vpop.f32.mrb[0].mxu0
        %v1239 = vpop.f32.mrb[0].mxu0
        %v1240 = vpop.f32.mrb[0].mxu0
        %1241 = vmatprep.mubr.bf16.mxu0 0
        %1242 = vmatmul.mubr.bf16.gmra.mrb[0].mxu0 %v741
        %v1243 = vpop.f32.mrb[0].mxu0
        %v1244 = vadd.f32 0.0, %v1243
        %v1245 = vpop.f32.mrb[0].mxu0
        %v1246 = vpop.f32.mrb[0].mxu0
        %v1247 = vadd.f32 0.0, %v1246
        %v1248 = vpop.f32.mrb[0].mxu0
        %1249 = vmatprep.mubr.bf16.mxu0 0
        %1250 = vmatmul.mubr.bf16.gmra.mrb[0].mxu0 %v742
        %v1251 = vpop.f32.mrb[0].mxu0
        %v1252 = vpop.f32.mrb[0].mxu0
        %v1253 = vpop.f32.mrb[0].mxu0
        %v1254 = vadd.f32 0.0, %v1253
        %v1255 = vpop.f32.mrb[0].mxu0
        %1256 = vmatprep.mubr.bf16.mxu0 0
        %1257 = vmatmul.mubr.bf16.gmra.mrb[0].mxu0 %v743
        %v1258 = vpop.f32.mrb[0].mxu0
        %v1259 = vadd.f32 0.0, %v1258
        %v1260 = vpop.f32.mrb[0].mxu0
        %v1261 = vpop.f32.mrb[0].mxu0
        %v1262 = vpop.f32.mrb[0].mxu0
        %1263 = vmatprep.mubr.bf16.mxu0 0
        %1264 = vmatmul.mubr.bf16.gmra.mrb[0].mxu0 %v744
        %v1265 = vpop.f32.mrb[0].mxu0
        %v1266 = vadd.f32 0.0, %v1265
        %v1267 = vpop.f32.mrb[0].mxu0
        %v1268 = vpop.f32.mrb[0].mxu0
        %v1269 = vadd.f32 0.0, %v1268
        %v1270 = vpop.f32.mrb[0].mxu0
        %1271 = vmatprep.mubr.bf16.mxu0 0
        %1272 = vmatmul.mubr.bf16.gmra.mrb[0].mxu0 %v745
        %v1273 = vpop.f32.mrb[0].mxu0
        %v1274 = vpop.f32.mrb[0].mxu0
        %v1275 = vpop.f32.mrb[0].mxu0
        %v1276 = vadd.f32 0.0, %v1275
        %v1277 = vpop.f32.mrb[0].mxu0
        %1278 = vmatprep.mubr.bf16.mxu0 0
        %1279 = vmatmul.mubr.bf16.gmra.mrb[0].mxu0 %v746
        %v1280 = vpop.f32.mrb[0].mxu0
        %v1281 = vadd.f32 0.0, %v1280
        %v1282 = vpop.f32.mrb[0].mxu0
        %v1283 = vpop.f32.mrb[0].mxu0
        %v1284 = vpop.f32.mrb[0].mxu0
        %1285 = vmatprep.mubr.bf16.mxu0 0
        %1286 = vmatmul.mubr.bf16.gmra.mrb[0].mxu0 %v1045
        %v1287 = vpop.f32.mrb[0].mxu0
        %v1288 = vadd.f32 0.0, %v1287
        %v1289 = vpop.f32.mrb[0].mxu0
        %v1290 = vpop.f32.mrb[0].mxu0
        %v1291 = vadd.f32 0.0, %v1290
        %v1292 = vpop.f32.mrb[0].mxu0
        %1293 = vmatprep.mubr.bf16.mxu0 0
        %1294 = vmatmul.mubr.bf16.gmra.mrb[0].mxu0 %v1046
        %v1295 = vpop.f32.mrb[0].mxu0
        %v1296 = vpop.f32.mrb[0].mxu0
        %v1297 = vpop.f32.mrb[0].mxu0
        %v1298 = vadd.f32 0.0, %v1297
        %v1299 = vpop.f32.mrb[0].mxu0
        %1300 = vmatprep.mubr.bf16.mxu0 0
        %1301 = vmatmul.mubr.bf16.gmra.mrb[0].mxu0 %v1047
        %v1302 = vpop.f32.mrb[0].mxu0
        %v1303 = vadd.f32 0.0, %v1302
        %v1304 = vpop.f32.mrb[0].mxu0
        %v1305 = vpop.f32.mrb[0].mxu0
        %v1306 = vpop.f32.mrb[0].mxu0
        %1307 = vdwg.mxu0
        %v1308 = vadd.f32 %v854, %v1134
        %v1309 = vadd.f32 %v857, %v1137
        %v1310 = vadd.f32 %v864, %v1144
        %v1311 = vadd.f32 %v869, %v1149
        %v1312 = vadd.f32 %v876, %v1156
        %v1313 = vadd.f32 %v879, %v1159
        %v1314 = vadd.f32 %v886, %v1166
        %v1315 = vadd.f32 %v891, %v1171
        %v1316 = vadd.f32 %v898, %v1178
        %v1317 = vadd.f32 %v901, %v1181
        %v1318 = vadd.f32 %v908, %v1188
        %v1319 = vadd.f32 %v913, %v1193
        %v1320 = vadd.f32 %v920, %v1200
        %v1321 = vadd.f32 %v923, %v1203
        %v1322 = vadd.f32 %v930, %v1210
        %v1323 = vadd.f32 %v935, %v1215
        %v1324 = vadd.f32 %v942, %v1222
        %v1325 = vadd.f32 %v945, %v1225
        %v1326 = vadd.f32 %v952, %v1232
        %v1327 = vadd.f32 %v957, %v1237
        %v1328 = vadd.f32 %v964, %v1244
        %v1329 = vadd.f32 %v967, %v1247
        %v1330 = vadd.f32 %v974, %v1254
        %v1331 = vadd.f32 %v979, %v1259
        %v1332 = vadd.f32 %v986, %v1266
        %v1333 = vadd.f32 %v989, %v1269
        %v1334 = vadd.f32 %v996, %v1276
        %v1335 = vadd.f32 %v1001, %v1281
        %v1336 = vadd.f32 %v1008, %v1288
        %v1337 = vadd.f32 %v1011, %v1291
        %v1338 = vadd.f32 %v1018, %v1298
        %v1339 = vadd.f32 %v1023, %v1303
        %v1340 = vld [vmem:[%s2] sm:$0x1]
        %v1342 = vlaneseq
        %v1343 = vshrl.u32 %v1342, 7
        %v1344 = vsub.s32 0, %v1343
        %v1345 = vrot.slane %v1340, %v1344
        %v1347 = vadd.f32 %v1308, %v1345
        %v1348 = vadd.f32 %v1309, %v1345
        %v1349 = vadd.f32 %v1310, %v1345
        %v1350 = vadd.f32 %v1311, %v1345
        %v1351 = vadd.f32 %v1312, %v1345
        %v1352 = vadd.f32 %v1313, %v1345
        %v1353 = vadd.f32 %v1314, %v1345
        %v1354 = vadd.f32 %v1315, %v1345
        %v1355 = vadd.f32 %v1316, %v1345
        %v1356 = vadd.f32 %v1317, %v1345
        %v1357 = vadd.f32 %v1318, %v1345
        %v1358 = vadd.f32 %v1319, %v1345
        %v1359 = vadd.f32 %v1320, %v1345
        %v1360 = vadd.f32 %v1321, %v1345
        %v1361 = vadd.f32 %v1322, %v1345
        %v1362 = vadd.f32 %v1323, %v1345
        %v1363 = vadd.f32 %v1324, %v1345
        %v1364 = vadd.f32 %v1325, %v1345
        %v1365 = vadd.f32 %v1326, %v1345
        %v1366 = vadd.f32 %v1327, %v1345
        %v1367 = vadd.f32 %v1328, %v1345
        %v1368 = vadd.f32 %v1329, %v1345
        %v1369 = vadd.f32 %v1330, %v1345
        %v1370 = vadd.f32 %v1331, %v1345
        %v1371 = vadd.f32 %v1332, %v1345
        %v1372 = vadd.f32 %v1333, %v1345
        %v1373 = vadd.f32 %v1334, %v1345
        %v1374 = vadd.f32 %v1335, %v1345
        %v1375 = vadd.f32 %v1336, %v1345
        %v1376 = vadd.f32 %v1337, %v1345
        %v1377 = vadd.f32 %v1338, %v1345
        %v1378 = vadd.f32 %v1339, %v1345
        %s1379 = scalar_lea.vmem [#allocation5], 64
        %v1380 = vld [vmem:[%s1379] sm:$0xf]
        %v1381 = vld [vmem:[%s1379 + $0x4] sm:$0xf]
        %v1382 = vld [vmem:[%s1379 + $0x8] sm:$0xf]
        %v1383 = vld [vmem:[%s1379 + $0xc] sm:$0xf]
        %v1384 = vld [vmem:[%s1379 + $0x10] sm:$0xf]
        %v1385 = vld [vmem:[%s1379 + $0x14] sm:$0xf]
        %v1386 = vld [vmem:[%s1379 + $0x18] sm:$0xf]
        %v1387 = vld [vmem:[%s1379 + $0x1c] sm:$0xf]
        %v1388 = vld [vmem:[%s1379 + $0x20] sm:$0xf]
        %v1389 = vld [vmem:[%s1379 + $0x24] sm:$0xf]
        %v1390 = vld [vmem:[%s1379 + $0x28] sm:$0xf]
        %v1391 = vld [vmem:[%s1379 + $0x2c] sm:$0xf]
        %v1392 = vld [vmem:[%s1379 + $0x30] sm:$0xf]
        %v1393 = vld [vmem:[%s1379 + $0x34] sm:$0xf]
        %v1394 = vld [vmem:[%s1379 + $0x38] sm:$0xf]
        %v1395 = vld [vmem:[%s1379 + $0x3c] sm:$0xf]
        %s1396 = scalar_lea.vmem [#allocation5], 256
        %v1397 = vld [vmem:[%s1396] sm:$0xf]
        %v1398 = vld [vmem:[%s1396 + $0x4] sm:$0xf]
        %v1399 = vld [vmem:[%s1396 + $0x8] sm:$0xf]
        %v1400 = vld [vmem:[%s1396 + $0xc] sm:$0xf]
        %v1401 = vld [vmem:[%s1396 + $0x10] sm:$0xf]
        %v1402 = vld [vmem:[%s1396 + $0x14] sm:$0xf]
        %v1403 = vld [vmem:[%s1396 + $0x18] sm:$0xf]
        %v1404 = vld [vmem:[%s1396 + $0x1c] sm:$0xf]
        %v1405 = vld [vmem:[%s1396 + $0x20] sm:$0xf]
        %v1406 = vld [vmem:[%s1396 + $0x24] sm:$0xf]
        %v1407 = vld [vmem:[%s1396 + $0x28] sm:$0xf]
        %v1408 = vld [vmem:[%s1396 + $0x2c] sm:$0xf]
        %v1409 = vld [vmem:[%s1396 + $0x30] sm:$0xf]
        %v1410 = vld [vmem:[%s1396 + $0x34] sm:$0xf]
        %v1411 = vld [vmem:[%s1396 + $0x38] sm:$0xf]
        %v1412 = vld [vmem:[%s1396 + $0x3c] sm:$0xf]
        %v1429 = vunpack.c.l.b16 %v1397
        %v1430 = vunpack.c.l.b16 %v1398
        %v1431 = vunpack.c.l.b16 %v1399
        %v1432 = vunpack.c.l.b16 %v1400
        %v1433 = vunpack.c.l.b16 %v1401
        %v1434 = vunpack.c.l.b16 %v1402
        %v1435 = vunpack.c.l.b16 %v1403
        %v1436 = vunpack.c.l.b16 %v1404
        %v1437 = vunpack.c.l.b16 %v1405
        %v1438 = vunpack.c.l.b16 %v1406
        %v1439 = vunpack.c.l.b16 %v1407
        %v1440 = vunpack.c.l.b16 %v1408
        %v1441 = vunpack.c.l.b16 %v1409
        %v1442 = vunpack.c.l.b16 %v1410
        %v1443 = vunpack.c.l.b16 %v1411
        %v1444 = vunpack.c.l.b16 %v1412
        %v1445 = vpack.c.b16 %v1430, %v1429
        %v1446 = vpack.c.b16 %v1432, %v1431
        %v1447 = vpack.c.b16 %v1434, %v1433
        %v1448 = vpack.c.b16 %v1436, %v1435
        %v1449 = vpack.c.b16 %v1438, %v1437
        %v1450 = vpack.c.b16 %v1440, %v1439
        %v1451 = vpack.c.b16 %v1442, %v1441
        %v1452 = vpack.c.b16 %v1444, %v1443
        %1461 = vmatprep.subr.bf16.mxu0 0
        %1462 = vmatpush1.bf16.msra.mxu0 %v1445
        %1463 = vmatprep.subr.bf16.mxu0 0
        %1464 = vmatpush1.bf16.msra.mxu0 %v1446
        %1465 = vmatprep.subr.bf16.mxu0 0
        %1466 = vmatpush1.bf16.msra.mxu0 %v1447
        %1467 = vmatprep.subr.bf16.mxu0 0
        %1468 = vmatpush1.bf16.msra.mxu0 %v1448
        %1469 = vmatprep.subr.bf16.mxu0 0
        %1470 = vmatpush1.bf16.msra.mxu0 %v1449
        %1471 = vmatprep.subr.bf16.mxu0 0
        %1472 = vmatpush1.bf16.msra.mxu0 %v1450
        %1473 = vmatprep.subr.bf16.mxu0 0
        %1474 = vmatpush1.bf16.msra.mxu0 %v1451
        %1475 = vmatprep.subr.bf16.mxu0 0
        %1476 = vmatpush1.bf16.msra.mxu0 %v1452
        %1477 = vmatprep.subr.bf16.mxu0 0
        %1478 = vmatpush1.bf16.msra.mxu0 0
        %1479 = vmatprep.subr.bf16.mxu0 0
        %1480 = vmatpush1.bf16.msra.mxu0 0
        %1481 = vmatprep.subr.bf16.mxu0 0
        %1482 = vmatpush1.bf16.msra.mxu0 0
        %1483 = vmatprep.subr.bf16.mxu0 0
        %1484 = vmatpush1.bf16.msra.mxu0 0
        %1485 = vmatprep.subr.bf16.mxu0 0
        %1486 = vmatpush1.bf16.msra.mxu0 0
        %1487 = vmatprep.subr.bf16.mxu0 0
        %1488 = vmatpush1.bf16.msra.mxu0 0
        %1489 = vmatprep.subr.bf16.mxu0 0
        %1490 = vmatpush1.bf16.msra.mxu0 0
        %1491 = vmatprep.subr.bf16.mxu0 0
        %1492 = vmatpush1.bf16.msra.mxu0 0
        %1493 = vmatprep.mubr.bf16.mxu0 0
        %1494 = vmatmul.mubr.bf16.gmra.mrb[0].mxu0 %v418
        %v1495 = vpop.f32.mrb[0].mxu0
        %v1496 = vadd.f32 0.0, %v1495
        %v1497 = vpop.f32.mrb[0].mxu0
        %v1498 = vpop.f32.mrb[0].mxu0
        %v1499 = vadd.f32 0.0, %v1498
        %v1500 = vpop.f32.mrb[0].mxu0
        %1501 = vmatprep.mubr.bf16.mxu0 0
        %1502 = vmatmul.mubr.bf16.gmra.mrb[0].mxu0 %v419
        %v1503 = vpop.f32.mrb[0].mxu0
        %v1504 = vadd.f32 0.0, %v1503
        %v1505 = vpop.f32.mrb[0].mxu0
        %v1506 = vpop.f32.mrb[0].mxu0
        %v1507 = vadd.f32 0.0, %v1506
        %v1508 = vpop.f32.mrb[0].mxu0
        %1509 = vmatprep.mubr.bf16.mxu0 0
        %1510 = vmatmul.mubr.bf16.gmra.mrb[0].mxu0 %v420
        %v1511 = vpop.f32.mrb[0].mxu0
        %v1512 = vadd.f32 0.0, %v1511
        %v1513 = vpop.f32.mrb[0].mxu0
        %v1514 = vpop.f32.mrb[0].mxu0
        %v1515 = vadd.f32 0.0, %v1514
        %v1516 = vpop.f32.mrb[0].mxu0
        %1517 = vmatprep.mubr.bf16.mxu0 0
        %1518 = vmatmul.mubr.bf16.gmra.mrb[0].mxu0 %v421
        %v1519 = vpop.f32.mrb[0].mxu0
        %v1520 = vadd.f32 0.0, %v1519
        %v1521 = vpop.f32.mrb[0].mxu0
        %v1522 = vpop.f32.mrb[0].mxu0
        %v1523 = vadd.f32 0.0, %v1522
        %v1524 = vpop.f32.mrb[0].mxu0
        %1525 = vmatprep.mubr.bf16.mxu0 0
        %1526 = vmatmul.mubr.bf16.gmra.mrb[0].mxu0 %v422
        %v1527 = vpop.f32.mrb[0].mxu0
        %v1528 = vadd.f32 0.0, %v1527
        %v1529 = vpop.f32.mrb[0].mxu0
        %v1530 = vpop.f32.mrb[0].mxu0
        %v1531 = vadd.f32 0.0, %v1530
        %v1532 = vpop.f32.mrb[0].mxu0
        %1533 = vmatprep.mubr.bf16.mxu0 0
        %1534 = vmatmul.mubr.bf16.gmra.mrb[0].mxu0 %v423
        %v1535 = vpop.f32.mrb[0].mxu0
        %v1536 = vadd.f32 0.0, %v1535
        %v1537 = vpop.f32.mrb[0].mxu0
        %v1538 = vpop.f32.mrb[0].mxu0
        %v1539 = vadd.f32 0.0, %v1538
        %v1540 = vpop.f32.mrb[0].mxu0
        %1541 = vmatprep.mubr.bf16.mxu0 0
        %1542 = vmatmul.mubr.bf16.gmra.mrb[0].mxu0 %v424
        %v1543 = vpop.f32.mrb[0].mxu0
        %v1544 = vadd.f32 0.0, %v1543
        %v1545 = vpop.f32.mrb[0].mxu0
        %v1546 = vpop.f32.mrb[0].mxu0
        %v1547 = vadd.f32 0.0, %v1546
        %v1548 = vpop.f32.mrb[0].mxu0
        %1549 = vmatprep.mubr.bf16.mxu0 0
        %1550 = vmatmul.mubr.bf16.gmra.mrb[0].mxu0 %v425
        %v1551 = vpop.f32.mrb[0].mxu0
        %v1552 = vadd.f32 0.0, %v1551
        %v1553 = vpop.f32.mrb[0].mxu0
        %v1554 = vpop.f32.mrb[0].mxu0
        %v1555 = vadd.f32 0.0, %v1554
        %v1556 = vpop.f32.mrb[0].mxu0
        %1557 = vmatprep.mubr.bf16.mxu0 0
        %1558 = vmatmul.mubr.bf16.gmra.mrb[0].mxu0 %v426
        %v1559 = vpop.f32.mrb[0].mxu0
        %v1560 = vadd.f32 0.0, %v1559
        %v1561 = vpop.f32.mrb[0].mxu0
        %v1562 = vpop.f32.mrb[0].mxu0
        %v1563 = vadd.f32 0.0, %v1562
        %v1564 = vpop.f32.mrb[0].mxu0
        %1565 = vmatprep.mubr.bf16.mxu0 0
        %1566 = vmatmul.mubr.bf16.gmra.mrb[0].mxu0 %v427
        %v1567 = vpop.f32.mrb[0].mxu0
        %v1568 = vadd.f32 0.0, %v1567
        %v1569 = vpop.f32.mrb[0].mxu0
        %v1570 = vpop.f32.mrb[0].mxu0
        %v1571 = vadd.f32 0.0, %v1570
        %v1572 = vpop.f32.mrb[0].mxu0
        %1573 = vmatprep.mubr.bf16.mxu0 0
        %1574 = vmatmul.mubr.bf16.gmra.mrb[0].mxu0 %v428
        %v1575 = vpop.f32.mrb[0].mxu0
        %v1576 = vadd.f32 0.0, %v1575
        %v1577 = vpop.f32.mrb[0].mxu0
        %v1578 = vpop.f32.mrb[0].mxu0
        %v1579 = vadd.f32 0.0, %v1578
        %v1580 = vpop.f32.mrb[0].mxu0
        %1581 = vmatprep.mubr.bf16.mxu0 0
        %1582 = vmatmul.mubr.bf16.gmra.mrb[0].mxu0 %v429
        %v1583 = vpop.f32.mrb[0].mxu0
        %v1584 = vadd.f32 0.0, %v1583
        %v1585 = vpop.f32.mrb[0].mxu0
        %v1586 = vpop.f32.mrb[0].mxu0
        %v1587 = vadd.f32 0.0, %v1586
        %v1588 = vpop.f32.mrb[0].mxu0
        %1589 = vmatprep.mubr.bf16.mxu0 0
        %1590 = vmatmul.mubr.bf16.gmra.mrb[0].mxu0 %v430
        %v1591 = vpop.f32.mrb[0].mxu0
        %v1592 = vadd.f32 0.0, %v1591
        %v1593 = vpop.f32.mrb[0].mxu0
        %v1594 = vpop.f32.mrb[0].mxu0
        %v1595 = vadd.f32 0.0, %v1594
        %v1596 = vpop.f32.mrb[0].mxu0
        %1597 = vmatprep.mubr.bf16.mxu0 0
        %1598 = vmatmul.mubr.bf16.gmra.mrb[0].mxu0 %v431
        %v1599 = vpop.f32.mrb[0].mxu0
        %v1600 = vadd.f32 0.0, %v1599
        %v1601 = vpop.f32.mrb[0].mxu0
        %v1602 = vpop.f32.mrb[0].mxu0
        %v1603 = vadd.f32 0.0, %v1602
        %v1604 = vpop.f32.mrb[0].mxu0
        %1605 = vmatprep.mubr.bf16.mxu0 0
        %1606 = vmatmul.mubr.bf16.gmra.mrb[0].mxu0 %v432
        %v1607 = vpop.f32.mrb[0].mxu0
        %v1608 = vadd.f32 0.0, %v1607
        %v1609 = vpop.f32.mrb[0].mxu0
        %v1610 = vpop.f32.mrb[0].mxu0
        %v1611 = vadd.f32 0.0, %v1610
        %v1612 = vpop.f32.mrb[0].mxu0
        %1613 = vmatprep.mubr.bf16.mxu0 0
        %1614 = vmatmul.mubr.bf16.gmra.mrb[0].mxu0 %v433
        %v1615 = vpop.f32.mrb[0].mxu0
        %v1616 = vadd.f32 0.0, %v1615
        %v1617 = vpop.f32.mrb[0].mxu0
        %v1618 = vpop.f32.mrb[0].mxu0
        %v1619 = vadd.f32 0.0, %v1618
        %v1620 = vpop.f32.mrb[0].mxu0
        %1621 = vmatprep.mubr.bf16.mxu0 0
        %1622 = vmatmul.mubr.bf16.gmra.mrb[0].mxu0 %v434
        %v1623 = vpop.f32.mrb[0].mxu0
        %v1624 = vadd.f32 0.0, %v1623
        %v1625 = vpop.f32.mrb[0].mxu0
        %v1626 = vpop.f32.mrb[0].mxu0
        %v1627 = vadd.f32 0.0, %v1626
        %v1628 = vpop.f32.mrb[0].mxu0
        %1629 = vmatprep.mubr.bf16.mxu0 0
        %1630 = vmatmul.mubr.bf16.gmra.mrb[0].mxu0 %v435
        %v1631 = vpop.f32.mrb[0].mxu0
        %v1632 = vadd.f32 0.0, %v1631
        %v1633 = vpop.f32.mrb[0].mxu0
        %v1634 = vpop.f32.mrb[0].mxu0
        %v1635 = vadd.f32 0.0, %v1634
        %v1636 = vpop.f32.mrb[0].mxu0
        %1637 = vmatprep.mubr.bf16.mxu0 0
        %1638 = vmatmul.mubr.bf16.gmra.mrb[0].mxu0 %v436
        %v1639 = vpop.f32.mrb[0].mxu0
        %v1640 = vadd.f32 0.0, %v1639
        %v1641 = vpop.f32.mrb[0].mxu0
        %v1642 = vpop.f32.mrb[0].mxu0
        %v1643 = vadd.f32 0.0, %v1642
        %v1644 = vpop.f32.mrb[0].mxu0
        %1645 = vmatprep.mubr.bf16.mxu0 0
        %1646 = vmatmul.mubr.bf16.gmra.mrb[0].mxu0 %v437
        %v1647 = vpop.f32.mrb[0].mxu0
        %v1648 = vadd.f32 0.0, %v1647
        %v1649 = vpop.f32.mrb[0].mxu0
        %v1650 = vpop.f32.mrb[0].mxu0
        %v1651 = vadd.f32 0.0, %v1650
        %v1652 = vpop.f32.mrb[0].mxu0
        %1653 = vmatprep.mubr.bf16.mxu0 0
        %1654 = vmatmul.mubr.bf16.gmra.mrb[0].mxu0 %v438
        %v1655 = vpop.f32.mrb[0].mxu0
        %v1656 = vadd.f32 0.0, %v1655
        %v1657 = vpop.f32.mrb[0].mxu0
        %v1658 = vpop.f32.mrb[0].mxu0
        %v1659 = vadd.f32 0.0, %v1658
        %v1660 = vpop.f32.mrb[0].mxu0
        %1661 = vmatprep.mubr.bf16.mxu0 0
        %1662 = vmatmul.mubr.bf16.gmra.mrb[0].mxu0 %v439
        %v1663 = vpop.f32.mrb[0].mxu0
        %v1664 = vadd.f32 0.0, %v1663
        %v1665 = vpop.f32.mrb[0].mxu0
        %v1666 = vpop.f32.mrb[0].mxu0
        %v1667 = vadd.f32 0.0, %v1666
        %v1668 = vpop.f32.mrb[0].mxu0
        %1669 = vmatprep.mubr.bf16.mxu0 0
        %1670 = vmatmul.mubr.bf16.gmra.mrb[0].mxu0 %v440
        %v1671 = vpop.f32.mrb[0].mxu0
        %v1672 = vadd.f32 0.0, %v1671
        %v1673 = vpop.f32.mrb[0].mxu0
        %v1674 = vpop.f32.mrb[0].mxu0
        %v1675 = vadd.f32 0.0, %v1674
        %v1676 = vpop.f32.mrb[0].mxu0
        %1677 = vmatprep.mubr.bf16.mxu0 0
        %1678 = vmatmul.mubr.bf16.gmra.mrb[0].mxu0 %v441
        %v1679 = vpop.f32.mrb[0].mxu0
        %v1680 = vadd.f32 0.0, %v1679
        %v1681 = vpop.f32.mrb[0].mxu0
        %v1682 = vpop.f32.mrb[0].mxu0
        %v1683 = vadd.f32 0.0, %v1682
        %v1684 = vpop.f32.mrb[0].mxu0
        %1685 = vdwg.mxu0
        %v1702 = vunpack.c.l.b16 %v1380
        %v1703 = vunpack.c.l.b16 %v1381
        %v1704 = vunpack.c.l.b16 %v1382
        %v1705 = vunpack.c.l.b16 %v1383
        %v1706 = vunpack.c.l.b16 %v1384
        %v1707 = vunpack.c.l.b16 %v1385
        %v1708 = vunpack.c.l.b16 %v1386
        %v1709 = vunpack.c.l.b16 %v1387
        %v1710 = vunpack.c.l.b16 %v1388
        %v1711 = vunpack.c.l.b16 %v1389
        %v1712 = vunpack.c.l.b16 %v1390
        %v1713 = vunpack.c.l.b16 %v1391
        %v1714 = vunpack.c.l.b16 %v1392
        %v1715 = vunpack.c.l.b16 %v1393
        %v1716 = vunpack.c.l.b16 %v1394
        %v1717 = vunpack.c.l.b16 %v1395
        %v1718 = vpack.c.b16 %v1703, %v1702
        %v1719 = vpack.c.b16 %v1705, %v1704
        %v1720 = vpack.c.b16 %v1707, %v1706
        %v1721 = vpack.c.b16 %v1709, %v1708
        %v1722 = vpack.c.b16 %v1711, %v1710
        %v1723 = vpack.c.b16 %v1713, %v1712
        %v1724 = vpack.c.b16 %v1715, %v1714
        %v1725 = vpack.c.b16 %v1717, %v1716
        %1734 = vmatprep.subr.bf16.mxu0 0
        %1735 = vmatpush1.bf16.msra.mxu0 %v1718
        %1736 = vmatprep.subr.bf16.mxu0 0
        %1737 = vmatpush1.bf16.msra.mxu0 %v1719
        %1738 = vmatprep.subr.bf16.mxu0 0
        %1739 = vmatpush1.bf16.msra.mxu0 %v1720
        %1740 = vmatprep.subr.bf16.mxu0 0
        %1741 = vmatpush1.bf16.msra.mxu0 %v1721
        %1742 = vmatprep.subr.bf16.mxu0 0
        %1743 = vmatpush1.bf16.msra.mxu0 %v1722
        %1744 = vmatprep.subr.bf16.mxu0 0
        %1745 = vmatpush1.bf16.msra.mxu0 %v1723
        %1746 = vmatprep.subr.bf16.mxu0 0
        %1747 = vmatpush1.bf16.msra.mxu0 %v1724
        %1748 = vmatprep.subr.bf16.mxu0 0
        %1749 = vmatpush1.bf16.msra.mxu0 %v1725
        %1750 = vmatprep.subr.bf16.mxu0 0
        %1751 = vmatpush1.bf16.msra.mxu0 0
        %1752 = vmatprep.subr.bf16.mxu0 0
        %1753 = vmatpush1.bf16.msra.mxu0 0
        %1754 = vmatprep.subr.bf16.mxu0 0
        %1755 = vmatpush1.bf16.msra.mxu0 0
        %1756 = vmatprep.subr.bf16.mxu0 0
        %1757 = vmatpush1.bf16.msra.mxu0 0
        %1758 = vmatprep.subr.bf16.mxu0 0
        %1759 = vmatpush1.bf16.msra.mxu0 0
        %1760 = vmatprep.subr.bf16.mxu0 0
        %1761 = vmatpush1.bf16.msra.mxu0 0
        %1762 = vmatprep.subr.bf16.mxu0 0
        %1763 = vmatpush1.bf16.msra.mxu0 0
        %1764 = vmatprep.subr.bf16.mxu0 0
        %1765 = vmatpush1.bf16.msra.mxu0 0
        %1766 = vmatprep.mubr.bf16.mxu0 0
        %1767 = vmatmul.mubr.bf16.gmra.mrb[0].mxu0 %v723
        %v1768 = vpop.f32.mrb[0].mxu0
        %v1769 = vadd.f32 %v1496, %v1768
        %v1770 = vpop.f32.mrb[0].mxu0
        %v1771 = vpop.f32.mrb[0].mxu0
        %v1772 = vadd.f32 %v1499, %v1771
        %v1773 = vpop.f32.mrb[0].mxu0
        %1774 = vmatprep.mubr.bf16.mxu0 0
        %1775 = vmatmul.mubr.bf16.gmra.mrb[0].mxu0 %v724
        %v1776 = vpop.f32.mrb[0].mxu0
        %v1777 = vadd.f32 %v1504, %v1776
        %v1778 = vpop.f32.mrb[0].mxu0
        %v1779 = vpop.f32.mrb[0].mxu0
        %v1780 = vadd.f32 %v1507, %v1779
        %v1781 = vpop.f32.mrb[0].mxu0
        %1782 = vmatprep.mubr.bf16.mxu0 0
        %1783 = vmatmul.mubr.bf16.gmra.mrb[0].mxu0 %v725
        %v1784 = vpop.f32.mrb[0].mxu0
        %v1785 = vadd.f32 %v1512, %v1784
        %v1786 = vpop.f32.mrb[0].mxu0
        %v1787 = vpop.f32.mrb[0].mxu0
        %v1788 = vadd.f32 %v1515, %v1787
        %v1789 = vpop.f32.mrb[0].mxu0
        %1790 = vmatprep.mubr.bf16.mxu0 0
        %1791 = vmatmul.mubr.bf16.gmra.mrb[0].mxu0 %v726
        %v1792 = vpop.f32.mrb[0].mxu0
        %v1793 = vadd.f32 %v1520, %v1792
        %v1794 = vpop.f32.mrb[0].mxu0
        %v1795 = vpop.f32.mrb[0].mxu0
        %v1796 = vadd.f32 %v1523, %v1795
        %v1797 = vpop.f32.mrb[0].mxu0
        %1798 = vmatprep.mubr.bf16.mxu0 0
        %1799 = vmatmul.mubr.bf16.gmra.mrb[0].mxu0 %v727
        %v1800 = vpop.f32.mrb[0].mxu0
        %v1801 = vadd.f32 %v1528, %v1800
        %v1802 = vpop.f32.mrb[0].mxu0
        %v1803 = vpop.f32.mrb[0].mxu0
        %v1804 = vadd.f32 %v1531, %v1803
        %v1805 = vpop.f32.mrb[0].mxu0
        %1806 = vmatprep.mubr.bf16.mxu0 0
        %1807 = vmatmul.mubr.bf16.gmra.mrb[0].mxu0 %v728
        %v1808 = vpop.f32.mrb[0].mxu0
        %v1809 = vadd.f32 %v1536, %v1808
        %v1810 = vpop.f32.mrb[0].mxu0
        %v1811 = vpop.f32.mrb[0].mxu0
        %v1812 = vadd.f32 %v1539, %v1811
        %v1813 = vpop.f32.mrb[0].mxu0
        %1814 = vmatprep.mubr.bf16.mxu0 0
        %1815 = vmatmul.mubr.bf16.gmra.mrb[0].mxu0 %v729
        %v1816 = vpop.f32.mrb[0].mxu0
        %v1817 = vadd.f32 %v1544, %v1816
        %v1818 = vpop.f32.mrb[0].mxu0
        %v1819 = vpop.f32.mrb[0].mxu0
        %v1820 = vadd.f32 %v1547, %v1819
        %v1821 = vpop.f32.mrb[0].mxu0
        %1822 = vmatprep.mubr.bf16.mxu0 0
        %1823 = vmatmul.mubr.bf16.gmra.mrb[0].mxu0 %v730
        %v1824 = vpop.f32.mrb[0].mxu0
        %v1825 = vadd.f32 %v1552, %v1824
        %v1826 = vpop.f32.mrb[0].mxu0
        %v1827 = vpop.f32.mrb[0].mxu0
        %v1828 = vadd.f32 %v1555, %v1827
        %v1829 = vpop.f32.mrb[0].mxu0
        %1830 = vmatprep.mubr.bf16.mxu0 0
        %1831 = vmatmul.mubr.bf16.gmra.mrb[0].mxu0 %v731
        %v1832 = vpop.f32.mrb[0].mxu0
        %v1833 = vadd.f32 %v1560, %v1832
        %v1834 = vpop.f32.mrb[0].mxu0
        %v1835 = vpop.f32.mrb[0].mxu0
        %v1836 = vadd.f32 %v1563, %v1835
        %v1837 = vpop.f32.mrb[0].mxu0
        %1838 = vmatprep.mubr.bf16.mxu0 0
        %1839 = vmatmul.mubr.bf16.gmra.mrb[0].mxu0 %v732
        %v1840 = vpop.f32.mrb[0].mxu0
        %v1841 = vadd.f32 %v1568, %v1840
        %v1842 = vpop.f32.mrb[0].mxu0
        %v1843 = vpop.f32.mrb[0].mxu0
        %v1844 = vadd.f32 %v1571, %v1843
        %v1845 = vpop.f32.mrb[0].mxu0
        %1846 = vmatprep.mubr.bf16.mxu0 0
        %1847 = vmatmul.mubr.bf16.gmra.mrb[0].mxu0 %v733
        %v1848 = vpop.f32.mrb[0].mxu0
        %v1849 = vadd.f32 %v1576, %v1848
        %v1850 = vpop.f32.mrb[0].mxu0
        %v1851 = vpop.f32.mrb[0].mxu0
        %v1852 = vadd.f32 %v1579, %v1851
        %v1853 = vpop.f32.mrb[0].mxu0
        %1854 = vmatprep.mubr.bf16.mxu0 0
        %1855 = vmatmul.mubr.bf16.gmra.mrb[0].mxu0 %v734
        %v1856 = vpop.f32.mrb[0].mxu0
        %v1857 = vadd.f32 %v1584, %v1856
        %v1858 = vpop.f32.mrb[0].mxu0
        %v1859 = vpop.f32.mrb[0].mxu0
        %v1860 = vadd.f32 %v1587, %v1859
        %v1861 = vpop.f32.mrb[0].mxu0
        %1862 = vmatprep.mubr.bf16.mxu0 0
        %1863 = vmatmul.mubr.bf16.gmra.mrb[0].mxu0 %v735
        %v1864 = vpop.f32.mrb[0].mxu0
        %v1865 = vadd.f32 %v1592, %v1864
        %v1866 = vpop.f32.mrb[0].mxu0
        %v1867 = vpop.f32.mrb[0].mxu0
        %v1868 = vadd.f32 %v1595, %v1867
        %v1869 = vpop.f32.mrb[0].mxu0
        %1870 = vmatprep.mubr.bf16.mxu0 0
        %1871 = vmatmul.mubr.bf16.gmra.mrb[0].mxu0 %v736
        %v1872 = vpop.f32.mrb[0].mxu0
        %v1873 = vadd.f32 %v1600, %v1872
        %v1874 = vpop.f32.mrb[0].mxu0
        %v1875 = vpop.f32.mrb[0].mxu0
        %v1876 = vadd.f32 %v1603, %v1875
        %v1877 = vpop.f32.mrb[0].mxu0
        %1878 = vmatprep.mubr.bf16.mxu0 0
        %1879 = vmatmul.mubr.bf16.gmra.mrb[0].mxu0 %v737
        %v1880 = vpop.f32.mrb[0].mxu0
        %v1881 = vadd.f32 %v1608, %v1880
        %v1882 = vpop.f32.mrb[0].mxu0
        %v1883 = vpop.f32.mrb[0].mxu0
        %v1884 = vadd.f32 %v1611, %v1883
        %v1885 = vpop.f32.mrb[0].mxu0
        %1886 = vmatprep.mubr.bf16.mxu0 0
        %1887 = vmatmul.mubr.bf16.gmra.mrb[0].mxu0 %v738
        %v1888 = vpop.f32.mrb[0].mxu0
        %v1889 = vadd.f32 %v1616, %v1888
        %v1890 = vpop.f32.mrb[0].mxu0
        %v1891 = vpop.f32.mrb[0].mxu0
        %v1892 = vadd.f32 %v1619, %v1891
        %v1893 = vpop.f32.mrb[0].mxu0
        %1894 = vmatprep.mubr.bf16.mxu0 0
        %1895 = vmatmul.mubr.bf16.gmra.mrb[0].mxu0 %v739
        %v1896 = vpop.f32.mrb[0].mxu0
        %v1897 = vadd.f32 %v1624, %v1896
        %v1898 = vpop.f32.mrb[0].mxu0
        %v1899 = vpop.f32.mrb[0].mxu0
        %v1900 = vadd.f32 %v1627, %v1899
        %v1901 = vpop.f32.mrb[0].mxu0
        %1902 = vmatprep.mubr.bf16.mxu0 0
        %1903 = vmatmul.mubr.bf16.gmra.mrb[0].mxu0 %v740
        %v1904 = vpop.f32.mrb[0].mxu0
        %v1905 = vadd.f32 %v1632, %v1904
        %v1906 = vpop.f32.mrb[0].mxu0
        %v1907 = vpop.f32.mrb[0].mxu0
        %v1908 = vadd.f32 %v1635, %v1907
        %v1909 = vpop.f32.mrb[0].mxu0
        %1910 = vmatprep.mubr.bf16.mxu0 0
        %1911 = vmatmul.mubr.bf16.gmra.mrb[0].mxu0 %v741
        %v1912 = vpop.f32.mrb[0].mxu0
        %v1913 = vadd.f32 %v1640, %v1912
        %v1914 = vpop.f32.mrb[0].mxu0
        %v1915 = vpop.f32.mrb[0].mxu0
        %v1916 = vadd.f32 %v1643, %v1915
        %v1917 = vpop.f32.mrb[0].mxu0
        %1918 = vmatprep.mubr.bf16.mxu0 0
        %1919 = vmatmul.mubr.bf16.gmra.mrb[0].mxu0 %v742
        %v1920 = vpop.f32.mrb[0].mxu0
        %v1921 = vadd.f32 %v1648, %v1920
        %v1922 = vpop.f32.mrb[0].mxu0
        %v1923 = vpop.f32.mrb[0].mxu0
        %v1924 = vadd.f32 %v1651, %v1923
        %v1925 = vpop.f32.mrb[0].mxu0
        %1926 = vmatprep.mubr.bf16.mxu0 0
        %1927 = vmatmul.mubr.bf16.gmra.mrb[0].mxu0 %v743
        %v1928 = vpop.f32.mrb[0].mxu0
        %v1929 = vadd.f32 %v1656, %v1928
        %v1930 = vpop.f32.mrb[0].mxu0
        %v1931 = vpop.f32.mrb[0].mxu0
        %v1932 = vadd.f32 %v1659, %v1931
        %v1933 = vpop.f32.mrb[0].mxu0
        %1934 = vmatprep.mubr.bf16.mxu0 0
        %1935 = vmatmul.mubr.bf16.gmra.mrb[0].mxu0 %v744
        %v1936 = vpop.f32.mrb[0].mxu0
        %v1937 = vadd.f32 %v1664, %v1936
        %v1938 = vpop.f32.mrb[0].mxu0
        %v1939 = vpop.f32.mrb[0].mxu0
        %v1940 = vadd.f32 %v1667, %v1939
        %v1941 = vpop.f32.mrb[0].mxu0
        %1942 = vmatprep.mubr.bf16.mxu0 0
        %1943 = vmatmul.mubr.bf16.gmra.mrb[0].mxu0 %v745
        %v1944 = vpop.f32.mrb[0].mxu0
        %v1945 = vadd.f32 %v1672, %v1944
        %v1946 = vpop.f32.mrb[0].mxu0
        %v1947 = vpop.f32.mrb[0].mxu0
        %v1948 = vadd.f32 %v1675, %v1947
        %v1949 = vpop.f32.mrb[0].mxu0
        %1950 = vmatprep.mubr.bf16.mxu0 0
        %1951 = vmatmul.mubr.bf16.gmra.mrb[0].mxu0 %v746
        %v1952 = vpop.f32.mrb[0].mxu0
        %v1953 = vadd.f32 %v1680, %v1952
        %v1954 = vpop.f32.mrb[0].mxu0
        %v1955 = vpop.f32.mrb[0].mxu0
        %v1956 = vadd.f32 %v1683, %v1955
        %v1957 = vpop.f32.mrb[0].mxu0
        %1958 = vdwg.mxu0
        %s1959 = scalar_lea.vmem [#allocation5], 448
        %v1960 = vld [vmem:[%s1959] sm:$0xf]
        %v1961 = vld [vmem:[%s1959 + $0x4] sm:$0xf]
        %v1962 = vld [vmem:[%s1959 + $0x8] sm:$0xf]
        %v1963 = vld [vmem:[%s1959 + $0xc] sm:$0xf]
        %v1964 = vld [vmem:[%s1959 + $0x10] sm:$0xf]
        %v1965 = vld [vmem:[%s1959 + $0x14] sm:$0xf]
        %v1966 = vld [vmem:[%s1959 + $0x18] sm:$0xf]
        %v1967 = vld [vmem:[%s1959 + $0x1c] sm:$0xf]
        %v1968 = vld [vmem:[%s1959 + $0x20] sm:$0xf]
        %v1969 = vld [vmem:[%s1959 + $0x24] sm:$0xf]
        %v1970 = vld [vmem:[%s1959 + $0x28] sm:$0xf]
        %v1971 = vld [vmem:[%s1959 + $0x2c] sm:$0xf]
        %v1972 = vld [vmem:[%s1959 + $0x30] sm:$0xf]
        %v1973 = vld [vmem:[%s1959 + $0x34] sm:$0xf]
        %v1974 = vld [vmem:[%s1959 + $0x38] sm:$0xf]
        %v1975 = vld [vmem:[%s1959 + $0x3c] sm:$0xf]
        %v1992 = vunpack.c.l.b16 %v1960
        %v1993 = vunpack.c.l.b16 %v1961
        %v1994 = vunpack.c.l.b16 %v1962
        %v1995 = vunpack.c.l.b16 %v1963
        %v1996 = vunpack.c.l.b16 %v1964
        %v1997 = vunpack.c.l.b16 %v1965
        %v1998 = vunpack.c.l.b16 %v1966
        %v1999 = vunpack.c.l.b16 %v1967
        %v2000 = vunpack.c.l.b16 %v1968
        %v2001 = vunpack.c.l.b16 %v1969
        %v2002 = vunpack.c.l.b16 %v1970
        %v2003 = vunpack.c.l.b16 %v1971
        %v2004 = vunpack.c.l.b16 %v1972
        %v2005 = vunpack.c.l.b16 %v1973
        %v2006 = vunpack.c.l.b16 %v1974
        %v2007 = vunpack.c.l.b16 %v1975
        %v2008 = vpack.c.b16 %v1993, %v1992
        %v2009 = vpack.c.b16 %v1995, %v1994
        %v2010 = vpack.c.b16 %v1997, %v1996
        %v2011 = vpack.c.b16 %v1999, %v1998
        %v2012 = vpack.c.b16 %v2001, %v2000
        %v2013 = vpack.c.b16 %v2003, %v2002
        %v2014 = vpack.c.b16 %v2005, %v2004
        %v2015 = vpack.c.b16 %v2007, %v2006
        %2024 = vmatprep.subr.bf16.mxu0 0
        %2025 = vmatpush1.bf16.msra.mxu0 %v2008
        %2026 = vmatprep.subr.bf16.mxu0 0
        %2027 = vmatpush1.bf16.msra.mxu0 %v2009
        %2028 = vmatprep.subr.bf16.mxu0 0
        %2029 = vmatpush1.bf16.msra.mxu0 %v2010
        %2030 = vmatprep.subr.bf16.mxu0 0
        %2031 = vmatpush1.bf16.msra.mxu0 %v2011
        %2032 = vmatprep.subr.bf16.mxu0 0
        %2033 = vmatpush1.bf16.msra.mxu0 %v2012
        %2034 = vmatprep.subr.bf16.mxu0 0
        %2035 = vmatpush1.bf16.msra.mxu0 %v2013
        %2036 = vmatprep.subr.bf16.mxu0 0
        %2037 = vmatpush1.bf16.msra.mxu0 %v2014
        %2038 = vmatprep.subr.bf16.mxu0 0
        %2039 = vmatpush1.bf16.msra.mxu0 %v2015
        %2040 = vmatprep.subr.bf16.mxu0 0
        %2041 = vmatpush1.bf16.msra.mxu0 0
        %2042 = vmatprep.subr.bf16.mxu0 0
        %2043 = vmatpush1.bf16.msra.mxu0 0
        %2044 = vmatprep.subr.bf16.mxu0 0
        %2045 = vmatpush1.bf16.msra.mxu0 0
        %2046 = vmatprep.subr.bf16.mxu0 0
        %2047 = vmatpush1.bf16.msra.mxu0 0
        %2048 = vmatprep.subr.bf16.mxu0 0
        %2049 = vmatpush1.bf16.msra.mxu0 0
        %2050 = vmatprep.subr.bf16.mxu0 0
        %2051 = vmatpush1.bf16.msra.mxu0 0
        %2052 = vmatprep.subr.bf16.mxu0 0
        %2053 = vmatpush1.bf16.msra.mxu0 0
        %2054 = vmatprep.subr.bf16.mxu0 0
        %2055 = vmatpush1.bf16.msra.mxu0 0
        %2056 = vmatprep.mubr.bf16.mxu0 0
        %2057 = vmatmul.mubr.bf16.gmra.mrb[0].mxu0 %v726
        %v2058 = vpop.f32.mrb[0].mxu0
        %v2059 = vadd.f32 0.0, %v2058
        %v2060 = vpop.f32.mrb[0].mxu0
        %v2061 = vpop.f32.mrb[0].mxu0
        %v2062 = vadd.f32 0.0, %v2061
        %v2063 = vpop.f32.mrb[0].mxu0
        %2064 = vmatprep.mubr.bf16.mxu0 0
        %2065 = vmatmul.mubr.bf16.gmra.mrb[0].mxu0 %v727
        %v2066 = vpop.f32.mrb[0].mxu0
        %v2067 = vadd.f32 0.0, %v2066
        %v2068 = vpop.f32.mrb[0].mxu0
        %v2069 = vpop.f32.mrb[0].mxu0
        %v2070 = vadd.f32 0.0, %v2069
        %v2071 = vpop.f32.mrb[0].mxu0
        %2072 = vmatprep.mubr.bf16.mxu0 0
        %2073 = vmatmul.mubr.bf16.gmra.mrb[0].mxu0 %v728
        %v2074 = vpop.f32.mrb[0].mxu0
        %v2075 = vadd.f32 0.0, %v2074
        %v2076 = vpop.f32.mrb[0].mxu0
        %v2077 = vpop.f32.mrb[0].mxu0
        %v2078 = vadd.f32 0.0, %v2077
        %v2079 = vpop.f32.mrb[0].mxu0
        %2080 = vmatprep.mubr.bf16.mxu0 0
        %2081 = vmatmul.mubr.bf16.gmra.mrb[0].mxu0 %v729
        %v2082 = vpop.f32.mrb[0].mxu0
        %v2083 = vadd.f32 0.0, %v2082
        %v2084 = vpop.f32.mrb[0].mxu0
        %v2085 = vpop.f32.mrb[0].mxu0
        %v2086 = vadd.f32 0.0, %v2085
        %v2087 = vpop.f32.mrb[0].mxu0
        %2088 = vmatprep.mubr.bf16.mxu0 0
        %2089 = vmatmul.mubr.bf16.gmra.mrb[0].mxu0 %v730
        %v2090 = vpop.f32.mrb[0].mxu0
        %v2091 = vadd.f32 0.0, %v2090
        %v2092 = vpop.f32.mrb[0].mxu0
        %v2093 = vpop.f32.mrb[0].mxu0
        %v2094 = vadd.f32 0.0, %v2093
        %v2095 = vpop.f32.mrb[0].mxu0
        %2096 = vmatprep.mubr.bf16.mxu0 0
        %2097 = vmatmul.mubr.bf16.gmra.mrb[0].mxu0 %v731
        %v2098 = vpop.f32.mrb[0].mxu0
        %v2099 = vadd.f32 0.0, %v2098
        %v2100 = vpop.f32.mrb[0].mxu0
        %v2101 = vpop.f32.mrb[0].mxu0
        %v2102 = vadd.f32 0.0, %v2101
        %v2103 = vpop.f32.mrb[0].mxu0
        %2104 = vmatprep.mubr.bf16.mxu0 0
        %2105 = vmatmul.mubr.bf16.gmra.mrb[0].mxu0 %v732
        %v2106 = vpop.f32.mrb[0].mxu0
        %v2107 = vadd.f32 0.0, %v2106
        %v2108 = vpop.f32.mrb[0].mxu0
        %v2109 = vpop.f32.mrb[0].mxu0
        %v2110 = vadd.f32 0.0, %v2109
        %v2111 = vpop.f32.mrb[0].mxu0
        %2112 = vmatprep.mubr.bf16.mxu0 0
        %2113 = vmatmul.mubr.bf16.gmra.mrb[0].mxu0 %v733
        %v2114 = vpop.f32.mrb[0].mxu0
        %v2115 = vadd.f32 0.0, %v2114
        %v2116 = vpop.f32.mrb[0].mxu0
        %v2117 = vpop.f32.mrb[0].mxu0
        %v2118 = vadd.f32 0.0, %v2117
        %v2119 = vpop.f32.mrb[0].mxu0
        %2120 = vmatprep.mubr.bf16.mxu0 0
        %2121 = vmatmul.mubr.bf16.gmra.mrb[0].mxu0 %v734
        %v2122 = vpop.f32.mrb[0].mxu0
        %v2123 = vadd.f32 0.0, %v2122
        %v2124 = vpop.f32.mrb[0].mxu0
        %v2125 = vpop.f32.mrb[0].mxu0
        %v2126 = vadd.f32 0.0, %v2125
        %v2127 = vpop.f32.mrb[0].mxu0
        %2128 = vmatprep.mubr.bf16.mxu0 0
        %2129 = vmatmul.mubr.bf16.gmra.mrb[0].mxu0 %v735
        %v2130 = vpop.f32.mrb[0].mxu0
        %v2131 = vadd.f32 0.0, %v2130
        %v2132 = vpop.f32.mrb[0].mxu0
        %v2133 = vpop.f32.mrb[0].mxu0
        %v2134 = vadd.f32 0.0, %v2133
        %v2135 = vpop.f32.mrb[0].mxu0
        %2136 = vmatprep.mubr.bf16.mxu0 0
        %2137 = vmatmul.mubr.bf16.gmra.mrb[0].mxu0 %v736
        %v2138 = vpop.f32.mrb[0].mxu0
        %v2139 = vadd.f32 0.0, %v2138
        %v2140 = vpop.f32.mrb[0].mxu0
        %v2141 = vpop.f32.mrb[0].mxu0
        %v2142 = vadd.f32 0.0, %v2141
        %v2143 = vpop.f32.mrb[0].mxu0
        %2144 = vmatprep.mubr.bf16.mxu0 0
        %2145 = vmatmul.mubr.bf16.gmra.mrb[0].mxu0 %v737
        %v2146 = vpop.f32.mrb[0].mxu0
        %v2147 = vadd.f32 0.0, %v2146
        %v2148 = vpop.f32.mrb[0].mxu0
        %v2149 = vpop.f32.mrb[0].mxu0
        %v2150 = vadd.f32 0.0, %v2149
        %v2151 = vpop.f32.mrb[0].mxu0
        %2152 = vmatprep.mubr.bf16.mxu0 0
        %2153 = vmatmul.mubr.bf16.gmra.mrb[0].mxu0 %v738
        %v2154 = vpop.f32.mrb[0].mxu0
        %v2155 = vadd.f32 0.0, %v2154
        %v2156 = vpop.f32.mrb[0].mxu0
        %v2157 = vpop.f32.mrb[0].mxu0
        %v2158 = vadd.f32 0.0, %v2157
        %v2159 = vpop.f32.mrb[0].mxu0
        %2160 = vmatprep.mubr.bf16.mxu0 0
        %2161 = vmatmul.mubr.bf16.gmra.mrb[0].mxu0 %v739
        %v2162 = vpop.f32.mrb[0].mxu0
        %v2163 = vadd.f32 0.0, %v2162
        %v2164 = vpop.f32.mrb[0].mxu0
        %v2165 = vpop.f32.mrb[0].mxu0
        %v2166 = vadd.f32 0.0, %v2165
        %v2167 = vpop.f32.mrb[0].mxu0
        %2168 = vmatprep.mubr.bf16.mxu0 0
        %2169 = vmatmul.mubr.bf16.gmra.mrb[0].mxu0 %v740
        %v2170 = vpop.f32.mrb[0].mxu0
        %v2171 = vadd.f32 0.0, %v2170
        %v2172 = vpop.f32.mrb[0].mxu0
        %v2173 = vpop.f32.mrb[0].mxu0
        %v2174 = vadd.f32 0.0, %v2173
        %v2175 = vpop.f32.mrb[0].mxu0
        %2176 = vmatprep.mubr.bf16.mxu0 0
        %2177 = vmatmul.mubr.bf16.gmra.mrb[0].mxu0 %v741
        %v2178 = vpop.f32.mrb[0].mxu0
        %v2179 = vadd.f32 0.0, %v2178
        %v2180 = vpop.f32.mrb[0].mxu0
        %v2181 = vpop.f32.mrb[0].mxu0
        %v2182 = vadd.f32 0.0, %v2181
        %v2183 = vpop.f32.mrb[0].mxu0
        %2184 = vmatprep.mubr.bf16.mxu0 0
        %2185 = vmatmul.mubr.bf16.gmra.mrb[0].mxu0 %v742
        %v2186 = vpop.f32.mrb[0].mxu0
        %v2187 = vadd.f32 0.0, %v2186
        %v2188 = vpop.f32.mrb[0].mxu0
        %v2189 = vpop.f32.mrb[0].mxu0
        %v2190 = vadd.f32 0.0, %v2189
        %v2191 = vpop.f32.mrb[0].mxu0
        %2192 = vmatprep.mubr.bf16.mxu0 0
        %2193 = vmatmul.mubr.bf16.gmra.mrb[0].mxu0 %v743
        %v2194 = vpop.f32.mrb[0].mxu0
        %v2195 = vadd.f32 0.0, %v2194
        %v2196 = vpop.f32.mrb[0].mxu0
        %v2197 = vpop.f32.mrb[0].mxu0
        %v2198 = vadd.f32 0.0, %v2197
        %v2199 = vpop.f32.mrb[0].mxu0
        %2200 = vmatprep.mubr.bf16.mxu0 0
        %2201 = vmatmul.mubr.bf16.gmra.mrb[0].mxu0 %v744
        %v2202 = vpop.f32.mrb[0].mxu0
        %v2203 = vadd.f32 0.0, %v2202
        %v2204 = vpop.f32.mrb[0].mxu0
        %v2205 = vpop.f32.mrb[0].mxu0
        %v2206 = vadd.f32 0.0, %v2205
        %v2207 = vpop.f32.mrb[0].mxu0
        %2208 = vmatprep.mubr.bf16.mxu0 0
        %2209 = vmatmul.mubr.bf16.gmra.mrb[0].mxu0 %v745
        %v2210 = vpop.f32.mrb[0].mxu0
        %v2211 = vadd.f32 0.0, %v2210
        %v2212 = vpop.f32.mrb[0].mxu0
        %v2213 = vpop.f32.mrb[0].mxu0
        %v2214 = vadd.f32 0.0, %v2213
        %v2215 = vpop.f32.mrb[0].mxu0
        %2216 = vmatprep.mubr.bf16.mxu0 0
        %2217 = vmatmul.mubr.bf16.gmra.mrb[0].mxu0 %v746
        %v2218 = vpop.f32.mrb[0].mxu0
        %v2219 = vadd.f32 0.0, %v2218
        %v2220 = vpop.f32.mrb[0].mxu0
        %v2221 = vpop.f32.mrb[0].mxu0
        %v2222 = vadd.f32 0.0, %v2221
        %v2223 = vpop.f32.mrb[0].mxu0
        %2224 = vmatprep.mubr.bf16.mxu0 0
        %2225 = vmatmul.mubr.bf16.gmra.mrb[0].mxu0 %v1045
        %v2226 = vpop.f32.mrb[0].mxu0
        %v2227 = vadd.f32 0.0, %v2226
        %v2228 = vpop.f32.mrb[0].mxu0
        %v2229 = vpop.f32.mrb[0].mxu0
        %v2230 = vadd.f32 0.0, %v2229
        %v2231 = vpop.f32.mrb[0].mxu0
        %2232 = vmatprep.mubr.bf16.mxu0 0
        %2233 = vmatmul.mubr.bf16.gmra.mrb[0].mxu0 %v1046
        %v2234 = vpop.f32.mrb[0].mxu0
        %v2235 = vadd.f32 0.0, %v2234
        %v2236 = vpop.f32.mrb[0].mxu0
        %v2237 = vpop.f32.mrb[0].mxu0
        %v2238 = vadd.f32 0.0, %v2237
        %v2239 = vpop.f32.mrb[0].mxu0
        %2240 = vmatprep.mubr.bf16.mxu0 0
        %2241 = vmatmul.mubr.bf16.gmra.mrb[0].mxu0 %v1047
        %v2242 = vpop.f32.mrb[0].mxu0
        %v2243 = vadd.f32 0.0, %v2242
        %v2244 = vpop.f32.mrb[0].mxu0
        %v2245 = vpop.f32.mrb[0].mxu0
        %v2246 = vadd.f32 0.0, %v2245
        %v2247 = vpop.f32.mrb[0].mxu0
        %2248 = vdwg.mxu0
        %v2249 = vadd.f32 %v1769, %v2059
        %v2250 = vadd.f32 %v1772, %v2062
        %v2251 = vadd.f32 %v1777, %v2067
        %v2252 = vadd.f32 %v1780, %v2070
        %v2253 = vadd.f32 %v1785, %v2075
        %v2254 = vadd.f32 %v1788, %v2078
        %v2255 = vadd.f32 %v1793, %v2083
        %v2256 = vadd.f32 %v1796, %v2086
        %v2257 = vadd.f32 %v1801, %v2091
        %v2258 = vadd.f32 %v1804, %v2094
        %v2259 = vadd.f32 %v1809, %v2099
        %v2260 = vadd.f32 %v1812, %v2102
        %v2261 = vadd.f32 %v1817, %v2107
        %v2262 = vadd.f32 %v1820, %v2110
        %v2263 = vadd.f32 %v1825, %v2115
        %v2264 = vadd.f32 %v1828, %v2118
        %v2265 = vadd.f32 %v1833, %v2123
        %v2266 = vadd.f32 %v1836, %v2126
        %v2267 = vadd.f32 %v1841, %v2131
        %v2268 = vadd.f32 %v1844, %v2134
        %v2269 = vadd.f32 %v1849, %v2139
        %v2270 = vadd.f32 %v1852, %v2142
        %v2271 = vadd.f32 %v1857, %v2147
        %v2272 = vadd.f32 %v1860, %v2150
        %v2273 = vadd.f32 %v1865, %v2155
        %v2274 = vadd.f32 %v1868, %v2158
        %v2275 = vadd.f32 %v1873, %v2163
        %v2276 = vadd.f32 %v1876, %v2166
        %v2277 = vadd.f32 %v1881, %v2171
        %v2278 = vadd.f32 %v1884, %v2174
        %v2279 = vadd.f32 %v1889, %v2179
        %v2280 = vadd.f32 %v1892, %v2182
        %v2281 = vadd.f32 %v1897, %v2187
        %v2282 = vadd.f32 %v1900, %v2190
        %v2283 = vadd.f32 %v1905, %v2195
        %v2284 = vadd.f32 %v1908, %v2198
        %v2285 = vadd.f32 %v1913, %v2203
        %v2286 = vadd.f32 %v1916, %v2206
        %v2287 = vadd.f32 %v1921, %v2211
        %v2288 = vadd.f32 %v1924, %v2214
        %v2289 = vadd.f32 %v1929, %v2219
        %v2290 = vadd.f32 %v1932, %v2222
        %v2291 = vadd.f32 %v1937, %v2227
        %v2292 = vadd.f32 %v1940, %v2230
        %v2293 = vadd.f32 %v1945, %v2235
        %v2294 = vadd.f32 %v1948, %v2238
        %v2295 = vadd.f32 %v1953, %v2243
        %v2296 = vadd.f32 %v1956, %v2246
        %v2297 = vadd.f32 %v2249, %v208
        %v2298 = vadd.f32 %v2250, %v209
        %v2299 = vadd.f32 %v2251, %v210
        %v2300 = vadd.f32 %v2252, %v211
        %v2301 = vadd.f32 %v2253, %v212
        %v2302 = vadd.f32 %v2254, %v213
        %v2303 = vadd.f32 %v2255, %v214
        %v2304 = vadd.f32 %v2256, %v215
        %v2305 = vadd.f32 %v2257, %v216
        %v2306 = vadd.f32 %v2258, %v217
        %v2307 = vadd.f32 %v2259, %v218
        %v2308 = vadd.f32 %v2260, %v219
        %v2309 = vadd.f32 %v2261, %v220
        %v2310 = vadd.f32 %v2262, %v221
        %v2311 = vadd.f32 %v2263, %v222
        %v2312 = vadd.f32 %v2264, %v223
        %v2313 = vadd.f32 %v2265, %v224
        %v2314 = vadd.f32 %v2266, %v225
        %v2315 = vadd.f32 %v2267, %v226
        %v2316 = vadd.f32 %v2268, %v227
        %v2317 = vadd.f32 %v2269, %v228
        %v2318 = vadd.f32 %v2270, %v229
        %v2319 = vadd.f32 %v2271, %v230
        %v2320 = vadd.f32 %v2272, %v231
        %v2321 = vadd.f32 %v2273, %v232
        %v2322 = vadd.f32 %v2274, %v233
        %v2323 = vadd.f32 %v2275, %v234
        %v2324 = vadd.f32 %v2276, %v235
        %v2325 = vadd.f32 %v2277, %v236
        %v2326 = vadd.f32 %v2278, %v237
        %v2327 = vadd.f32 %v2279, %v238
        %v2328 = vadd.f32 %v2280, %v239
        %v2329 = vadd.f32 %v2281, %v240
        %v2330 = vadd.f32 %v2282, %v241
        %v2331 = vadd.f32 %v2283, %v242
        %v2332 = vadd.f32 %v2284, %v243
        %v2333 = vadd.f32 %v2285, %v244
        %v2334 = vadd.f32 %v2286, %v245
        %v2335 = vadd.f32 %v2287, %v246
        %v2336 = vadd.f32 %v2288, %v247
        %v2337 = vadd.f32 %v2289, %v248
        %v2338 = vadd.f32 %v2290, %v249
        %v2339 = vadd.f32 %v2291, %v250
        %v2340 = vadd.f32 %v2292, %v251
        %v2341 = vadd.f32 %v2293, %v252
        %v2342 = vadd.f32 %v2294, %v253
        %v2343 = vadd.f32 %v2295, %v254
        %v2344 = vadd.f32 %v2296, %v255
        %vm2393 = vcmask 1046528
        %v2394 = vrot.slane %v2297, 1
        %v2395 = vrot.slane %v2298, 1
        %v2396 = vsel %vm2393, %v2394, %v2395
        %v2397 = vrot.slane %v2299, 1
        %v2398 = vsel %vm2393, %v2395, %v2397
        %v2399 = vrot.slane %v2300, 1
        %v2400 = vrot.slane %v2301, 1
        %v2401 = vsel %vm2393, %v2399, %v2400
        %v2402 = vrot.slane %v2302, 1
        %v2403 = vsel %vm2393, %v2400, %v2402
        %v2404 = vrot.slane %v2303, 1
        %v2405 = vrot.slane %v2304, 1
        %v2406 = vsel %vm2393, %v2404, %v2405
        %v2407 = vrot.slane %v2305, 1
        %v2408 = vsel %vm2393, %v2405, %v2407
        %v2409 = vrot.slane %v2306, 1
        %v2410 = vrot.slane %v2307, 1
        %v2411 = vsel %vm2393, %v2409, %v2410
        %v2412 = vrot.slane %v2308, 1
        %v2413 = vsel %vm2393, %v2410, %v2412
        %v2414 = vrot.slane %v2309, 1
        %v2415 = vrot.slane %v2310, 1
        %v2416 = vsel %vm2393, %v2414, %v2415
        %v2417 = vrot.slane %v2311, 1
        %v2418 = vsel %vm2393, %v2415, %v2417
        %v2419 = vrot.slane %v2312, 1
        %v2420 = vrot.slane %v2313, 1
        %v2421 = vsel %vm2393, %v2419, %v2420
        %v2422 = vrot.slane %v2314, 1
        %v2423 = vsel %vm2393, %v2420, %v2422
        %v2424 = vrot.slane %v2315, 1
        %v2425 = vrot.slane %v2316, 1
        %v2426 = vsel %vm2393, %v2424, %v2425
        %v2427 = vrot.slane %v2317, 1
        %v2428 = vsel %vm2393, %v2425, %v2427
        %v2429 = vrot.slane %v2318, 1
        %v2430 = vrot.slane %v2319, 1
        %v2431 = vsel %vm2393, %v2429, %v2430
        %v2432 = vrot.slane %v2320, 1
        %v2433 = vsel %vm2393, %v2430, %v2432
        %v2434 = vrot.slane %v2321, 1
        %v2435 = vrot.slane %v2322, 1
        %v2436 = vsel %vm2393, %v2434, %v2435
        %v2437 = vrot.slane %v2323, 1
        %v2438 = vsel %vm2393, %v2435, %v2437
        %v2439 = vrot.slane %v2324, 1
        %v2440 = vrot.slane %v2325, 1
        %v2441 = vsel %vm2393, %v2439, %v2440
        %v2442 = vrot.slane %v2326, 1
        %v2443 = vsel %vm2393, %v2440, %v2442
        %v2444 = vrot.slane %v2327, 1
        %v2445 = vrot.slane %v2328, 1
        %v2446 = vsel %vm2393, %v2444, %v2445
        %v2447 = vrot.slane %v2329, 1
        %v2448 = vsel %vm2393, %v2445, %v2447
        %v2449 = vrot.slane %v2330, 1
        %v2450 = vrot.slane %v2331, 1
        %v2451 = vsel %vm2393, %v2449, %v2450
        %v2452 = vrot.slane %v2332, 1
        %v2453 = vsel %vm2393, %v2450, %v2452
        %v2454 = vrot.slane %v2333, 1
        %v2455 = vrot.slane %v2334, 1
        %v2456 = vsel %vm2393, %v2454, %v2455
        %v2457 = vrot.slane %v2335, 1
        %v2458 = vsel %vm2393, %v2455, %v2457
        %v2459 = vrot.slane %v2336, 1
        %v2460 = vrot.slane %v2337, 1
        %v2461 = vsel %vm2393, %v2459, %v2460
        %v2462 = vrot.slane %v2338, 1
        %v2463 = vsel %vm2393, %v2460, %v2462
        %v2464 = vrot.slane %v2339, 1
        %v2465 = vrot.slane %v2340, 1
        %v2466 = vsel %vm2393, %v2464, %v2465
        %v2467 = vrot.slane %v2341, 1
        %v2468 = vsel %vm2393, %v2465, %v2467
        %v2469 = vrot.slane %v2342, 1
        %v2470 = vrot.slane %v2343, 1
        %v2471 = vsel %vm2393, %v2469, %v2470
        %v2472 = vrot.slane %v2344, 1
        %v2473 = vsel %vm2393, %v2470, %v2472
        %v2506 = vadd.f32 %v1347, %v2396
        %v2507 = vadd.f32 %v1348, %v2398
        %v2508 = vadd.f32 %v1349, %v2401
        %v2509 = vadd.f32 %v1350, %v2403
        %v2510 = vadd.f32 %v1351, %v2406
        %v2511 = vadd.f32 %v1352, %v2408
        %v2512 = vadd.f32 %v1353, %v2411
        %v2513 = vadd.f32 %v1354, %v2413
        %v2514 = vadd.f32 %v1355, %v2416
        %v2515 = vadd.f32 %v1356, %v2418
        %v2516 = vadd.f32 %v1357, %v2421
        %v2517 = vadd.f32 %v1358, %v2423
        %v2518 = vadd.f32 %v1359, %v2426
        %v2519 = vadd.f32 %v1360, %v2428
        %v2520 = vadd.f32 %v1361, %v2431
        %v2521 = vadd.f32 %v1362, %v2433
        %v2522 = vadd.f32 %v1363, %v2436
        %v2523 = vadd.f32 %v1364, %v2438
        %v2524 = vadd.f32 %v1365, %v2441
        %v2525 = vadd.f32 %v1366, %v2443
        %v2526 = vadd.f32 %v1367, %v2446
        %v2527 = vadd.f32 %v1368, %v2448
        %v2528 = vadd.f32 %v1369, %v2451
        %v2529 = vadd.f32 %v1370, %v2453
        %v2530 = vadd.f32 %v1371, %v2456
        %v2531 = vadd.f32 %v1372, %v2458
        %v2532 = vadd.f32 %v1373, %v2461
        %v2533 = vadd.f32 %v1374, %v2463
        %v2534 = vadd.f32 %v1375, %v2466
        %v2535 = vadd.f32 %v1376, %v2468
        %v2536 = vadd.f32 %v1377, %v2471
        %v2537 = vadd.f32 %v1378, %v2473
        %s2538 = scalar_lea.vmem [#allocation5], 128
        %v2539 = vld [vmem:[%s2538] sm:$0xf]
        %v2540 = vld [vmem:[%s2538 + $0x4] sm:$0xf]
        %v2541 = vld [vmem:[%s2538 + $0x8] sm:$0xf]
        %v2542 = vld [vmem:[%s2538 + $0xc] sm:$0xf]
        %v2543 = vld [vmem:[%s2538 + $0x10] sm:$0xf]
        %v2544 = vld [vmem:[%s2538 + $0x14] sm:$0xf]
        %v2545 = vld [vmem:[%s2538 + $0x18] sm:$0xf]
        %v2546 = vld [vmem:[%s2538 + $0x1c] sm:$0xf]
        %v2547 = vld [vmem:[%s2538 + $0x20] sm:$0xf]
        %v2548 = vld [vmem:[%s2538 + $0x24] sm:$0xf]
        %v2549 = vld [vmem:[%s2538 + $0x28] sm:$0xf]
        %v2550 = vld [vmem:[%s2538 + $0x2c] sm:$0xf]
        %v2551 = vld [vmem:[%s2538 + $0x30] sm:$0xf]
        %v2552 = vld [vmem:[%s2538 + $0x34] sm:$0xf]
        %v2553 = vld [vmem:[%s2538 + $0x38] sm:$0xf]
        %v2554 = vld [vmem:[%s2538 + $0x3c] sm:$0xf]
        %s2555 = scalar_lea.vmem [#allocation5], 320
        %v2556 = vld [vmem:[%s2555] sm:$0xf]
        %v2557 = vld [vmem:[%s2555 + $0x4] sm:$0xf]
        %v2558 = vld [vmem:[%s2555 + $0x8] sm:$0xf]
        %v2559 = vld [vmem:[%s2555 + $0xc] sm:$0xf]
        %v2560 = vld [vmem:[%s2555 + $0x10] sm:$0xf]
        %v2561 = vld [vmem:[%s2555 + $0x14] sm:$0xf]
        %v2562 = vld [vmem:[%s2555 + $0x18] sm:$0xf]
        %v2563 = vld [vmem:[%s2555 + $0x1c] sm:$0xf]
        %v2564 = vld [vmem:[%s2555 + $0x20] sm:$0xf]
        %v2565 = vld [vmem:[%s2555 + $0x24] sm:$0xf]
        %v2566 = vld [vmem:[%s2555 + $0x28] sm:$0xf]
        %v2567 = vld [vmem:[%s2555 + $0x2c] sm:$0xf]
        %v2568 = vld [vmem:[%s2555 + $0x30] sm:$0xf]
        %v2569 = vld [vmem:[%s2555 + $0x34] sm:$0xf]
        %v2570 = vld [vmem:[%s2555 + $0x38] sm:$0xf]
        %v2571 = vld [vmem:[%s2555 + $0x3c] sm:$0xf]
        %v2588 = vunpack.c.l.b16 %v2556
        %v2589 = vunpack.c.l.b16 %v2557
        %v2590 = vunpack.c.l.b16 %v2558
        %v2591 = vunpack.c.l.b16 %v2559
        %v2592 = vunpack.c.l.b16 %v2560
        %v2593 = vunpack.c.l.b16 %v2561
        %v2594 = vunpack.c.l.b16 %v2562
        %v2595 = vunpack.c.l.b16 %v2563
        %v2596 = vunpack.c.l.b16 %v2564
        %v2597 = vunpack.c.l.b16 %v2565
        %v2598 = vunpack.c.l.b16 %v2566
        %v2599 = vunpack.c.l.b16 %v2567
        %v2600 = vunpack.c.l.b16 %v2568
        %v2601 = vunpack.c.l.b16 %v2569
        %v2602 = vunpack.c.l.b16 %v2570
        %v2603 = vunpack.c.l.b16 %v2571
        %v2604 = vpack.c.b16 %v2589, %v2588
        %v2605 = vpack.c.b16 %v2591, %v2590
        %v2606 = vpack.c.b16 %v2593, %v2592
        %v2607 = vpack.c.b16 %v2595, %v2594
        %v2608 = vpack.c.b16 %v2597, %v2596
        %v2609 = vpack.c.b16 %v2599, %v2598
        %v2610 = vpack.c.b16 %v2601, %v2600
        %v2611 = vpack.c.b16 %v2603, %v2602
        %2620 = vmatprep.subr.bf16.mxu0 0
        %2621 = vmatpush1.bf16.msra.mxu0 %v2604
        %2622 = vmatprep.subr.bf16.mxu0 0
        %2623 = vmatpush1.bf16.msra.mxu0 %v2605
        %2624 = vmatprep.subr.bf16.mxu0 0
        %2625 = vmatpush1.bf16.msra.mxu0 %v2606
        %2626 = vmatprep.subr.bf16.mxu0 0
        %2627 = vmatpush1.bf16.msra.mxu0 %v2607
        %2628 = vmatprep.subr.bf16.mxu0 0
        %2629 = vmatpush1.bf16.msra.mxu0 %v2608
        %2630 = vmatprep.subr.bf16.mxu0 0
        %2631 = vmatpush1.bf16.msra.mxu0 %v2609
        %2632 = vmatprep.subr.bf16.mxu0 0
        %2633 = vmatpush1.bf16.msra.mxu0 %v2610
        %2634 = vmatprep.subr.bf16.mxu0 0
        %2635 = vmatpush1.bf16.msra.mxu0 %v2611
        %2636 = vmatprep.subr.bf16.mxu0 0
        %2637 = vmatpush1.bf16.msra.mxu0 0
        %2638 = vmatprep.subr.bf16.mxu0 0
        %2639 = vmatpush1.bf16.msra.mxu0 0
        %2640 = vmatprep.subr.bf16.mxu0 0
        %2641 = vmatpush1.bf16.msra.mxu0 0
        %2642 = vmatprep.subr.bf16.mxu0 0
        %2643 = vmatpush1.bf16.msra.mxu0 0
        %2644 = vmatprep.subr.bf16.mxu0 0
        %2645 = vmatpush1.bf16.msra.mxu0 0
        %2646 = vmatprep.subr.bf16.mxu0 0
        %2647 = vmatpush1.bf16.msra.mxu0 0
        %2648 = vmatprep.subr.bf16.mxu0 0
        %2649 = vmatpush1.bf16.msra.mxu0 0
        %2650 = vmatprep.subr.bf16.mxu0 0
        %2651 = vmatpush1.bf16.msra.mxu0 0
        %2652 = vmatprep.mubr.bf16.mxu0 0
        %2653 = vmatmul.mubr.bf16.gmra.mrb[0].mxu0 %v418
        %v2654 = vpop.f32.mrb[0].mxu0
        %v2655 = vadd.f32 0.0, %v2654
        %v2656 = vpop.f32.mrb[0].mxu0
        %v2657 = vpop.f32.mrb[0].mxu0
        %v2658 = vadd.f32 0.0, %v2657
        %v2659 = vpop.f32.mrb[0].mxu0
        %2660 = vmatprep.mubr.bf16.mxu0 0
        %2661 = vmatmul.mubr.bf16.gmra.mrb[0].mxu0 %v419
        %v2662 = vpop.f32.mrb[0].mxu0
        %v2663 = vadd.f32 0.0, %v2662
        %v2664 = vpop.f32.mrb[0].mxu0
        %v2665 = vpop.f32.mrb[0].mxu0
        %v2666 = vadd.f32 0.0, %v2665
        %v2667 = vpop.f32.mrb[0].mxu0
        %2668 = vmatprep.mubr.bf16.mxu0 0
        %2669 = vmatmul.mubr.bf16.gmra.mrb[0].mxu0 %v420
        %v2670 = vpop.f32.mrb[0].mxu0
        %v2671 = vadd.f32 0.0, %v2670
        %v2672 = vpop.f32.mrb[0].mxu0
        %v2673 = vpop.f32.mrb[0].mxu0
        %v2674 = vadd.f32 0.0, %v2673
        %v2675 = vpop.f32.mrb[0].mxu0
        %2676 = vmatprep.mubr.bf16.mxu0 0
        %2677 = vmatmul.mubr.bf16.gmra.mrb[0].mxu0 %v421
        %v2678 = vpop.f32.mrb[0].mxu0
        %v2679 = vadd.f32 0.0, %v2678
        %v2680 = vpop.f32.mrb[0].mxu0
        %v2681 = vpop.f32.mrb[0].mxu0
        %v2682 = vadd.f32 0.0, %v2681
        %v2683 = vpop.f32.mrb[0].mxu0
        %2684 = vmatprep.mubr.bf16.mxu0 0
        %2685 = vmatmul.mubr.bf16.gmra.mrb[0].mxu0 %v422
        %v2686 = vpop.f32.mrb[0].mxu0
        %v2687 = vadd.f32 0.0, %v2686
        %v2688 = vpop.f32.mrb[0].mxu0
        %v2689 = vpop.f32.mrb[0].mxu0
        %v2690 = vadd.f32 0.0, %v2689
        %v2691 = vpop.f32.mrb[0].mxu0
        %2692 = vmatprep.mubr.bf16.mxu0 0
        %2693 = vmatmul.mubr.bf16.gmra.mrb[0].mxu0 %v423
        %v2694 = vpop.f32.mrb[0].mxu0
        %v2695 = vadd.f32 0.0, %v2694
        %v2696 = vpop.f32.mrb[0].mxu0
        %v2697 = vpop.f32.mrb[0].mxu0
        %v2698 = vadd.f32 0.0, %v2697
        %v2699 = vpop.f32.mrb[0].mxu0
        %2700 = vmatprep.mubr.bf16.mxu0 0
        %2701 = vmatmul.mubr.bf16.gmra.mrb[0].mxu0 %v424
        %v2702 = vpop.f32.mrb[0].mxu0
        %v2703 = vadd.f32 0.0, %v2702
        %v2704 = vpop.f32.mrb[0].mxu0
        %v2705 = vpop.f32.mrb[0].mxu0
        %v2706 = vadd.f32 0.0, %v2705
        %v2707 = vpop.f32.mrb[0].mxu0
        %2708 = vmatprep.mubr.bf16.mxu0 0
        %2709 = vmatmul.mubr.bf16.gmra.mrb[0].mxu0 %v425
        %v2710 = vpop.f32.mrb[0].mxu0
        %v2711 = vadd.f32 0.0, %v2710
        %v2712 = vpop.f32.mrb[0].mxu0
        %v2713 = vpop.f32.mrb[0].mxu0
        %v2714 = vadd.f32 0.0, %v2713
        %v2715 = vpop.f32.mrb[0].mxu0
        %2716 = vmatprep.mubr.bf16.mxu0 0
        %2717 = vmatmul.mubr.bf16.gmra.mrb[0].mxu0 %v426
        %v2718 = vpop.f32.mrb[0].mxu0
        %v2719 = vadd.f32 0.0, %v2718
        %v2720 = vpop.f32.mrb[0].mxu0
        %v2721 = vpop.f32.mrb[0].mxu0
        %v2722 = vadd.f32 0.0, %v2721
        %v2723 = vpop.f32.mrb[0].mxu0
        %2724 = vmatprep.mubr.bf16.mxu0 0
        %2725 = vmatmul.mubr.bf16.gmra.mrb[0].mxu0 %v427
        %v2726 = vpop.f32.mrb[0].mxu0
        %v2727 = vadd.f32 0.0, %v2726
        %v2728 = vpop.f32.mrb[0].mxu0
        %v2729 = vpop.f32.mrb[0].mxu0
        %v2730 = vadd.f32 0.0, %v2729
        %v2731 = vpop.f32.mrb[0].mxu0
        %2732 = vmatprep.mubr.bf16.mxu0 0
        %2733 = vmatmul.mubr.bf16.gmra.mrb[0].mxu0 %v428
        %v2734 = vpop.f32.mrb[0].mxu0
        %v2735 = vadd.f32 0.0, %v2734
        %v2736 = vpop.f32.mrb[0].mxu0
        %v2737 = vpop.f32.mrb[0].mxu0
        %v2738 = vadd.f32 0.0, %v2737
        %v2739 = vpop.f32.mrb[0].mxu0
        %2740 = vmatprep.mubr.bf16.mxu0 0
        %2741 = vmatmul.mubr.bf16.gmra.mrb[0].mxu0 %v429
        %v2742 = vpop.f32.mrb[0].mxu0
        %v2743 = vadd.f32 0.0, %v2742
        %v2744 = vpop.f32.mrb[0].mxu0
        %v2745 = vpop.f32.mrb[0].mxu0
        %v2746 = vadd.f32 0.0, %v2745
        %v2747 = vpop.f32.mrb[0].mxu0
        %2748 = vmatprep.mubr.bf16.mxu0 0
        %2749 = vmatmul.mubr.bf16.gmra.mrb[0].mxu0 %v430
        %v2750 = vpop.f32.mrb[0].mxu0
        %v2751 = vadd.f32 0.0, %v2750
        %v2752 = vpop.f32.mrb[0].mxu0
        %v2753 = vpop.f32.mrb[0].mxu0
        %v2754 = vadd.f32 0.0, %v2753
        %v2755 = vpop.f32.mrb[0].mxu0
        %2756 = vmatprep.mubr.bf16.mxu0 0
        %2757 = vmatmul.mubr.bf16.gmra.mrb[0].mxu0 %v431
        %v2758 = vpop.f32.mrb[0].mxu0
        %v2759 = vadd.f32 0.0, %v2758
        %v2760 = vpop.f32.mrb[0].mxu0
        %v2761 = vpop.f32.mrb[0].mxu0
        %v2762 = vadd.f32 0.0, %v2761
        %v2763 = vpop.f32.mrb[0].mxu0
        %2764 = vmatprep.mubr.bf16.mxu0 0
        %2765 = vmatmul.mubr.bf16.gmra.mrb[0].mxu0 %v432
        %v2766 = vpop.f32.mrb[0].mxu0
        %v2767 = vadd.f32 0.0, %v2766
        %v2768 = vpop.f32.mrb[0].mxu0
        %v2769 = vpop.f32.mrb[0].mxu0
        %v2770 = vadd.f32 0.0, %v2769
        %v2771 = vpop.f32.mrb[0].mxu0
        %2772 = vmatprep.mubr.bf16.mxu0 0
        %2773 = vmatmul.mubr.bf16.gmra.mrb[0].mxu0 %v433
        %v2774 = vpop.f32.mrb[0].mxu0
        %v2775 = vadd.f32 0.0, %v2774
        %v2776 = vpop.f32.mrb[0].mxu0
        %v2777 = vpop.f32.mrb[0].mxu0
        %v2778 = vadd.f32 0.0, %v2777
        %v2779 = vpop.f32.mrb[0].mxu0
        %2780 = vmatprep.mubr.bf16.mxu0 0
        %2781 = vmatmul.mubr.bf16.gmra.mrb[0].mxu0 %v434
        %v2782 = vpop.f32.mrb[0].mxu0
        %v2783 = vadd.f32 0.0, %v2782
        %v2784 = vpop.f32.mrb[0].mxu0
        %v2785 = vpop.f32.mrb[0].mxu0
        %v2786 = vadd.f32 0.0, %v2785
        %v2787 = vpop.f32.mrb[0].mxu0
        %2788 = vmatprep.mubr.bf16.mxu0 0
        %2789 = vmatmul.mubr.bf16.gmra.mrb[0].mxu0 %v435
        %v2790 = vpop.f32.mrb[0].mxu0
        %v2791 = vadd.f32 0.0, %v2790
        %v2792 = vpop.f32.mrb[0].mxu0
        %v2793 = vpop.f32.mrb[0].mxu0
        %v2794 = vadd.f32 0.0, %v2793
        %v2795 = vpop.f32.mrb[0].mxu0
        %2796 = vmatprep.mubr.bf16.mxu0 0
        %2797 = vmatmul.mubr.bf16.gmra.mrb[0].mxu0 %v436
        %v2798 = vpop.f32.mrb[0].mxu0
        %v2799 = vadd.f32 0.0, %v2798
        %v2800 = vpop.f32.mrb[0].mxu0
        %v2801 = vpop.f32.mrb[0].mxu0
        %v2802 = vadd.f32 0.0, %v2801
        %v2803 = vpop.f32.mrb[0].mxu0
        %2804 = vmatprep.mubr.bf16.mxu0 0
        %2805 = vmatmul.mubr.bf16.gmra.mrb[0].mxu0 %v437
        %v2806 = vpop.f32.mrb[0].mxu0
        %v2807 = vadd.f32 0.0, %v2806
        %v2808 = vpop.f32.mrb[0].mxu0
        %v2809 = vpop.f32.mrb[0].mxu0
        %v2810 = vadd.f32 0.0, %v2809
        %v2811 = vpop.f32.mrb[0].mxu0
        %2812 = vmatprep.mubr.bf16.mxu0 0
        %2813 = vmatmul.mubr.bf16.gmra.mrb[0].mxu0 %v438
        %v2814 = vpop.f32.mrb[0].mxu0
        %v2815 = vadd.f32 0.0, %v2814
        %v2816 = vpop.f32.mrb[0].mxu0
        %v2817 = vpop.f32.mrb[0].mxu0
        %v2818 = vadd.f32 0.0, %v2817
        %v2819 = vpop.f32.mrb[0].mxu0
        %2820 = vmatprep.mubr.bf16.mxu0 0
        %2821 = vmatmul.mubr.bf16.gmra.mrb[0].mxu0 %v439
        %v2822 = vpop.f32.mrb[0].mxu0
        %v2823 = vadd.f32 0.0, %v2822
        %v2824 = vpop.f32.mrb[0].mxu0
        %v2825 = vpop.f32.mrb[0].mxu0
        %v2826 = vadd.f32 0.0, %v2825
        %v2827 = vpop.f32.mrb[0].mxu0
        %2828 = vmatprep.mubr.bf16.mxu0 0
        %2829 = vmatmul.mubr.bf16.gmra.mrb[0].mxu0 %v440
        %v2830 = vpop.f32.mrb[0].mxu0
        %v2831 = vadd.f32 0.0, %v2830
        %v2832 = vpop.f32.mrb[0].mxu0
        %v2833 = vpop.f32.mrb[0].mxu0
        %v2834 = vadd.f32 0.0, %v2833
        %v2835 = vpop.f32.mrb[0].mxu0
        %2836 = vmatprep.mubr.bf16.mxu0 0
        %2837 = vmatmul.mubr.bf16.gmra.mrb[0].mxu0 %v441
        %v2838 = vpop.f32.mrb[0].mxu0
        %v2839 = vadd.f32 0.0, %v2838
        %v2840 = vpop.f32.mrb[0].mxu0
        %v2841 = vpop.f32.mrb[0].mxu0
        %v2842 = vadd.f32 0.0, %v2841
        %v2843 = vpop.f32.mrb[0].mxu0
        %2844 = vdwg.mxu0
        %v2861 = vunpack.c.l.b16 %v2539
        %v2862 = vunpack.c.l.b16 %v2540
        %v2863 = vunpack.c.l.b16 %v2541
        %v2864 = vunpack.c.l.b16 %v2542
        %v2865 = vunpack.c.l.b16 %v2543
        %v2866 = vunpack.c.l.b16 %v2544
        %v2867 = vunpack.c.l.b16 %v2545
        %v2868 = vunpack.c.l.b16 %v2546
        %v2869 = vunpack.c.l.b16 %v2547
        %v2870 = vunpack.c.l.b16 %v2548
        %v2871 = vunpack.c.l.b16 %v2549
        %v2872 = vunpack.c.l.b16 %v2550
        %v2873 = vunpack.c.l.b16 %v2551
        %v2874 = vunpack.c.l.b16 %v2552
        %v2875 = vunpack.c.l.b16 %v2553
        %v2876 = vunpack.c.l.b16 %v2554
        %v2877 = vpack.c.b16 %v2862, %v2861
        %v2878 = vpack.c.b16 %v2864, %v2863
        %v2879 = vpack.c.b16 %v2866, %v2865
        %v2880 = vpack.c.b16 %v2868, %v2867
        %v2881 = vpack.c.b16 %v2870, %v2869
        %v2882 = vpack.c.b16 %v2872, %v2871
        %v2883 = vpack.c.b16 %v2874, %v2873
        %v2884 = vpack.c.b16 %v2876, %v2875
        %2893 = vmatprep.subr.bf16.mxu0 0
        %2894 = vmatpush1.bf16.msra.mxu0 %v2877
        %2895 = vmatprep.subr.bf16.mxu0 0
        %2896 = vmatpush1.bf16.msra.mxu0 %v2878
        %2897 = vmatprep.subr.bf16.mxu0 0
        %2898 = vmatpush1.bf16.msra.mxu0 %v2879
        %2899 = vmatprep.subr.bf16.mxu0 0
        %2900 = vmatpush1.bf16.msra.mxu0 %v2880
        %2901 = vmatprep.subr.bf16.mxu0 0
        %2902 = vmatpush1.bf16.msra.mxu0 %v2881
        %2903 = vmatprep.subr.bf16.mxu0 0
        %2904 = vmatpush1.bf16.msra.mxu0 %v2882
        %2905 = vmatprep.subr.bf16.mxu0 0
        %2906 = vmatpush1.bf16.msra.mxu0 %v2883
        %2907 = vmatprep.subr.bf16.mxu0 0
        %2908 = vmatpush1.bf16.msra.mxu0 %v2884
        %2909 = vmatprep.subr.bf16.mxu0 0
        %2910 = vmatpush1.bf16.msra.mxu0 0
        %2911 = vmatprep.subr.bf16.mxu0 0
        %2912 = vmatpush1.bf16.msra.mxu0 0
        %2913 = vmatprep.subr.bf16.mxu0 0
        %2914 = vmatpush1.bf16.msra.mxu0 0
        %2915 = vmatprep.subr.bf16.mxu0 0
        %2916 = vmatpush1.bf16.msra.mxu0 0
        %2917 = vmatprep.subr.bf16.mxu0 0
        %2918 = vmatpush1.bf16.msra.mxu0 0
        %2919 = vmatprep.subr.bf16.mxu0 0
        %2920 = vmatpush1.bf16.msra.mxu0 0
        %2921 = vmatprep.subr.bf16.mxu0 0
        %2922 = vmatpush1.bf16.msra.mxu0 0
        %2923 = vmatprep.subr.bf16.mxu0 0
        %2924 = vmatpush1.bf16.msra.mxu0 0
        %2925 = vmatprep.mubr.bf16.mxu0 0
        %2926 = vmatmul.mubr.bf16.gmra.mrb[0].mxu0 %v723
        %v2927 = vpop.f32.mrb[0].mxu0
        %v2928 = vadd.f32 %v2655, %v2927
        %v2929 = vpop.f32.mrb[0].mxu0
        %v2930 = vpop.f32.mrb[0].mxu0
        %v2931 = vadd.f32 %v2658, %v2930
        %v2932 = vpop.f32.mrb[0].mxu0
        %2933 = vmatprep.mubr.bf16.mxu0 0
        %2934 = vmatmul.mubr.bf16.gmra.mrb[0].mxu0 %v724
        %v2935 = vpop.f32.mrb[0].mxu0
        %v2936 = vadd.f32 %v2663, %v2935
        %v2937 = vpop.f32.mrb[0].mxu0
        %v2938 = vpop.f32.mrb[0].mxu0
        %v2939 = vadd.f32 %v2666, %v2938
        %v2940 = vpop.f32.mrb[0].mxu0
        %2941 = vmatprep.mubr.bf16.mxu0 0
        %2942 = vmatmul.mubr.bf16.gmra.mrb[0].mxu0 %v725
        %v2943 = vpop.f32.mrb[0].mxu0
        %v2944 = vadd.f32 %v2671, %v2943
        %v2945 = vpop.f32.mrb[0].mxu0
        %v2946 = vpop.f32.mrb[0].mxu0
        %v2947 = vadd.f32 %v2674, %v2946
        %v2948 = vpop.f32.mrb[0].mxu0
        %2949 = vmatprep.mubr.bf16.mxu0 0
        %2950 = vmatmul.mubr.bf16.gmra.mrb[0].mxu0 %v726
        %v2951 = vpop.f32.mrb[0].mxu0
        %v2952 = vadd.f32 %v2679, %v2951
        %v2953 = vpop.f32.mrb[0].mxu0
        %v2954 = vpop.f32.mrb[0].mxu0
        %v2955 = vadd.f32 %v2682, %v2954
        %v2956 = vpop.f32.mrb[0].mxu0
        %2957 = vmatprep.mubr.bf16.mxu0 0
        %2958 = vmatmul.mubr.bf16.gmra.mrb[0].mxu0 %v727
        %v2959 = vpop.f32.mrb[0].mxu0
        %v2960 = vadd.f32 %v2687, %v2959
        %v2961 = vpop.f32.mrb[0].mxu0
        %v2962 = vpop.f32.mrb[0].mxu0
        %v2963 = vadd.f32 %v2690, %v2962
        %v2964 = vpop.f32.mrb[0].mxu0
        %2965 = vmatprep.mubr.bf16.mxu0 0
        %2966 = vmatmul.mubr.bf16.gmra.mrb[0].mxu0 %v728
        %v2967 = vpop.f32.mrb[0].mxu0
        %v2968 = vadd.f32 %v2695, %v2967
        %v2969 = vpop.f32.mrb[0].mxu0
        %v2970 = vpop.f32.mrb[0].mxu0
        %v2971 = vadd.f32 %v2698, %v2970
        %v2972 = vpop.f32.mrb[0].mxu0
        %2973 = vmatprep.mubr.bf16.mxu0 0
        %2974 = vmatmul.mubr.bf16.gmra.mrb[0].mxu0 %v729
        %v2975 = vpop.f32.mrb[0].mxu0
        %v2976 = vadd.f32 %v2703, %v2975
        %v2977 = vpop.f32.mrb[0].mxu0
        %v2978 = vpop.f32.mrb[0].mxu0
        %v2979 = vadd.f32 %v2706, %v2978
        %v2980 = vpop.f32.mrb[0].mxu0
        %2981 = vmatprep.mubr.bf16.mxu0 0
        %2982 = vmatmul.mubr.bf16.gmra.mrb[0].mxu0 %v730
        %v2983 = vpop.f32.mrb[0].mxu0
        %v2984 = vadd.f32 %v2711, %v2983
        %v2985 = vpop.f32.mrb[0].mxu0
        %v2986 = vpop.f32.mrb[0].mxu0
        %v2987 = vadd.f32 %v2714, %v2986
        %v2988 = vpop.f32.mrb[0].mxu0
        %2989 = vmatprep.mubr.bf16.mxu0 0
        %2990 = vmatmul.mubr.bf16.gmra.mrb[0].mxu0 %v731
        %v2991 = vpop.f32.mrb[0].mxu0
        %v2992 = vadd.f32 %v2719, %v2991
        %v2993 = vpop.f32.mrb[0].mxu0
        %v2994 = vpop.f32.mrb[0].mxu0
        %v2995 = vadd.f32 %v2722, %v2994
        %v2996 = vpop.f32.mrb[0].mxu0
        %2997 = vmatprep.mubr.bf16.mxu0 0
        %2998 = vmatmul.mubr.bf16.gmra.mrb[0].mxu0 %v732
        %v2999 = vpop.f32.mrb[0].mxu0
        %v3000 = vadd.f32 %v2727, %v2999
        %v3001 = vpop.f32.mrb[0].mxu0
        %v3002 = vpop.f32.mrb[0].mxu0
        %v3003 = vadd.f32 %v2730, %v3002
        %v3004 = vpop.f32.mrb[0].mxu0
        %3005 = vmatprep.mubr.bf16.mxu0 0
        %3006 = vmatmul.mubr.bf16.gmra.mrb[0].mxu0 %v733
        %v3007 = vpop.f32.mrb[0].mxu0
        %v3008 = vadd.f32 %v2735, %v3007
        %v3009 = vpop.f32.mrb[0].mxu0
        %v3010 = vpop.f32.mrb[0].mxu0
        %v3011 = vadd.f32 %v2738, %v3010
        %v3012 = vpop.f32.mrb[0].mxu0
        %3013 = vmatprep.mubr.bf16.mxu0 0
        %3014 = vmatmul.mubr.bf16.gmra.mrb[0].mxu0 %v734
        %v3015 = vpop.f32.mrb[0].mxu0
        %v3016 = vadd.f32 %v2743, %v3015
        %v3017 = vpop.f32.mrb[0].mxu0
        %v3018 = vpop.f32.mrb[0].mxu0
        %v3019 = vadd.f32 %v2746, %v3018
        %v3020 = vpop.f32.mrb[0].mxu0
        %3021 = vmatprep.mubr.bf16.mxu0 0
        %3022 = vmatmul.mubr.bf16.gmra.mrb[0].mxu0 %v735
        %v3023 = vpop.f32.mrb[0].mxu0
        %v3024 = vadd.f32 %v2751, %v3023
        %v3025 = vpop.f32.mrb[0].mxu0
        %v3026 = vpop.f32.mrb[0].mxu0
        %v3027 = vadd.f32 %v2754, %v3026
        %v3028 = vpop.f32.mrb[0].mxu0
        %3029 = vmatprep.mubr.bf16.mxu0 0
        %3030 = vmatmul.mubr.bf16.gmra.mrb[0].mxu0 %v736
        %v3031 = vpop.f32.mrb[0].mxu0
        %v3032 = vadd.f32 %v2759, %v3031
        %v3033 = vpop.f32.mrb[0].mxu0
        %v3034 = vpop.f32.mrb[0].mxu0
        %v3035 = vadd.f32 %v2762, %v3034
        %v3036 = vpop.f32.mrb[0].mxu0
        %3037 = vmatprep.mubr.bf16.mxu0 0
        %3038 = vmatmul.mubr.bf16.gmra.mrb[0].mxu0 %v737
        %v3039 = vpop.f32.mrb[0].mxu0
        %v3040 = vadd.f32 %v2767, %v3039
        %v3041 = vpop.f32.mrb[0].mxu0
        %v3042 = vpop.f32.mrb[0].mxu0
        %v3043 = vadd.f32 %v2770, %v3042
        %v3044 = vpop.f32.mrb[0].mxu0
        %3045 = vmatprep.mubr.bf16.mxu0 0
        %3046 = vmatmul.mubr.bf16.gmra.mrb[0].mxu0 %v738
        %v3047 = vpop.f32.mrb[0].mxu0
        %v3048 = vadd.f32 %v2775, %v3047
        %v3049 = vpop.f32.mrb[0].mxu0
        %v3050 = vpop.f32.mrb[0].mxu0
        %v3051 = vadd.f32 %v2778, %v3050
        %v3052 = vpop.f32.mrb[0].mxu0
        %3053 = vmatprep.mubr.bf16.mxu0 0
        %3054 = vmatmul.mubr.bf16.gmra.mrb[0].mxu0 %v739
        %v3055 = vpop.f32.mrb[0].mxu0
        %v3056 = vadd.f32 %v2783, %v3055
        %v3057 = vpop.f32.mrb[0].mxu0
        %v3058 = vpop.f32.mrb[0].mxu0
        %v3059 = vadd.f32 %v2786, %v3058
        %v3060 = vpop.f32.mrb[0].mxu0
        %3061 = vmatprep.mubr.bf16.mxu0 0
        %3062 = vmatmul.mubr.bf16.gmra.mrb[0].mxu0 %v740
        %v3063 = vpop.f32.mrb[0].mxu0
        %v3064 = vadd.f32 %v2791, %v3063
        %v3065 = vpop.f32.mrb[0].mxu0
        %v3066 = vpop.f32.mrb[0].mxu0
        %v3067 = vadd.f32 %v2794, %v3066
        %v3068 = vpop.f32.mrb[0].mxu0
        %3069 = vmatprep.mubr.bf16.mxu0 0
        %3070 = vmatmul.mubr.bf16.gmra.mrb[0].mxu0 %v741
        %v3071 = vpop.f32.mrb[0].mxu0
        %v3072 = vadd.f32 %v2799, %v3071
        %v3073 = vpop.f32.mrb[0].mxu0
        %v3074 = vpop.f32.mrb[0].mxu0
        %v3075 = vadd.f32 %v2802, %v3074
        %v3076 = vpop.f32.mrb[0].mxu0
        %3077 = vmatprep.mubr.bf16.mxu0 0
        %3078 = vmatmul.mubr.bf16.gmra.mrb[0].mxu0 %v742
        %v3079 = vpop.f32.mrb[0].mxu0
        %v3080 = vadd.f32 %v2807, %v3079
        %v3081 = vpop.f32.mrb[0].mxu0
        %v3082 = vpop.f32.mrb[0].mxu0
        %v3083 = vadd.f32 %v2810, %v3082
        %v3084 = vpop.f32.mrb[0].mxu0
        %3085 = vmatprep.mubr.bf16.mxu0 0
        %3086 = vmatmul.mubr.bf16.gmra.mrb[0].mxu0 %v743
        %v3087 = vpop.f32.mrb[0].mxu0
        %v3088 = vadd.f32 %v2815, %v3087
        %v3089 = vpop.f32.mrb[0].mxu0
        %v3090 = vpop.f32.mrb[0].mxu0
        %v3091 = vadd.f32 %v2818, %v3090
        %v3092 = vpop.f32.mrb[0].mxu0
        %3093 = vmatprep.mubr.bf16.mxu0 0
        %3094 = vmatmul.mubr.bf16.gmra.mrb[0].mxu0 %v744
        %v3095 = vpop.f32.mrb[0].mxu0
        %v3096 = vadd.f32 %v2823, %v3095
        %v3097 = vpop.f32.mrb[0].mxu0
        %v3098 = vpop.f32.mrb[0].mxu0
        %v3099 = vadd.f32 %v2826, %v3098
        %v3100 = vpop.f32.mrb[0].mxu0
        %3101 = vmatprep.mubr.bf16.mxu0 0
        %3102 = vmatmul.mubr.bf16.gmra.mrb[0].mxu0 %v745
        %v3103 = vpop.f32.mrb[0].mxu0
        %v3104 = vadd.f32 %v2831, %v3103
        %v3105 = vpop.f32.mrb[0].mxu0
        %v3106 = vpop.f32.mrb[0].mxu0
        %v3107 = vadd.f32 %v2834, %v3106
        %v3108 = vpop.f32.mrb[0].mxu0
        %3109 = vmatprep.mubr.bf16.mxu0 0
        %3110 = vmatmul.mubr.bf16.gmra.mrb[0].mxu0 %v746
        %v3111 = vpop.f32.mrb[0].mxu0
        %v3112 = vadd.f32 %v2839, %v3111
        %v3113 = vpop.f32.mrb[0].mxu0
        %v3114 = vpop.f32.mrb[0].mxu0
        %v3115 = vadd.f32 %v2842, %v3114
        %v3116 = vpop.f32.mrb[0].mxu0
        %3117 = vdwg.mxu0
        %s3118 = scalar_lea.vmem [#allocation5], 512
        %v3119 = vld [vmem:[%s3118] sm:$0xf]
        %v3120 = vld [vmem:[%s3118 + $0x4] sm:$0xf]
        %v3121 = vld [vmem:[%s3118 + $0x8] sm:$0xf]
        %v3122 = vld [vmem:[%s3118 + $0xc] sm:$0xf]
        %v3123 = vld [vmem:[%s3118 + $0x10] sm:$0xf]
        %v3124 = vld [vmem:[%s3118 + $0x14] sm:$0xf]
        %v3125 = vld [vmem:[%s3118 + $0x18] sm:$0xf]
        %v3126 = vld [vmem:[%s3118 + $0x1c] sm:$0xf]
        %v3127 = vld [vmem:[%s3118 + $0x20] sm:$0xf]
        %v3128 = vld [vmem:[%s3118 + $0x24] sm:$0xf]
        %v3129 = vld [vmem:[%s3118 + $0x28] sm:$0xf]
        %v3130 = vld [vmem:[%s3118 + $0x2c] sm:$0xf]
        %v3131 = vld [vmem:[%s3118 + $0x30] sm:$0xf]
        %v3132 = vld [vmem:[%s3118 + $0x34] sm:$0xf]
        %v3133 = vld [vmem:[%s3118 + $0x38] sm:$0xf]
        %v3134 = vld [vmem:[%s3118 + $0x3c] sm:$0xf]
        %v3151 = vunpack.c.l.b16 %v3119
        %v3152 = vunpack.c.l.b16 %v3120
        %v3153 = vunpack.c.l.b16 %v3121
        %v3154 = vunpack.c.l.b16 %v3122
        %v3155 = vunpack.c.l.b16 %v3123
        %v3156 = vunpack.c.l.b16 %v3124
        %v3157 = vunpack.c.l.b16 %v3125
        %v3158 = vunpack.c.l.b16 %v3126
        %v3159 = vunpack.c.l.b16 %v3127
        %v3160 = vunpack.c.l.b16 %v3128
        %v3161 = vunpack.c.l.b16 %v3129
        %v3162 = vunpack.c.l.b16 %v3130
        %v3163 = vunpack.c.l.b16 %v3131
        %v3164 = vunpack.c.l.b16 %v3132
        %v3165 = vunpack.c.l.b16 %v3133
        %v3166 = vunpack.c.l.b16 %v3134
        %v3167 = vpack.c.b16 %v3152, %v3151
        %v3168 = vpack.c.b16 %v3154, %v3153
        %v3169 = vpack.c.b16 %v3156, %v3155
        %v3170 = vpack.c.b16 %v3158, %v3157
        %v3171 = vpack.c.b16 %v3160, %v3159
        %v3172 = vpack.c.b16 %v3162, %v3161
        %v3173 = vpack.c.b16 %v3164, %v3163
        %v3174 = vpack.c.b16 %v3166, %v3165
        %3183 = vmatprep.subr.bf16.mxu0 0
        %3184 = vmatpush1.bf16.msra.mxu0 %v3167
        %3185 = vmatprep.subr.bf16.mxu0 0
        %3186 = vmatpush1.bf16.msra.mxu0 %v3168
        %3187 = vmatprep.subr.bf16.mxu0 0
        %3188 = vmatpush1.bf16.msra.mxu0 %v3169
        %3189 = vmatprep.subr.bf16.mxu0 0
        %3190 = vmatpush1.bf16.msra.mxu0 %v3170
        %3191 = vmatprep.subr.bf16.mxu0 0
        %3192 = vmatpush1.bf16.msra.mxu0 %v3171
        %3193 = vmatprep.subr.bf16.mxu0 0
        %3194 = vmatpush1.bf16.msra.mxu0 %v3172
        %3195 = vmatprep.subr.bf16.mxu0 0
        %3196 = vmatpush1.bf16.msra.mxu0 %v3173
        %3197 = vmatprep.subr.bf16.mxu0 0
        %3198 = vmatpush1.bf16.msra.mxu0 %v3174
        %3199 = vmatprep.subr.bf16.mxu0 0
        %3200 = vmatpush1.bf16.msra.mxu0 0
        %3201 = vmatprep.subr.bf16.mxu0 0
        %3202 = vmatpush1.bf16.msra.mxu0 0
        %3203 = vmatprep.subr.bf16.mxu0 0
        %3204 = vmatpush1.bf16.msra.mxu0 0
        %3205 = vmatprep.subr.bf16.mxu0 0
        %3206 = vmatpush1.bf16.msra.mxu0 0
        %3207 = vmatprep.subr.bf16.mxu0 0
        %3208 = vmatpush1.bf16.msra.mxu0 0
        %3209 = vmatprep.subr.bf16.mxu0 0
        %3210 = vmatpush1.bf16.msra.mxu0 0
        %3211 = vmatprep.subr.bf16.mxu0 0
        %3212 = vmatpush1.bf16.msra.mxu0 0
        %3213 = vmatprep.subr.bf16.mxu0 0
        %3214 = vmatpush1.bf16.msra.mxu0 0
        %3215 = vmatprep.mubr.bf16.mxu0 0
        %3216 = vmatmul.mubr.bf16.gmra.mrb[0].mxu0 %v726
        %v3217 = vpop.f32.mrb[0].mxu0
        %v3218 = vadd.f32 0.0, %v3217
        %v3219 = vpop.f32.mrb[0].mxu0
        %v3220 = vpop.f32.mrb[0].mxu0
        %v3221 = vadd.f32 0.0, %v3220
        %v3222 = vpop.f32.mrb[0].mxu0
        %3223 = vmatprep.mubr.bf16.mxu0 0
        %3224 = vmatmul.mubr.bf16.gmra.mrb[0].mxu0 %v727
        %v3225 = vpop.f32.mrb[0].mxu0
        %v3226 = vadd.f32 0.0, %v3225
        %v3227 = vpop.f32.mrb[0].mxu0
        %v3228 = vpop.f32.mrb[0].mxu0
        %v3229 = vadd.f32 0.0, %v3228
        %v3230 = vpop.f32.mrb[0].mxu0
        %3231 = vmatprep.mubr.bf16.mxu0 0
        %3232 = vmatmul.mubr.bf16.gmra.mrb[0].mxu0 %v728
        %v3233 = vpop.f32.mrb[0].mxu0
        %v3234 = vadd.f32 0.0, %v3233
        %v3235 = vpop.f32.mrb[0].mxu0
        %v3236 = vpop.f32.mrb[0].mxu0
        %v3237 = vadd.f32 0.0, %v3236
        %v3238 = vpop.f32.mrb[0].mxu0
        %3239 = vmatprep.mubr.bf16.mxu0 0
        %3240 = vmatmul.mubr.bf16.gmra.mrb[0].mxu0 %v729
        %v3241 = vpop.f32.mrb[0].mxu0
        %v3242 = vadd.f32 0.0, %v3241
        %v3243 = vpop.f32.mrb[0].mxu0
        %v3244 = vpop.f32.mrb[0].mxu0
        %v3245 = vadd.f32 0.0, %v3244
        %v3246 = vpop.f32.mrb[0].mxu0
        %3247 = vmatprep.mubr.bf16.mxu0 0
        %3248 = vmatmul.mubr.bf16.gmra.mrb[0].mxu0 %v730
        %v3249 = vpop.f32.mrb[0].mxu0
        %v3250 = vadd.f32 0.0, %v3249
        %v3251 = vpop.f32.mrb[0].mxu0
        %v3252 = vpop.f32.mrb[0].mxu0
        %v3253 = vadd.f32 0.0, %v3252
        %v3254 = vpop.f32.mrb[0].mxu0
        %3255 = vmatprep.mubr.bf16.mxu0 0
        %3256 = vmatmul.mubr.bf16.gmra.mrb[0].mxu0 %v731
        %v3257 = vpop.f32.mrb[0].mxu0
        %v3258 = vadd.f32 0.0, %v3257
        %v3259 = vpop.f32.mrb[0].mxu0
        %v3260 = vpop.f32.mrb[0].mxu0
        %v3261 = vadd.f32 0.0, %v3260
        %v3262 = vpop.f32.mrb[0].mxu0
        %3263 = vmatprep.mubr.bf16.mxu0 0
        %3264 = vmatmul.mubr.bf16.gmra.mrb[0].mxu0 %v732
        %v3265 = vpop.f32.mrb[0].mxu0
        %v3266 = vadd.f32 0.0, %v3265
        %v3267 = vpop.f32.mrb[0].mxu0
        %v3268 = vpop.f32.mrb[0].mxu0
        %v3269 = vadd.f32 0.0, %v3268
        %v3270 = vpop.f32.mrb[0].mxu0
        %3271 = vmatprep.mubr.bf16.mxu0 0
        %3272 = vmatmul.mubr.bf16.gmra.mrb[0].mxu0 %v733
        %v3273 = vpop.f32.mrb[0].mxu0
        %v3274 = vadd.f32 0.0, %v3273
        %v3275 = vpop.f32.mrb[0].mxu0
        %v3276 = vpop.f32.mrb[0].mxu0
        %v3277 = vadd.f32 0.0, %v3276
        %v3278 = vpop.f32.mrb[0].mxu0
        %3279 = vmatprep.mubr.bf16.mxu0 0
        %3280 = vmatmul.mubr.bf16.gmra.mrb[0].mxu0 %v734
        %v3281 = vpop.f32.mrb[0].mxu0
        %v3282 = vadd.f32 0.0, %v3281
        %v3283 = vpop.f32.mrb[0].mxu0
        %v3284 = vpop.f32.mrb[0].mxu0
        %v3285 = vadd.f32 0.0, %v3284
        %v3286 = vpop.f32.mrb[0].mxu0
        %3287 = vmatprep.mubr.bf16.mxu0 0
        %3288 = vmatmul.mubr.bf16.gmra.mrb[0].mxu0 %v735
        %v3289 = vpop.f32.mrb[0].mxu0
        %v3290 = vadd.f32 0.0, %v3289
        %v3291 = vpop.f32.mrb[0].mxu0
        %v3292 = vpop.f32.mrb[0].mxu0
        %v3293 = vadd.f32 0.0, %v3292
        %v3294 = vpop.f32.mrb[0].mxu0
        %3295 = vmatprep.mubr.bf16.mxu0 0
        %3296 = vmatmul.mubr.bf16.gmra.mrb[0].mxu0 %v736
        %v3297 = vpop.f32.mrb[0].mxu0
        %v3298 = vadd.f32 0.0, %v3297
        %v3299 = vpop.f32.mrb[0].mxu0
        %v3300 = vpop.f32.mrb[0].mxu0
        %v3301 = vadd.f32 0.0, %v3300
        %v3302 = vpop.f32.mrb[0].mxu0
        %3303 = vmatprep.mubr.bf16.mxu0 0
        %3304 = vmatmul.mubr.bf16.gmra.mrb[0].mxu0 %v737
        %v3305 = vpop.f32.mrb[0].mxu0
        %v3306 = vadd.f32 0.0, %v3305
        %v3307 = vpop.f32.mrb[0].mxu0
        %v3308 = vpop.f32.mrb[0].mxu0
        %v3309 = vadd.f32 0.0, %v3308
        %v3310 = vpop.f32.mrb[0].mxu0
        %3311 = vmatprep.mubr.bf16.mxu0 0
        %3312 = vmatmul.mubr.bf16.gmra.mrb[0].mxu0 %v738
        %v3313 = vpop.f32.mrb[0].mxu0
        %v3314 = vadd.f32 0.0, %v3313
        %v3315 = vpop.f32.mrb[0].mxu0
        %v3316 = vpop.f32.mrb[0].mxu0
        %v3317 = vadd.f32 0.0, %v3316
        %v3318 = vpop.f32.mrb[0].mxu0
        %3319 = vmatprep.mubr.bf16.mxu0 0
        %3320 = vmatmul.mubr.bf16.gmra.mrb[0].mxu0 %v739
        %v3321 = vpop.f32.mrb[0].mxu0
        %v3322 = vadd.f32 0.0, %v3321
        %v3323 = vpop.f32.mrb[0].mxu0
        %v3324 = vpop.f32.mrb[0].mxu0
        %v3325 = vadd.f32 0.0, %v3324
        %v3326 = vpop.f32.mrb[0].mxu0
        %3327 = vmatprep.mubr.bf16.mxu0 0
        %3328 = vmatmul.mubr.bf16.gmra.mrb[0].mxu0 %v740
        %v3329 = vpop.f32.mrb[0].mxu0
        %v3330 = vadd.f32 0.0, %v3329
        %v3331 = vpop.f32.mrb[0].mxu0
        %v3332 = vpop.f32.mrb[0].mxu0
        %v3333 = vadd.f32 0.0, %v3332
        %v3334 = vpop.f32.mrb[0].mxu0
        %3335 = vmatprep.mubr.bf16.mxu0 0
        %3336 = vmatmul.mubr.bf16.gmra.mrb[0].mxu0 %v741
        %v3337 = vpop.f32.mrb[0].mxu0
        %v3338 = vadd.f32 0.0, %v3337
        %v3339 = vpop.f32.mrb[0].mxu0
        %v3340 = vpop.f32.mrb[0].mxu0
        %v3341 = vadd.f32 0.0, %v3340
        %v3342 = vpop.f32.mrb[0].mxu0
        %3343 = vmatprep.mubr.bf16.mxu0 0
        %3344 = vmatmul.mubr.bf16.gmra.mrb[0].mxu0 %v742
        %v3345 = vpop.f32.mrb[0].mxu0
        %v3346 = vadd.f32 0.0, %v3345
        %v3347 = vpop.f32.mrb[0].mxu0
        %v3348 = vpop.f32.mrb[0].mxu0
        %v3349 = vadd.f32 0.0, %v3348
        %v3350 = vpop.f32.mrb[0].mxu0
        %3351 = vmatprep.mubr.bf16.mxu0 0
        %3352 = vmatmul.mubr.bf16.gmra.mrb[0].mxu0 %v743
        %v3353 = vpop.f32.mrb[0].mxu0
        %v3354 = vadd.f32 0.0, %v3353
        %v3355 = vpop.f32.mrb[0].mxu0
        %v3356 = vpop.f32.mrb[0].mxu0
        %v3357 = vadd.f32 0.0, %v3356
        %v3358 = vpop.f32.mrb[0].mxu0
        %3359 = vmatprep.mubr.bf16.mxu0 0
        %3360 = vmatmul.mubr.bf16.gmra.mrb[0].mxu0 %v744
        %v3361 = vpop.f32.mrb[0].mxu0
        %v3362 = vadd.f32 0.0, %v3361
        %v3363 = vpop.f32.mrb[0].mxu0
        %v3364 = vpop.f32.mrb[0].mxu0
        %v3365 = vadd.f32 0.0, %v3364
        %v3366 = vpop.f32.mrb[0].mxu0
        %3367 = vmatprep.mubr.bf16.mxu0 0
        %3368 = vmatmul.mubr.bf16.gmra.mrb[0].mxu0 %v745
        %v3369 = vpop.f32.mrb[0].mxu0
        %v3370 = vadd.f32 0.0, %v3369
        %v3371 = vpop.f32.mrb[0].mxu0
        %v3372 = vpop.f32.mrb[0].mxu0
        %v3373 = vadd.f32 0.0, %v3372
        %v3374 = vpop.f32.mrb[0].mxu0
        %3375 = vmatprep.mubr.bf16.mxu0 0
        %3376 = vmatmul.mubr.bf16.gmra.mrb[0].mxu0 %v746
        %v3377 = vpop.f32.mrb[0].mxu0
        %v3378 = vadd.f32 0.0, %v3377
        %v3379 = vpop.f32.mrb[0].mxu0
        %v3380 = vpop.f32.mrb[0].mxu0
        %v3381 = vadd.f32 0.0, %v3380
        %v3382 = vpop.f32.mrb[0].mxu0
        %3383 = vmatprep.mubr.bf16.mxu0 0
        %3384 = vmatmul.mubr.bf16.gmra.mrb[0].mxu0 %v1045
        %v3385 = vpop.f32.mrb[0].mxu0
        %v3386 = vadd.f32 0.0, %v3385
        %v3387 = vpop.f32.mrb[0].mxu0
        %v3388 = vpop.f32.mrb[0].mxu0
        %v3389 = vadd.f32 0.0, %v3388
        %v3390 = vpop.f32.mrb[0].mxu0
        %3391 = vmatprep.mubr.bf16.mxu0 0
        %3392 = vmatmul.mubr.bf16.gmra.mrb[0].mxu0 %v1046
        %v3393 = vpop.f32.mrb[0].mxu0
        %v3394 = vadd.f32 0.0, %v3393
        %v3395 = vpop.f32.mrb[0].mxu0
        %v3396 = vpop.f32.mrb[0].mxu0
        %v3397 = vadd.f32 0.0, %v3396
        %v3398 = vpop.f32.mrb[0].mxu0
        %3399 = vmatprep.mubr.bf16.mxu0 0
        %3400 = vmatmul.mubr.bf16.gmra.mrb[0].mxu0 %v1047
        %v3401 = vpop.f32.mrb[0].mxu0
        %v3402 = vadd.f32 0.0, %v3401
        %v3403 = vpop.f32.mrb[0].mxu0
        %v3404 = vpop.f32.mrb[0].mxu0
        %v3405 = vadd.f32 0.0, %v3404
        %v3406 = vpop.f32.mrb[0].mxu0
        %3407 = vdwg.mxu0
        %v3408 = vadd.f32 %v2928, %v3218
        %v3409 = vadd.f32 %v2931, %v3221
        %v3410 = vadd.f32 %v2936, %v3226
        %v3411 = vadd.f32 %v2939, %v3229
        %v3412 = vadd.f32 %v2944, %v3234
        %v3413 = vadd.f32 %v2947, %v3237
        %v3414 = vadd.f32 %v2952, %v3242
        %v3415 = vadd.f32 %v2955, %v3245
        %v3416 = vadd.f32 %v2960, %v3250
        %v3417 = vadd.f32 %v2963, %v3253
        %v3418 = vadd.f32 %v2968, %v3258
        %v3419 = vadd.f32 %v2971, %v3261
        %v3420 = vadd.f32 %v2976, %v3266
        %v3421 = vadd.f32 %v2979, %v3269
        %v3422 = vadd.f32 %v2984, %v3274
        %v3423 = vadd.f32 %v2987, %v3277
        %v3424 = vadd.f32 %v2992, %v3282
        %v3425 = vadd.f32 %v2995, %v3285
        %v3426 = vadd.f32 %v3000, %v3290
        %v3427 = vadd.f32 %v3003, %v3293
        %v3428 = vadd.f32 %v3008, %v3298
        %v3429 = vadd.f32 %v3011, %v3301
        %v3430 = vadd.f32 %v3016, %v3306
        %v3431 = vadd.f32 %v3019, %v3309
        %v3432 = vadd.f32 %v3024, %v3314
        %v3433 = vadd.f32 %v3027, %v3317
        %v3434 = vadd.f32 %v3032, %v3322
        %v3435 = vadd.f32 %v3035, %v3325
        %v3436 = vadd.f32 %v3040, %v3330
        %v3437 = vadd.f32 %v3043, %v3333
        %v3438 = vadd.f32 %v3048, %v3338
        %v3439 = vadd.f32 %v3051, %v3341
        %v3440 = vadd.f32 %v3056, %v3346
        %v3441 = vadd.f32 %v3059, %v3349
        %v3442 = vadd.f32 %v3064, %v3354
        %v3443 = vadd.f32 %v3067, %v3357
        %v3444 = vadd.f32 %v3072, %v3362
        %v3445 = vadd.f32 %v3075, %v3365
        %v3446 = vadd.f32 %v3080, %v3370
        %v3447 = vadd.f32 %v3083, %v3373
        %v3448 = vadd.f32 %v3088, %v3378
        %v3449 = vadd.f32 %v3091, %v3381
        %v3450 = vadd.f32 %v3096, %v3386
        %v3451 = vadd.f32 %v3099, %v3389
        %v3452 = vadd.f32 %v3104, %v3394
        %v3453 = vadd.f32 %v3107, %v3397
        %v3454 = vadd.f32 %v3112, %v3402
        %v3455 = vadd.f32 %v3115, %v3405
        %vm3504 = vcmask 1045504
        %v3505 = vrot.slane %v3408, 2
        %v3506 = vrot.slane %v3409, 2
        %v3507 = vsel %vm3504, %v3505, %v3506
        %v3508 = vrot.slane %v3410, 2
        %v3509 = vsel %vm3504, %v3506, %v3508
        %v3510 = vrot.slane %v3411, 2
        %v3511 = vrot.slane %v3412, 2
        %v3512 = vsel %vm3504, %v3510, %v3511
        %v3513 = vrot.slane %v3413, 2
        %v3514 = vsel %vm3504, %v3511, %v3513
        %v3515 = vrot.slane %v3414, 2
        %v3516 = vrot.slane %v3415, 2
        %v3517 = vsel %vm3504, %v3515, %v3516
        %v3518 = vrot.slane %v3416, 2
        %v3519 = vsel %vm3504, %v3516, %v3518
        %v3520 = vrot.slane %v3417, 2
        %v3521 = vrot.slane %v3418, 2
        %v3522 = vsel %vm3504, %v3520, %v3521
        %v3523 = vrot.slane %v3419, 2
        %v3524 = vsel %vm3504, %v3521, %v3523
        %v3525 = vrot.slane %v3420, 2
        %v3526 = vrot.slane %v3421, 2
        %v3527 = vsel %vm3504, %v3525, %v3526
        %v3528 = vrot.slane %v3422, 2
        %v3529 = vsel %vm3504, %v3526, %v3528
        %v3530 = vrot.slane %v3423, 2
        %v3531 = vrot.slane %v3424, 2
        %v3532 = vsel %vm3504, %v3530, %v3531
        %v3533 = vrot.slane %v3425, 2
        %v3534 = vsel %vm3504, %v3531, %v3533
        %v3535 = vrot.slane %v3426, 2
        %v3536 = vrot.slane %v3427, 2
        %v3537 = vsel %vm3504, %v3535, %v3536
        %v3538 = vrot.slane %v3428, 2
        %v3539 = vsel %vm3504, %v3536, %v3538
        %v3540 = vrot.slane %v3429, 2
        %v3541 = vrot.slane %v3430, 2
        %v3542 = vsel %vm3504, %v3540, %v3541
        %v3543 = vrot.slane %v3431, 2
        %v3544 = vsel %vm3504, %v3541, %v3543
        %v3545 = vrot.slane %v3432, 2
        %v3546 = vrot.slane %v3433, 2
        %v3547 = vsel %vm3504, %v3545, %v3546
        %v3548 = vrot.slane %v3434, 2
        %v3549 = vsel %vm3504, %v3546, %v3548
        %v3550 = vrot.slane %v3435, 2
        %v3551 = vrot.slane %v3436, 2
        %v3552 = vsel %vm3504, %v3550, %v3551
        %v3553 = vrot.slane %v3437, 2
        %v3554 = vsel %vm3504, %v3551, %v3553
        %v3555 = vrot.slane %v3438, 2
        %v3556 = vrot.slane %v3439, 2
        %v3557 = vsel %vm3504, %v3555, %v3556
        %v3558 = vrot.slane %v3440, 2
        %v3559 = vsel %vm3504, %v3556, %v3558
        %v3560 = vrot.slane %v3441, 2
        %v3561 = vrot.slane %v3442, 2
        %v3562 = vsel %vm3504, %v3560, %v3561
        %v3563 = vrot.slane %v3443, 2
        %v3564 = vsel %vm3504, %v3561, %v3563
        %v3565 = vrot.slane %v3444, 2
        %v3566 = vrot.slane %v3445, 2
        %v3567 = vsel %vm3504, %v3565, %v3566
        %v3568 = vrot.slane %v3446, 2
        %v3569 = vsel %vm3504, %v3566, %v3568
        %v3570 = vrot.slane %v3447, 2
        %v3571 = vrot.slane %v3448, 2
        %v3572 = vsel %vm3504, %v3570, %v3571
        %v3573 = vrot.slane %v3449, 2
        %v3574 = vsel %vm3504, %v3571, %v3573
        %v3575 = vrot.slane %v3450, 2
        %v3576 = vrot.slane %v3451, 2
        %v3577 = vsel %vm3504, %v3575, %v3576
        %v3578 = vrot.slane %v3452, 2
        %v3579 = vsel %vm3504, %v3576, %v3578
        %v3580 = vrot.slane %v3453, 2
        %v3581 = vrot.slane %v3454, 2
        %v3582 = vsel %vm3504, %v3580, %v3581
        %v3583 = vrot.slane %v3455, 2
        %v3584 = vsel %vm3504, %v3581, %v3583
        %v3617 = vadd.f32 %v2506, %v3507
        %v3618 = vadd.f32 %v2507, %v3509
        %v3619 = vadd.f32 %v2508, %v3512
        %v3620 = vadd.f32 %v2509, %v3514
        %v3621 = vadd.f32 %v2510, %v3517
        %v3622 = vadd.f32 %v2511, %v3519
        %v3623 = vadd.f32 %v2512, %v3522
        %v3624 = vadd.f32 %v2513, %v3524
        %v3625 = vadd.f32 %v2514, %v3527
        %v3626 = vadd.f32 %v2515, %v3529
        %v3627 = vadd.f32 %v2516, %v3532
        %v3628 = vadd.f32 %v2517, %v3534
        %v3629 = vadd.f32 %v2518, %v3537
        %v3630 = vadd.f32 %v2519, %v3539
        %v3631 = vadd.f32 %v2520, %v3542
        %v3632 = vadd.f32 %v2521, %v3544
        %v3633 = vadd.f32 %v2522, %v3547
        %v3634 = vadd.f32 %v2523, %v3549
        %v3635 = vadd.f32 %v2524, %v3552
        %v3636 = vadd.f32 %v2525, %v3554
        %v3637 = vadd.f32 %v2526, %v3557
        %v3638 = vadd.f32 %v2527, %v3559
        %v3639 = vadd.f32 %v2528, %v3562
        %v3640 = vadd.f32 %v2529, %v3564
        %v3641 = vadd.f32 %v2530, %v3567
        %v3642 = vadd.f32 %v2531, %v3569
        %v3643 = vadd.f32 %v2532, %v3572
        %v3644 = vadd.f32 %v2533, %v3574
        %v3645 = vadd.f32 %v2534, %v3577
        %v3646 = vadd.f32 %v2535, %v3579
        %v3647 = vadd.f32 %v2536, %v3582
        %v3648 = vadd.f32 %v2537, %v3584
        %3649 = vst [vmem:[%s203] sm:$0xff] %v3617
        %3650 = vst [vmem:[%s203 + $0x8] sm:$0xff] %v3618
        %3651 = vst [vmem:[%s203 + $0x10] sm:$0xff] %v3619
        %3652 = vst [vmem:[%s203 + $0x18] sm:$0xff] %v3620
        %3653 = vst [vmem:[%s203 + $0x20] sm:$0xff] %v3621
        %3654 = vst [vmem:[%s203 + $0x28] sm:$0xff] %v3622
        %3655 = vst [vmem:[%s203 + $0x30] sm:$0xff] %v3623
        %3656 = vst [vmem:[%s203 + $0x38] sm:$0xff] %v3624
        %3657 = vst [vmem:[%s203 + $0x40] sm:$0xff] %v3625
        %3658 = vst [vmem:[%s203 + $0x48] sm:$0xff] %v3626
        %3659 = vst [vmem:[%s203 + $0x50] sm:$0xff] %v3627
        %3660 = vst [vmem:[%s203 + $0x58] sm:$0xff] %v3628
        %3661 = vst [vmem:[%s203 + $0x60] sm:$0xff] %v3629
        %3662 = vst [vmem:[%s203 + $0x68] sm:$0xff] %v3630
        %3663 = vst [vmem:[%s203 + $0x70] sm:$0xff] %v3631
        %3664 = vst [vmem:[%s203 + $0x78] sm:$0xff] %v3632
        %3665 = vst [vmem:[%s203 + $0x80] sm:$0xff] %v3633
        %3666 = vst [vmem:[%s203 + $0x88] sm:$0xff] %v3634
        %3667 = vst [vmem:[%s203 + $0x90] sm:$0xff] %v3635
        %3668 = vst [vmem:[%s203 + $0x98] sm:$0xff] %v3636
        %3669 = vst [vmem:[%s203 + $0xa0] sm:$0xff] %v3637
        %3670 = vst [vmem:[%s203 + $0xa8] sm:$0xff] %v3638
        %3671 = vst [vmem:[%s203 + $0xb0] sm:$0xff] %v3639
        %3672 = vst [vmem:[%s203 + $0xb8] sm:$0xff] %v3640
        %3673 = vst [vmem:[%s203 + $0xc0] sm:$0xff] %v3641
        %3674 = vst [vmem:[%s203 + $0xc8] sm:$0xff] %v3642
        %3675 = vst [vmem:[%s203 + $0xd0] sm:$0xff] %v3643
        %3676 = vst [vmem:[%s203 + $0xd8] sm:$0xff] %v3644
        %3677 = vst [vmem:[%s203 + $0xe0] sm:$0xff] %v3645
        %3678 = vst [vmem:[%s203 + $0xe8] sm:$0xff] %v3646
        %3679 = vst [vmem:[%s203 + $0xf0] sm:$0xff] %v3647
        %3680 = vst [vmem:[%s203 + $0xf8] sm:$0xff] %v3648
        %s3681 = sand.u32 %s97, 1
        %s3682 = scalar_lea.sflag [#allocation4], %s3681
        %s3683 = sand.u32 %s97, 1
        %s3684 = smul.addr %s3683, 256
        %s3685 = scalar_lea.vmem [#allocation7], %s3684
        // Predicated region
        $region41: #{tpu_custom_call.1} parent=31 // pred_check
          %p3686 = pneg %p107
        $region42: #{tpu_custom_call.1} parent=31 // pred_check_branch
          %3688 = sbr.rel (%p3686) target = $region44
        $region43: #{tpu_custom_call.1} parent=31 // pred_region
          %s3690 = ssub.s32 4096, 4096
          %3691 = vsyncadd %s3682, %s3690
          %s3692 = smul.addr %s21, 32
          %s3693 = smul.addr %s3692, 128
          %s3694 = scalar_lea.hbm %s3, %s3693
          %s3695 = sshll.u32 %s3685, 4
          %s3696 = int_to_ptr.vmem [resolvable:$true] %s3695
          %3701 = dma.vmem_to_hbm [thread:$0]  %s3696, 4096, %s3694, %s3682, 128, 128, 8
        $region44: #{tpu_custom_call.1} parent=31 // pred_fallthru
          _
      $region32: #{tpu_custom_call.1} parent=5 // pred_fallthru
        _
      %p3702 = scmp.le.s32.totalorder 2, %s16
      // Predicated region
      $region45: #{tpu_custom_call.1} parent=5 // pred_check
        %p3703 = pneg %p3702
      $region46: #{tpu_custom_call.1} parent=5 // pred_check_branch
        %3705 = sbr.rel (%p3703) target = $region48
      $region47: #{tpu_custom_call.1} parent=5 // pred_region
        %s3706 = ssub.s32 %s16, 2
        // Predicated region
        $region49: #{tpu_custom_call.1} parent=47 // pred_check
          %p3707 = pneg %p113
        $region50: #{tpu_custom_call.1} parent=47 // pred_check_branch
          %3709 = sbr.rel (%p3707) target = $region52
        $region51: #{tpu_custom_call.1} parent=47 // pred_region
          %s3710 = sand.u32 %s98, 1
          %s3711 = scalar_lea.sflag [#allocation4], %s3710
          %s3712 = sand.u32 %s98, 1
          %s3713 = smul.addr %s3712, 256
          %s3714 = scalar_lea.vmem [#allocation7], %s3713
          %3715 = dma.done %s3711, 4096
        $region52: #{tpu_custom_call.1} parent=47 // pred_fallthru
          _
      $region48: #{tpu_custom_call.1} parent=5 // pred_fallthru
        _
    $region6: #{tpu_custom_call.1} parent=1 // loop_footer
      %s20 = sadd.s32 1, %s16
    $region7: #{tpu_custom_call.1} parent=1 // loop_footer_branch
      %15 = sbr.rel target = $region3
    $region8: #{tpu_custom_call.1} parent=1 // loop_exit
      _
    %3716 = vsyncpa [#allocation3], 1
    %s3717 = scalar_lea.sflag [#allocation3], 1
    %3718 = vsyncpa %s3717, 1
    %3719 = vsyncpa [#allocation6], 1
    %3720 = vsyncpa [#allocation4], 1
    %s3721 = scalar_lea.sflag [#allocation4], 1
    %3722 = vsyncpa %s3721, 1

</llo_original>
